<compile_context>
chip_gen: v5e
topology: v5e:2x2
jax: 0.10.0
libtpu: 0.0.40
codegen_flags: <defaults>
</compile_context>

<pallas_src>
import functools

import jax
import jax.numpy as jnp
import numpy as np
from jax import lax
from jax.experimental import pallas as pl
from jax.experimental.pallas import tpu as pltpu

HIDDEN = 64
LANES = 128
CHUNK_ROWS = 64        # (64,128) f32 chunk = 8 vregs; x + acc + temps fit in vregs
MAX_TILE_ROWS = 2048   # (2048,128) f32 block = 1 MiB; double-buffered in+out ~ 4 MiB


def _round_up(a, b):
    return -(-a // b) * b


@functools.lru_cache(maxsize=None)
def _make_kernel(n_pos):
    """Kernel specialised on the (static) number of hidden units with w2 >= 0."""

    def kernel(params_ref, x_ref, o_ref):
        # params_ref (SMEM, (3, HIDDEN) f32), hidden units reordered so the
        # n_pos units with sign(w2) >= 0 come first:
        #   row 0: a_j = |w2_j| * w1_j
        #   row 1: d_j = |w2_j| * b1_j
        #   row 2: [b2, 0, 0, ...]
        tile_r = x_ref.shape[0]
        n_chunks = tile_r // CHUNK_ROWS
        b2 = params_ref[2, 0]

        def chunk_body(c, carry):
            r0 = pl.multiple_of(c * CHUNK_ROWS, CHUNK_ROWS)
            x = x_ref[pl.ds(r0, CHUNK_ROWS), :]      # 8 vregs, stays in-register
            acc = jnp.full_like(x, b2)               # accumulator seeded with b2
            for j in range(HIDDEN):                  # fully unrolled, pure VPU
                h = jnp.maximum(x * params_ref[0, j] + params_ref[1, j], 0.0)
                acc = acc + h if j < n_pos else acc - h
            o_ref[pl.ds(r0, CHUNK_ROWS), :] = acc.astype(o_ref.dtype)
            return carry

        lax.fori_loop(0, n_chunks, chunk_body, 0)

    return kernel


def pack_params(w1, b1, w2, b2):
    """Fold layer-2 weights into layer-1 coefficients and sign-partition units.

    Must be called with concrete weights (the split point n_pos is a static
    Python loop bound baked into the kernel)."""
    w1 = np.asarray(w1, np.float32).reshape(HIDDEN)
    b1 = np.asarray(b1, np.float32).reshape(HIDDEN)
    w2 = np.asarray(w2, np.float32).reshape(HIDDEN)
    b2 = np.float32(np.asarray(b2).reshape(-1)[0])
    order = np.argsort(w2 < 0, kind="stable")        # units with w2 >= 0 first
    n_pos = int(np.sum(w2 >= 0))
    s = np.abs(w2[order])
    params = np.zeros((3, HIDDEN), np.float32)
    params[0] = s * w1[order]
    params[1] = s * b1[order]
    params[2, 0] = b2
    return jnp.asarray(params), n_pos


def mlp_forward(x, w1, b1, w2, b2):
    """x: [B, 1]; w1: [64, 1]; b1: [64]; w2: [1, 64]; b2: [1] (PyTorch layouts)."""
    B = x.shape[0]
    out_dtype = x.dtype
    params, n_pos = pack_params(w1, b1, w2, b2)

    # Lane-dense layout: flatten batch into (rows, 128) and round up to whole
    # register-blocked chunks.  The op is pointwise in x, so padding is safe.
    rows = max(1, -(-B // LANES))
    rows_c = _round_up(rows, CHUNK_ROWS)
    if rows_c <= CHUNK_ROWS:
        tile_r = rows_c
    else:
        # Aim for >= 2 grid steps (uses both TensorCores on v7x), cap the block.
        tile_r = min(MAX_TILE_ROWS, _round_up(-(-rows_c // 2), CHUNK_ROWS))
    rows_p = _round_up(rows_c, tile_r)
    padded = rows_p * LANES

    flat = x.reshape(-1).astype(jnp.float32)
    if padded != B:
        flat = jnp.pad(flat, (0, padded - B))        # slow path only when ragged
    x2d = flat.reshape(rows_p, LANES)

    out2d = pl.pallas_call(
        _make_kernel(n_pos),
        out_shape=jax.ShapeDtypeStruct((rows_p, LANES), jnp.float32),
        grid=(rows_p // tile_r,),
        in_specs=[
            pl.BlockSpec(memory_space=pltpu.MemorySpace.SMEM),   # packed params
            pl.BlockSpec((tile_r, LANES), lambda i: (i, 0)),     # x slab tile
        ],
        out_specs=pl.BlockSpec((tile_r, LANES), lambda i: (i, 0)),
        compiler_params=pltpu.CompilerParams(
            dimension_semantics=("parallel",)),
    )(params, x2d)

    if padded == B:
        out = out2d.reshape(B, 1)                    # fast path: no slice copy
    else:
        out = out2d.reshape(-1)[:B].reshape(B, 1)
    return out.astype(out_dtype)


def init_params(key):
    # Deterministic init mirroring PyTorch nn.Linear default (uniform +/- 1/sqrt(fan_in)).
    k1, k2, k3, k4 = jax.random.split(key, 4)
    bound1 = 1.0  # fan_in = 1
    w1 = jax.random.uniform(k1, (HIDDEN, 1), jnp.float32, -bound1, bound1)  # [64, 1]
    b1 = jax.random.uniform(k2, (HIDDEN,), jnp.float32, -bound1, bound1)    # [64]
    bound2 = 1.0 / 8.0  # 1/sqrt(64)
    w2 = jax.random.uniform(k3, (1, HIDDEN), jnp.float32, -bound2, bound2)  # [1, 64]
    b2 = jax.random.uniform(k4, (1,), jnp.float32, -bound2, bound2)         # [1]
    return w1, b1, w2, b2


def mlp_ref(x, w1, b1, w2, b2):
    # Plain-JAX reference with PyTorch semantics: x @ W.T + b.
    h = jnp.maximum(x @ w1.T + b1, 0.0)
    return h @ w2.T + b2


if __name__ == "__main__":
    key = jax.random.PRNGKey(0)
    kx, kp = jax.random.split(key)
    w1, b1, w2, b2 = init_params(kp)

    # B=8: tiny (single chunk, fully padded tile); B=200: ragged pad/slice path;
    # B=16384: fast path (no pad) with a 2-step grid (exercises megacore split).
    for B in (8, 200, 16384):
        x = jax.random.normal(jax.random.fold_in(kx, B), (B, 1), dtype=jnp.float32)
        out = jax.block_until_ready(mlp_forward(x, w1, b1, w2, b2))
        ref = mlp_ref(x, w1, b1, w2, b2)
        assert out.shape == (B, 1)
        err = float(jnp.max(jnp.abs(out - ref)))
        assert jnp.allclose(out, ref, atol=1e-4, rtol=1e-4), f"B={B} max abs err {err}"

    print("KERNEL_OK")
</pallas_src>

<mosaic_0001>
module attributes {stable_mosaic.version = 11 : i64} {
  func.func @kernel(%arg0: i32, %arg1: memref<3x64xf32, #tpu.memory_space<smem>>, %arg2: memref<64x128xf32, #tpu.memory_space<vmem>>, %arg3: memref<64x128xf32, #tpu.memory_space<vmem>>) attributes {dimension_semantics = [#tpu.dimension_semantics<parallel>], iteration_bounds = array<i64: 1>, scalar_prefetch = 0 : i64, scratch_operands = 0 : i64, tpu.core_type = #tpu.core_type<tc>, window_params = [{transform_indices = @transform_0, window_bounds = array<i64: 3, 64>}, {transform_indices = @transform_1, window_bounds = array<i64: 64, 128>}, {transform_indices = @transform_2, window_bounds = array<i64: 64, 128>}]} {
    %c2 = arith.constant 2 : index
    %c0 = arith.constant 0 : index
    %0 = memref.load %arg1[%c2, %c0] : memref<3x64xf32, #tpu.memory_space<smem>>
    %c0_i32 = arith.constant 0 : i32
    %c64_i32 = arith.constant 64 : i32
    %1 = arith.muli %c0_i32, %c64_i32 : i32
    %2 = tpu.assume_multiple %1, 64 : i32
    %3 = arith.index_cast %2 : i32 to index
    %c0_0 = arith.constant 0 : index
    %4 = vector.load %arg2[%3, %c0_0] : memref<64x128xf32, #tpu.memory_space<vmem>>, vector<64x128xf32>
    %5 = vector.broadcast %0 : f32 to vector<64x128xf32>
    %c0_1 = arith.constant 0 : index
    %c0_2 = arith.constant 0 : index
    %6 = memref.load %arg1[%c0_1, %c0_2] : memref<3x64xf32, #tpu.memory_space<smem>>
    %7 = vector.broadcast %6 : f32 to vector<64x128xf32>
    %8 = arith.mulf %4, %7 : vector<64x128xf32>
    %c1 = arith.constant 1 : index
    %c0_3 = arith.constant 0 : index
    %9 = memref.load %arg1[%c1, %c0_3] : memref<3x64xf32, #tpu.memory_space<smem>>
    %10 = vector.broadcast %9 : f32 to vector<64x128xf32>
    %11 = arith.addf %8, %10 : vector<64x128xf32>
    %cst = arith.constant 0.000000e+00 : f32
    %12 = vector.broadcast %cst : f32 to vector<64x128xf32>
    %13 = arith.maximumf %11, %12 : vector<64x128xf32>
    %14 = arith.addf %5, %13 : vector<64x128xf32>
    %c0_4 = arith.constant 0 : index
    %c1_5 = arith.constant 1 : index
    %15 = memref.load %arg1[%c0_4, %c1_5] : memref<3x64xf32, #tpu.memory_space<smem>>
    %16 = vector.broadcast %15 : f32 to vector<64x128xf32>
    %17 = arith.mulf %4, %16 : vector<64x128xf32>
    %c1_6 = arith.constant 1 : index
    %c1_7 = arith.constant 1 : index
    %18 = memref.load %arg1[%c1_6, %c1_7] : memref<3x64xf32, #tpu.memory_space<smem>>
    %19 = vector.broadcast %18 : f32 to vector<64x128xf32>
    %20 = arith.addf %17, %19 : vector<64x128xf32>
    %cst_8 = arith.constant 0.000000e+00 : f32
    %21 = vector.broadcast %cst_8 : f32 to vector<64x128xf32>
    %22 = arith.maximumf %20, %21 : vector<64x128xf32>
    %23 = arith.addf %14, %22 : vector<64x128xf32>
    %c0_9 = arith.constant 0 : index
    %c2_10 = arith.constant 2 : index
    %24 = memref.load %arg1[%c0_9, %c2_10] : memref<3x64xf32, #tpu.memory_space<smem>>
    %25 = vector.broadcast %24 : f32 to vector<64x128xf32>
    %26 = arith.mulf %4, %25 : vector<64x128xf32>
    %c1_11 = arith.constant 1 : index
    %c2_12 = arith.constant 2 : index
    %27 = memref.load %arg1[%c1_11, %c2_12] : memref<3x64xf32, #tpu.memory_space<smem>>
    %28 = vector.broadcast %27 : f32 to vector<64x128xf32>
    %29 = arith.addf %26, %28 : vector<64x128xf32>
    %cst_13 = arith.constant 0.000000e+00 : f32
    %30 = vector.broadcast %cst_13 : f32 to vector<64x128xf32>
    %31 = arith.maximumf %29, %30 : vector<64x128xf32>
    %32 = arith.addf %23, %31 : vector<64x128xf32>
    %c0_14 = arith.constant 0 : index
    %c3 = arith.constant 3 : index
    %33 = memref.load %arg1[%c0_14, %c3] : memref<3x64xf32, #tpu.memory_space<smem>>
    %34 = vector.broadcast %33 : f32 to vector<64x128xf32>
    %35 = arith.mulf %4, %34 : vector<64x128xf32>
    %c1_15 = arith.constant 1 : index
    %c3_16 = arith.constant 3 : index
    %36 = memref.load %arg1[%c1_15, %c3_16] : memref<3x64xf32, #tpu.memory_space<smem>>
    %37 = vector.broadcast %36 : f32 to vector<64x128xf32>
    %38 = arith.addf %35, %37 : vector<64x128xf32>
    %cst_17 = arith.constant 0.000000e+00 : f32
    %39 = vector.broadcast %cst_17 : f32 to vector<64x128xf32>
    %40 = arith.maximumf %38, %39 : vector<64x128xf32>
    %41 = arith.addf %32, %40 : vector<64x128xf32>
    %c0_18 = arith.constant 0 : index
    %c4 = arith.constant 4 : index
    %42 = memref.load %arg1[%c0_18, %c4] : memref<3x64xf32, #tpu.memory_space<smem>>
    %43 = vector.broadcast %42 : f32 to vector<64x128xf32>
    %44 = arith.mulf %4, %43 : vector<64x128xf32>
    %c1_19 = arith.constant 1 : index
    %c4_20 = arith.constant 4 : index
    %45 = memref.load %arg1[%c1_19, %c4_20] : memref<3x64xf32, #tpu.memory_space<smem>>
    %46 = vector.broadcast %45 : f32 to vector<64x128xf32>
    %47 = arith.addf %44, %46 : vector<64x128xf32>
    %cst_21 = arith.constant 0.000000e+00 : f32
    %48 = vector.broadcast %cst_21 : f32 to vector<64x128xf32>
    %49 = arith.maximumf %47, %48 : vector<64x128xf32>
    %50 = arith.addf %41, %49 : vector<64x128xf32>
    %c0_22 = arith.constant 0 : index
    %c5 = arith.constant 5 : index
    %51 = memref.load %arg1[%c0_22, %c5] : memref<3x64xf32, #tpu.memory_space<smem>>
    %52 = vector.broadcast %51 : f32 to vector<64x128xf32>
    %53 = arith.mulf %4, %52 : vector<64x128xf32>
    %c1_23 = arith.constant 1 : index
    %c5_24 = arith.constant 5 : index
    %54 = memref.load %arg1[%c1_23, %c5_24] : memref<3x64xf32, #tpu.memory_space<smem>>
    %55 = vector.broadcast %54 : f32 to vector<64x128xf32>
    %56 = arith.addf %53, %55 : vector<64x128xf32>
    %cst_25 = arith.constant 0.000000e+00 : f32
    %57 = vector.broadcast %cst_25 : f32 to vector<64x128xf32>
    %58 = arith.maximumf %56, %57 : vector<64x128xf32>
    %59 = arith.addf %50, %58 : vector<64x128xf32>
    %c0_26 = arith.constant 0 : index
    %c6 = arith.constant 6 : index
    %60 = memref.load %arg1[%c0_26, %c6] : memref<3x64xf32, #tpu.memory_space<smem>>
    %61 = vector.broadcast %60 : f32 to vector<64x128xf32>
    %62 = arith.mulf %4, %61 : vector<64x128xf32>
    %c1_27 = arith.constant 1 : index
    %c6_28 = arith.constant 6 : index
    %63 = memref.load %arg1[%c1_27, %c6_28] : memref<3x64xf32, #tpu.memory_space<smem>>
    %64 = vector.broadcast %63 : f32 to vector<64x128xf32>
    %65 = arith.addf %62, %64 : vector<64x128xf32>
    %cst_29 = arith.constant 0.000000e+00 : f32
    %66 = vector.broadcast %cst_29 : f32 to vector<64x128xf32>
    %67 = arith.maximumf %65, %66 : vector<64x128xf32>
    %68 = arith.addf %59, %67 : vector<64x128xf32>
    %c0_30 = arith.constant 0 : index
    %c7 = arith.constant 7 : index
    %69 = memref.load %arg1[%c0_30, %c7] : memref<3x64xf32, #tpu.memory_space<smem>>
    %70 = vector.broadcast %69 : f32 to vector<64x128xf32>
    %71 = arith.mulf %4, %70 : vector<64x128xf32>
    %c1_31 = arith.constant 1 : index
    %c7_32 = arith.constant 7 : index
    %72 = memref.load %arg1[%c1_31, %c7_32] : memref<3x64xf32, #tpu.memory_space<smem>>
    %73 = vector.broadcast %72 : f32 to vector<64x128xf32>
    %74 = arith.addf %71, %73 : vector<64x128xf32>
    %cst_33 = arith.constant 0.000000e+00 : f32
    %75 = vector.broadcast %cst_33 : f32 to vector<64x128xf32>
    %76 = arith.maximumf %74, %75 : vector<64x128xf32>
    %77 = arith.addf %68, %76 : vector<64x128xf32>
    %c0_34 = arith.constant 0 : index
    %c8 = arith.constant 8 : index
    %78 = memref.load %arg1[%c0_34, %c8] : memref<3x64xf32, #tpu.memory_space<smem>>
    %79 = vector.broadcast %78 : f32 to vector<64x128xf32>
    %80 = arith.mulf %4, %79 : vector<64x128xf32>
    %c1_35 = arith.constant 1 : index
    %c8_36 = arith.constant 8 : index
    %81 = memref.load %arg1[%c1_35, %c8_36] : memref<3x64xf32, #tpu.memory_space<smem>>
    %82 = vector.broadcast %81 : f32 to vector<64x128xf32>
    %83 = arith.addf %80, %82 : vector<64x128xf32>
    %cst_37 = arith.constant 0.000000e+00 : f32
    %84 = vector.broadcast %cst_37 : f32 to vector<64x128xf32>
    %85 = arith.maximumf %83, %84 : vector<64x128xf32>
    %86 = arith.addf %77, %85 : vector<64x128xf32>
    %c0_38 = arith.constant 0 : index
    %c9 = arith.constant 9 : index
    %87 = memref.load %arg1[%c0_38, %c9] : memref<3x64xf32, #tpu.memory_space<smem>>
    %88 = vector.broadcast %87 : f32 to vector<64x128xf32>
    %89 = arith.mulf %4, %88 : vector<64x128xf32>
    %c1_39 = arith.constant 1 : index
    %c9_40 = arith.constant 9 : index
    %90 = memref.load %arg1[%c1_39, %c9_40] : memref<3x64xf32, #tpu.memory_space<smem>>
    %91 = vector.broadcast %90 : f32 to vector<64x128xf32>
    %92 = arith.addf %89, %91 : vector<64x128xf32>
    %cst_41 = arith.constant 0.000000e+00 : f32
    %93 = vector.broadcast %cst_41 : f32 to vector<64x128xf32>
    %94 = arith.maximumf %92, %93 : vector<64x128xf32>
    %95 = arith.addf %86, %94 : vector<64x128xf32>
    %c0_42 = arith.constant 0 : index
    %c10 = arith.constant 10 : index
    %96 = memref.load %arg1[%c0_42, %c10] : memref<3x64xf32, #tpu.memory_space<smem>>
    %97 = vector.broadcast %96 : f32 to vector<64x128xf32>
    %98 = arith.mulf %4, %97 : vector<64x128xf32>
    %c1_43 = arith.constant 1 : index
    %c10_44 = arith.constant 10 : index
    %99 = memref.load %arg1[%c1_43, %c10_44] : memref<3x64xf32, #tpu.memory_space<smem>>
    %100 = vector.broadcast %99 : f32 to vector<64x128xf32>
    %101 = arith.addf %98, %100 : vector<64x128xf32>
    %cst_45 = arith.constant 0.000000e+00 : f32
    %102 = vector.broadcast %cst_45 : f32 to vector<64x128xf32>
    %103 = arith.maximumf %101, %102 : vector<64x128xf32>
    %104 = arith.addf %95, %103 : vector<64x128xf32>
    %c0_46 = arith.constant 0 : index
    %c11 = arith.constant 11 : index
    %105 = memref.load %arg1[%c0_46, %c11] : memref<3x64xf32, #tpu.memory_space<smem>>
    %106 = vector.broadcast %105 : f32 to vector<64x128xf32>
    %107 = arith.mulf %4, %106 : vector<64x128xf32>
    %c1_47 = arith.constant 1 : index
    %c11_48 = arith.constant 11 : index
    %108 = memref.load %arg1[%c1_47, %c11_48] : memref<3x64xf32, #tpu.memory_space<smem>>
    %109 = vector.broadcast %108 : f32 to vector<64x128xf32>
    %110 = arith.addf %107, %109 : vector<64x128xf32>
    %cst_49 = arith.constant 0.000000e+00 : f32
    %111 = vector.broadcast %cst_49 : f32 to vector<64x128xf32>
    %112 = arith.maximumf %110, %111 : vector<64x128xf32>
    %113 = arith.addf %104, %112 : vector<64x128xf32>
    %c0_50 = arith.constant 0 : index
    %c12 = arith.constant 12 : index
    %114 = memref.load %arg1[%c0_50, %c12] : memref<3x64xf32, #tpu.memory_space<smem>>
    %115 = vector.broadcast %114 : f32 to vector<64x128xf32>
    %116 = arith.mulf %4, %115 : vector<64x128xf32>
    %c1_51 = arith.constant 1 : index
    %c12_52 = arith.constant 12 : index
    %117 = memref.load %arg1[%c1_51, %c12_52] : memref<3x64xf32, #tpu.memory_space<smem>>
    %118 = vector.broadcast %117 : f32 to vector<64x128xf32>
    %119 = arith.addf %116, %118 : vector<64x128xf32>
    %cst_53 = arith.constant 0.000000e+00 : f32
    %120 = vector.broadcast %cst_53 : f32 to vector<64x128xf32>
    %121 = arith.maximumf %119, %120 : vector<64x128xf32>
    %122 = arith.addf %113, %121 : vector<64x128xf32>
    %c0_54 = arith.constant 0 : index
    %c13 = arith.constant 13 : index
    %123 = memref.load %arg1[%c0_54, %c13] : memref<3x64xf32, #tpu.memory_space<smem>>
    %124 = vector.broadcast %123 : f32 to vector<64x128xf32>
    %125 = arith.mulf %4, %124 : vector<64x128xf32>
    %c1_55 = arith.constant 1 : index
    %c13_56 = arith.constant 13 : index
    %126 = memref.load %arg1[%c1_55, %c13_56] : memref<3x64xf32, #tpu.memory_space<smem>>
    %127 = vector.broadcast %126 : f32 to vector<64x128xf32>
    %128 = arith.addf %125, %127 : vector<64x128xf32>
    %cst_57 = arith.constant 0.000000e+00 : f32
    %129 = vector.broadcast %cst_57 : f32 to vector<64x128xf32>
    %130 = arith.maximumf %128, %129 : vector<64x128xf32>
    %131 = arith.addf %122, %130 : vector<64x128xf32>
    %c0_58 = arith.constant 0 : index
    %c14 = arith.constant 14 : index
    %132 = memref.load %arg1[%c0_58, %c14] : memref<3x64xf32, #tpu.memory_space<smem>>
    %133 = vector.broadcast %132 : f32 to vector<64x128xf32>
    %134 = arith.mulf %4, %133 : vector<64x128xf32>
    %c1_59 = arith.constant 1 : index
    %c14_60 = arith.constant 14 : index
    %135 = memref.load %arg1[%c1_59, %c14_60] : memref<3x64xf32, #tpu.memory_space<smem>>
    %136 = vector.broadcast %135 : f32 to vector<64x128xf32>
    %137 = arith.addf %134, %136 : vector<64x128xf32>
    %cst_61 = arith.constant 0.000000e+00 : f32
    %138 = vector.broadcast %cst_61 : f32 to vector<64x128xf32>
    %139 = arith.maximumf %137, %138 : vector<64x128xf32>
    %140 = arith.addf %131, %139 : vector<64x128xf32>
    %c0_62 = arith.constant 0 : index
    %c15 = arith.constant 15 : index
    %141 = memref.load %arg1[%c0_62, %c15] : memref<3x64xf32, #tpu.memory_space<smem>>
    %142 = vector.broadcast %141 : f32 to vector<64x128xf32>
    %143 = arith.mulf %4, %142 : vector<64x128xf32>
    %c1_63 = arith.constant 1 : index
    %c15_64 = arith.constant 15 : index
    %144 = memref.load %arg1[%c1_63, %c15_64] : memref<3x64xf32, #tpu.memory_space<smem>>
    %145 = vector.broadcast %144 : f32 to vector<64x128xf32>
    %146 = arith.addf %143, %145 : vector<64x128xf32>
    %cst_65 = arith.constant 0.000000e+00 : f32
    %147 = vector.broadcast %cst_65 : f32 to vector<64x128xf32>
    %148 = arith.maximumf %146, %147 : vector<64x128xf32>
    %149 = arith.addf %140, %148 : vector<64x128xf32>
    %c0_66 = arith.constant 0 : index
    %c16 = arith.constant 16 : index
    %150 = memref.load %arg1[%c0_66, %c16] : memref<3x64xf32, #tpu.memory_space<smem>>
    %151 = vector.broadcast %150 : f32 to vector<64x128xf32>
    %152 = arith.mulf %4, %151 : vector<64x128xf32>
    %c1_67 = arith.constant 1 : index
    %c16_68 = arith.constant 16 : index
    %153 = memref.load %arg1[%c1_67, %c16_68] : memref<3x64xf32, #tpu.memory_space<smem>>
    %154 = vector.broadcast %153 : f32 to vector<64x128xf32>
    %155 = arith.addf %152, %154 : vector<64x128xf32>
    %cst_69 = arith.constant 0.000000e+00 : f32
    %156 = vector.broadcast %cst_69 : f32 to vector<64x128xf32>
    %157 = arith.maximumf %155, %156 : vector<64x128xf32>
    %158 = arith.addf %149, %157 : vector<64x128xf32>
    %c0_70 = arith.constant 0 : index
    %c17 = arith.constant 17 : index
    %159 = memref.load %arg1[%c0_70, %c17] : memref<3x64xf32, #tpu.memory_space<smem>>
    %160 = vector.broadcast %159 : f32 to vector<64x128xf32>
    %161 = arith.mulf %4, %160 : vector<64x128xf32>
    %c1_71 = arith.constant 1 : index
    %c17_72 = arith.constant 17 : index
    %162 = memref.load %arg1[%c1_71, %c17_72] : memref<3x64xf32, #tpu.memory_space<smem>>
    %163 = vector.broadcast %162 : f32 to vector<64x128xf32>
    %164 = arith.addf %161, %163 : vector<64x128xf32>
    %cst_73 = arith.constant 0.000000e+00 : f32
    %165 = vector.broadcast %cst_73 : f32 to vector<64x128xf32>
    %166 = arith.maximumf %164, %165 : vector<64x128xf32>
    %167 = arith.addf %158, %166 : vector<64x128xf32>
    %c0_74 = arith.constant 0 : index
    %c18 = arith.constant 18 : index
    %168 = memref.load %arg1[%c0_74, %c18] : memref<3x64xf32, #tpu.memory_space<smem>>
    %169 = vector.broadcast %168 : f32 to vector<64x128xf32>
    %170 = arith.mulf %4, %169 : vector<64x128xf32>
    %c1_75 = arith.constant 1 : index
    %c18_76 = arith.constant 18 : index
    %171 = memref.load %arg1[%c1_75, %c18_76] : memref<3x64xf32, #tpu.memory_space<smem>>
    %172 = vector.broadcast %171 : f32 to vector<64x128xf32>
    %173 = arith.addf %170, %172 : vector<64x128xf32>
    %cst_77 = arith.constant 0.000000e+00 : f32
    %174 = vector.broadcast %cst_77 : f32 to vector<64x128xf32>
    %175 = arith.maximumf %173, %174 : vector<64x128xf32>
    %176 = arith.addf %167, %175 : vector<64x128xf32>
    %c0_78 = arith.constant 0 : index
    %c19 = arith.constant 19 : index
    %177 = memref.load %arg1[%c0_78, %c19] : memref<3x64xf32, #tpu.memory_space<smem>>
    %178 = vector.broadcast %177 : f32 to vector<64x128xf32>
    %179 = arith.mulf %4, %178 : vector<64x128xf32>
    %c1_79 = arith.constant 1 : index
    %c19_80 = arith.constant 19 : index
    %180 = memref.load %arg1[%c1_79, %c19_80] : memref<3x64xf32, #tpu.memory_space<smem>>
    %181 = vector.broadcast %180 : f32 to vector<64x128xf32>
    %182 = arith.addf %179, %181 : vector<64x128xf32>
    %cst_81 = arith.constant 0.000000e+00 : f32
    %183 = vector.broadcast %cst_81 : f32 to vector<64x128xf32>
    %184 = arith.maximumf %182, %183 : vector<64x128xf32>
    %185 = arith.addf %176, %184 : vector<64x128xf32>
    %c0_82 = arith.constant 0 : index
    %c20 = arith.constant 20 : index
    %186 = memref.load %arg1[%c0_82, %c20] : memref<3x64xf32, #tpu.memory_space<smem>>
    %187 = vector.broadcast %186 : f32 to vector<64x128xf32>
    %188 = arith.mulf %4, %187 : vector<64x128xf32>
    %c1_83 = arith.constant 1 : index
    %c20_84 = arith.constant 20 : index
    %189 = memref.load %arg1[%c1_83, %c20_84] : memref<3x64xf32, #tpu.memory_space<smem>>
    %190 = vector.broadcast %189 : f32 to vector<64x128xf32>
    %191 = arith.addf %188, %190 : vector<64x128xf32>
    %cst_85 = arith.constant 0.000000e+00 : f32
    %192 = vector.broadcast %cst_85 : f32 to vector<64x128xf32>
    %193 = arith.maximumf %191, %192 : vector<64x128xf32>
    %194 = arith.addf %185, %193 : vector<64x128xf32>
    %c0_86 = arith.constant 0 : index
    %c21 = arith.constant 21 : index
    %195 = memref.load %arg1[%c0_86, %c21] : memref<3x64xf32, #tpu.memory_space<smem>>
    %196 = vector.broadcast %195 : f32 to vector<64x128xf32>
    %197 = arith.mulf %4, %196 : vector<64x128xf32>
    %c1_87 = arith.constant 1 : index
    %c21_88 = arith.constant 21 : index
    %198 = memref.load %arg1[%c1_87, %c21_88] : memref<3x64xf32, #tpu.memory_space<smem>>
    %199 = vector.broadcast %198 : f32 to vector<64x128xf32>
    %200 = arith.addf %197, %199 : vector<64x128xf32>
    %cst_89 = arith.constant 0.000000e+00 : f32
    %201 = vector.broadcast %cst_89 : f32 to vector<64x128xf32>
    %202 = arith.maximumf %200, %201 : vector<64x128xf32>
    %203 = arith.addf %194, %202 : vector<64x128xf32>
    %c0_90 = arith.constant 0 : index
    %c22 = arith.constant 22 : index
    %204 = memref.load %arg1[%c0_90, %c22] : memref<3x64xf32, #tpu.memory_space<smem>>
    %205 = vector.broadcast %204 : f32 to vector<64x128xf32>
    %206 = arith.mulf %4, %205 : vector<64x128xf32>
    %c1_91 = arith.constant 1 : index
    %c22_92 = arith.constant 22 : index
    %207 = memref.load %arg1[%c1_91, %c22_92] : memref<3x64xf32, #tpu.memory_space<smem>>
    %208 = vector.broadcast %207 : f32 to vector<64x128xf32>
    %209 = arith.addf %206, %208 : vector<64x128xf32>
    %cst_93 = arith.constant 0.000000e+00 : f32
    %210 = vector.broadcast %cst_93 : f32 to vector<64x128xf32>
    %211 = arith.maximumf %209, %210 : vector<64x128xf32>
    %212 = arith.addf %203, %211 : vector<64x128xf32>
    %c0_94 = arith.constant 0 : index
    %c23 = arith.constant 23 : index
    %213 = memref.load %arg1[%c0_94, %c23] : memref<3x64xf32, #tpu.memory_space<smem>>
    %214 = vector.broadcast %213 : f32 to vector<64x128xf32>
    %215 = arith.mulf %4, %214 : vector<64x128xf32>
    %c1_95 = arith.constant 1 : index
    %c23_96 = arith.constant 23 : index
    %216 = memref.load %arg1[%c1_95, %c23_96] : memref<3x64xf32, #tpu.memory_space<smem>>
    %217 = vector.broadcast %216 : f32 to vector<64x128xf32>
    %218 = arith.addf %215, %217 : vector<64x128xf32>
    %cst_97 = arith.constant 0.000000e+00 : f32
    %219 = vector.broadcast %cst_97 : f32 to vector<64x128xf32>
    %220 = arith.maximumf %218, %219 : vector<64x128xf32>
    %221 = arith.addf %212, %220 : vector<64x128xf32>
    %c0_98 = arith.constant 0 : index
    %c24 = arith.constant 24 : index
    %222 = memref.load %arg1[%c0_98, %c24] : memref<3x64xf32, #tpu.memory_space<smem>>
    %223 = vector.broadcast %222 : f32 to vector<64x128xf32>
    %224 = arith.mulf %4, %223 : vector<64x128xf32>
    %c1_99 = arith.constant 1 : index
    %c24_100 = arith.constant 24 : index
    %225 = memref.load %arg1[%c1_99, %c24_100] : memref<3x64xf32, #tpu.memory_space<smem>>
    %226 = vector.broadcast %225 : f32 to vector<64x128xf32>
    %227 = arith.addf %224, %226 : vector<64x128xf32>
    %cst_101 = arith.constant 0.000000e+00 : f32
    %228 = vector.broadcast %cst_101 : f32 to vector<64x128xf32>
    %229 = arith.maximumf %227, %228 : vector<64x128xf32>
    %230 = arith.addf %221, %229 : vector<64x128xf32>
    %c0_102 = arith.constant 0 : index
    %c25 = arith.constant 25 : index
    %231 = memref.load %arg1[%c0_102, %c25] : memref<3x64xf32, #tpu.memory_space<smem>>
    %232 = vector.broadcast %231 : f32 to vector<64x128xf32>
    %233 = arith.mulf %4, %232 : vector<64x128xf32>
    %c1_103 = arith.constant 1 : index
    %c25_104 = arith.constant 25 : index
    %234 = memref.load %arg1[%c1_103, %c25_104] : memref<3x64xf32, #tpu.memory_space<smem>>
    %235 = vector.broadcast %234 : f32 to vector<64x128xf32>
    %236 = arith.addf %233, %235 : vector<64x128xf32>
    %cst_105 = arith.constant 0.000000e+00 : f32
    %237 = vector.broadcast %cst_105 : f32 to vector<64x128xf32>
    %238 = arith.maximumf %236, %237 : vector<64x128xf32>
    %239 = arith.addf %230, %238 : vector<64x128xf32>
    %c0_106 = arith.constant 0 : index
    %c26 = arith.constant 26 : index
    %240 = memref.load %arg1[%c0_106, %c26] : memref<3x64xf32, #tpu.memory_space<smem>>
    %241 = vector.broadcast %240 : f32 to vector<64x128xf32>
    %242 = arith.mulf %4, %241 : vector<64x128xf32>
    %c1_107 = arith.constant 1 : index
    %c26_108 = arith.constant 26 : index
    %243 = memref.load %arg1[%c1_107, %c26_108] : memref<3x64xf32, #tpu.memory_space<smem>>
    %244 = vector.broadcast %243 : f32 to vector<64x128xf32>
    %245 = arith.addf %242, %244 : vector<64x128xf32>
    %cst_109 = arith.constant 0.000000e+00 : f32
    %246 = vector.broadcast %cst_109 : f32 to vector<64x128xf32>
    %247 = arith.maximumf %245, %246 : vector<64x128xf32>
    %248 = arith.addf %239, %247 : vector<64x128xf32>
    %c0_110 = arith.constant 0 : index
    %c27 = arith.constant 27 : index
    %249 = memref.load %arg1[%c0_110, %c27] : memref<3x64xf32, #tpu.memory_space<smem>>
    %250 = vector.broadcast %249 : f32 to vector<64x128xf32>
    %251 = arith.mulf %4, %250 : vector<64x128xf32>
    %c1_111 = arith.constant 1 : index
    %c27_112 = arith.constant 27 : index
    %252 = memref.load %arg1[%c1_111, %c27_112] : memref<3x64xf32, #tpu.memory_space<smem>>
    %253 = vector.broadcast %252 : f32 to vector<64x128xf32>
    %254 = arith.addf %251, %253 : vector<64x128xf32>
    %cst_113 = arith.constant 0.000000e+00 : f32
    %255 = vector.broadcast %cst_113 : f32 to vector<64x128xf32>
    %256 = arith.maximumf %254, %255 : vector<64x128xf32>
    %257 = arith.addf %248, %256 : vector<64x128xf32>
    %c0_114 = arith.constant 0 : index
    %c28 = arith.constant 28 : index
    %258 = memref.load %arg1[%c0_114, %c28] : memref<3x64xf32, #tpu.memory_space<smem>>
    %259 = vector.broadcast %258 : f32 to vector<64x128xf32>
    %260 = arith.mulf %4, %259 : vector<64x128xf32>
    %c1_115 = arith.constant 1 : index
    %c28_116 = arith.constant 28 : index
    %261 = memref.load %arg1[%c1_115, %c28_116] : memref<3x64xf32, #tpu.memory_space<smem>>
    %262 = vector.broadcast %261 : f32 to vector<64x128xf32>
    %263 = arith.addf %260, %262 : vector<64x128xf32>
    %cst_117 = arith.constant 0.000000e+00 : f32
    %264 = vector.broadcast %cst_117 : f32 to vector<64x128xf32>
    %265 = arith.maximumf %263, %264 : vector<64x128xf32>
    %266 = arith.addf %257, %265 : vector<64x128xf32>
    %c0_118 = arith.constant 0 : index
    %c29 = arith.constant 29 : index
    %267 = memref.load %arg1[%c0_118, %c29] : memref<3x64xf32, #tpu.memory_space<smem>>
    %268 = vector.broadcast %267 : f32 to vector<64x128xf32>
    %269 = arith.mulf %4, %268 : vector<64x128xf32>
    %c1_119 = arith.constant 1 : index
    %c29_120 = arith.constant 29 : index
    %270 = memref.load %arg1[%c1_119, %c29_120] : memref<3x64xf32, #tpu.memory_space<smem>>
    %271 = vector.broadcast %270 : f32 to vector<64x128xf32>
    %272 = arith.addf %269, %271 : vector<64x128xf32>
    %cst_121 = arith.constant 0.000000e+00 : f32
    %273 = vector.broadcast %cst_121 : f32 to vector<64x128xf32>
    %274 = arith.maximumf %272, %273 : vector<64x128xf32>
    %275 = arith.subf %266, %274 : vector<64x128xf32>
    %c0_122 = arith.constant 0 : index
    %c30 = arith.constant 30 : index
    %276 = memref.load %arg1[%c0_122, %c30] : memref<3x64xf32, #tpu.memory_space<smem>>
    %277 = vector.broadcast %276 : f32 to vector<64x128xf32>
    %278 = arith.mulf %4, %277 : vector<64x128xf32>
    %c1_123 = arith.constant 1 : index
    %c30_124 = arith.constant 30 : index
    %279 = memref.load %arg1[%c1_123, %c30_124] : memref<3x64xf32, #tpu.memory_space<smem>>
    %280 = vector.broadcast %279 : f32 to vector<64x128xf32>
    %281 = arith.addf %278, %280 : vector<64x128xf32>
    %cst_125 = arith.constant 0.000000e+00 : f32
    %282 = vector.broadcast %cst_125 : f32 to vector<64x128xf32>
    %283 = arith.maximumf %281, %282 : vector<64x128xf32>
    %284 = arith.subf %275, %283 : vector<64x128xf32>
    %c0_126 = arith.constant 0 : index
    %c31 = arith.constant 31 : index
    %285 = memref.load %arg1[%c0_126, %c31] : memref<3x64xf32, #tpu.memory_space<smem>>
    %286 = vector.broadcast %285 : f32 to vector<64x128xf32>
    %287 = arith.mulf %4, %286 : vector<64x128xf32>
    %c1_127 = arith.constant 1 : index
    %c31_128 = arith.constant 31 : index
    %288 = memref.load %arg1[%c1_127, %c31_128] : memref<3x64xf32, #tpu.memory_space<smem>>
    %289 = vector.broadcast %288 : f32 to vector<64x128xf32>
    %290 = arith.addf %287, %289 : vector<64x128xf32>
    %cst_129 = arith.constant 0.000000e+00 : f32
    %291 = vector.broadcast %cst_129 : f32 to vector<64x128xf32>
    %292 = arith.maximumf %290, %291 : vector<64x128xf32>
    %293 = arith.subf %284, %292 : vector<64x128xf32>
    %c0_130 = arith.constant 0 : index
    %c32 = arith.constant 32 : index
    %294 = memref.load %arg1[%c0_130, %c32] : memref<3x64xf32, #tpu.memory_space<smem>>
    %295 = vector.broadcast %294 : f32 to vector<64x128xf32>
    %296 = arith.mulf %4, %295 : vector<64x128xf32>
    %c1_131 = arith.constant 1 : index
    %c32_132 = arith.constant 32 : index
    %297 = memref.load %arg1[%c1_131, %c32_132] : memref<3x64xf32, #tpu.memory_space<smem>>
    %298 = vector.broadcast %297 : f32 to vector<64x128xf32>
    %299 = arith.addf %296, %298 : vector<64x128xf32>
    %cst_133 = arith.constant 0.000000e+00 : f32
    %300 = vector.broadcast %cst_133 : f32 to vector<64x128xf32>
    %301 = arith.maximumf %299, %300 : vector<64x128xf32>
    %302 = arith.subf %293, %301 : vector<64x128xf32>
    %c0_134 = arith.constant 0 : index
    %c33 = arith.constant 33 : index
    %303 = memref.load %arg1[%c0_134, %c33] : memref<3x64xf32, #tpu.memory_space<smem>>
    %304 = vector.broadcast %303 : f32 to vector<64x128xf32>
    %305 = arith.mulf %4, %304 : vector<64x128xf32>
    %c1_135 = arith.constant 1 : index
    %c33_136 = arith.constant 33 : index
    %306 = memref.load %arg1[%c1_135, %c33_136] : memref<3x64xf32, #tpu.memory_space<smem>>
    %307 = vector.broadcast %306 : f32 to vector<64x128xf32>
    %308 = arith.addf %305, %307 : vector<64x128xf32>
    %cst_137 = arith.constant 0.000000e+00 : f32
    %309 = vector.broadcast %cst_137 : f32 to vector<64x128xf32>
    %310 = arith.maximumf %308, %309 : vector<64x128xf32>
    %311 = arith.subf %302, %310 : vector<64x128xf32>
    %c0_138 = arith.constant 0 : index
    %c34 = arith.constant 34 : index
    %312 = memref.load %arg1[%c0_138, %c34] : memref<3x64xf32, #tpu.memory_space<smem>>
    %313 = vector.broadcast %312 : f32 to vector<64x128xf32>
    %314 = arith.mulf %4, %313 : vector<64x128xf32>
    %c1_139 = arith.constant 1 : index
    %c34_140 = arith.constant 34 : index
    %315 = memref.load %arg1[%c1_139, %c34_140] : memref<3x64xf32, #tpu.memory_space<smem>>
    %316 = vector.broadcast %315 : f32 to vector<64x128xf32>
    %317 = arith.addf %314, %316 : vector<64x128xf32>
    %cst_141 = arith.constant 0.000000e+00 : f32
    %318 = vector.broadcast %cst_141 : f32 to vector<64x128xf32>
    %319 = arith.maximumf %317, %318 : vector<64x128xf32>
    %320 = arith.subf %311, %319 : vector<64x128xf32>
    %c0_142 = arith.constant 0 : index
    %c35 = arith.constant 35 : index
    %321 = memref.load %arg1[%c0_142, %c35] : memref<3x64xf32, #tpu.memory_space<smem>>
    %322 = vector.broadcast %321 : f32 to vector<64x128xf32>
    %323 = arith.mulf %4, %322 : vector<64x128xf32>
    %c1_143 = arith.constant 1 : index
    %c35_144 = arith.constant 35 : index
    %324 = memref.load %arg1[%c1_143, %c35_144] : memref<3x64xf32, #tpu.memory_space<smem>>
    %325 = vector.broadcast %324 : f32 to vector<64x128xf32>
    %326 = arith.addf %323, %325 : vector<64x128xf32>
    %cst_145 = arith.constant 0.000000e+00 : f32
    %327 = vector.broadcast %cst_145 : f32 to vector<64x128xf32>
    %328 = arith.maximumf %326, %327 : vector<64x128xf32>
    %329 = arith.subf %320, %328 : vector<64x128xf32>
    %c0_146 = arith.constant 0 : index
    %c36 = arith.constant 36 : index
    %330 = memref.load %arg1[%c0_146, %c36] : memref<3x64xf32, #tpu.memory_space<smem>>
    %331 = vector.broadcast %330 : f32 to vector<64x128xf32>
    %332 = arith.mulf %4, %331 : vector<64x128xf32>
    %c1_147 = arith.constant 1 : index
    %c36_148 = arith.constant 36 : index
    %333 = memref.load %arg1[%c1_147, %c36_148] : memref<3x64xf32, #tpu.memory_space<smem>>
    %334 = vector.broadcast %333 : f32 to vector<64x128xf32>
    %335 = arith.addf %332, %334 : vector<64x128xf32>
    %cst_149 = arith.constant 0.000000e+00 : f32
    %336 = vector.broadcast %cst_149 : f32 to vector<64x128xf32>
    %337 = arith.maximumf %335, %336 : vector<64x128xf32>
    %338 = arith.subf %329, %337 : vector<64x128xf32>
    %c0_150 = arith.constant 0 : index
    %c37 = arith.constant 37 : index
    %339 = memref.load %arg1[%c0_150, %c37] : memref<3x64xf32, #tpu.memory_space<smem>>
    %340 = vector.broadcast %339 : f32 to vector<64x128xf32>
    %341 = arith.mulf %4, %340 : vector<64x128xf32>
    %c1_151 = arith.constant 1 : index
    %c37_152 = arith.constant 37 : index
    %342 = memref.load %arg1[%c1_151, %c37_152] : memref<3x64xf32, #tpu.memory_space<smem>>
    %343 = vector.broadcast %342 : f32 to vector<64x128xf32>
    %344 = arith.addf %341, %343 : vector<64x128xf32>
    %cst_153 = arith.constant 0.000000e+00 : f32
    %345 = vector.broadcast %cst_153 : f32 to vector<64x128xf32>
    %346 = arith.maximumf %344, %345 : vector<64x128xf32>
    %347 = arith.subf %338, %346 : vector<64x128xf32>
    %c0_154 = arith.constant 0 : index
    %c38 = arith.constant 38 : index
    %348 = memref.load %arg1[%c0_154, %c38] : memref<3x64xf32, #tpu.memory_space<smem>>
    %349 = vector.broadcast %348 : f32 to vector<64x128xf32>
    %350 = arith.mulf %4, %349 : vector<64x128xf32>
    %c1_155 = arith.constant 1 : index
    %c38_156 = arith.constant 38 : index
    %351 = memref.load %arg1[%c1_155, %c38_156] : memref<3x64xf32, #tpu.memory_space<smem>>
    %352 = vector.broadcast %351 : f32 to vector<64x128xf32>
    %353 = arith.addf %350, %352 : vector<64x128xf32>
    %cst_157 = arith.constant 0.000000e+00 : f32
    %354 = vector.broadcast %cst_157 : f32 to vector<64x128xf32>
    %355 = arith.maximumf %353, %354 : vector<64x128xf32>
    %356 = arith.subf %347, %355 : vector<64x128xf32>
    %c0_158 = arith.constant 0 : index
    %c39 = arith.constant 39 : index
    %357 = memref.load %arg1[%c0_158, %c39] : memref<3x64xf32, #tpu.memory_space<smem>>
    %358 = vector.broadcast %357 : f32 to vector<64x128xf32>
    %359 = arith.mulf %4, %358 : vector<64x128xf32>
    %c1_159 = arith.constant 1 : index
    %c39_160 = arith.constant 39 : index
    %360 = memref.load %arg1[%c1_159, %c39_160] : memref<3x64xf32, #tpu.memory_space<smem>>
    %361 = vector.broadcast %360 : f32 to vector<64x128xf32>
    %362 = arith.addf %359, %361 : vector<64x128xf32>
    %cst_161 = arith.constant 0.000000e+00 : f32
    %363 = vector.broadcast %cst_161 : f32 to vector<64x128xf32>
    %364 = arith.maximumf %362, %363 : vector<64x128xf32>
    %365 = arith.subf %356, %364 : vector<64x128xf32>
    %c0_162 = arith.constant 0 : index
    %c40 = arith.constant 40 : index
    %366 = memref.load %arg1[%c0_162, %c40] : memref<3x64xf32, #tpu.memory_space<smem>>
    %367 = vector.broadcast %366 : f32 to vector<64x128xf32>
    %368 = arith.mulf %4, %367 : vector<64x128xf32>
    %c1_163 = arith.constant 1 : index
    %c40_164 = arith.constant 40 : index
    %369 = memref.load %arg1[%c1_163, %c40_164] : memref<3x64xf32, #tpu.memory_space<smem>>
    %370 = vector.broadcast %369 : f32 to vector<64x128xf32>
    %371 = arith.addf %368, %370 : vector<64x128xf32>
    %cst_165 = arith.constant 0.000000e+00 : f32
    %372 = vector.broadcast %cst_165 : f32 to vector<64x128xf32>
    %373 = arith.maximumf %371, %372 : vector<64x128xf32>
    %374 = arith.subf %365, %373 : vector<64x128xf32>
    %c0_166 = arith.constant 0 : index
    %c41 = arith.constant 41 : index
    %375 = memref.load %arg1[%c0_166, %c41] : memref<3x64xf32, #tpu.memory_space<smem>>
    %376 = vector.broadcast %375 : f32 to vector<64x128xf32>
    %377 = arith.mulf %4, %376 : vector<64x128xf32>
    %c1_167 = arith.constant 1 : index
    %c41_168 = arith.constant 41 : index
    %378 = memref.load %arg1[%c1_167, %c41_168] : memref<3x64xf32, #tpu.memory_space<smem>>
    %379 = vector.broadcast %378 : f32 to vector<64x128xf32>
    %380 = arith.addf %377, %379 : vector<64x128xf32>
    %cst_169 = arith.constant 0.000000e+00 : f32
    %381 = vector.broadcast %cst_169 : f32 to vector<64x128xf32>
    %382 = arith.maximumf %380, %381 : vector<64x128xf32>
    %383 = arith.subf %374, %382 : vector<64x128xf32>
    %c0_170 = arith.constant 0 : index
    %c42 = arith.constant 42 : index
    %384 = memref.load %arg1[%c0_170, %c42] : memref<3x64xf32, #tpu.memory_space<smem>>
    %385 = vector.broadcast %384 : f32 to vector<64x128xf32>
    %386 = arith.mulf %4, %385 : vector<64x128xf32>
    %c1_171 = arith.constant 1 : index
    %c42_172 = arith.constant 42 : index
    %387 = memref.load %arg1[%c1_171, %c42_172] : memref<3x64xf32, #tpu.memory_space<smem>>
    %388 = vector.broadcast %387 : f32 to vector<64x128xf32>
    %389 = arith.addf %386, %388 : vector<64x128xf32>
    %cst_173 = arith.constant 0.000000e+00 : f32
    %390 = vector.broadcast %cst_173 : f32 to vector<64x128xf32>
    %391 = arith.maximumf %389, %390 : vector<64x128xf32>
    %392 = arith.subf %383, %391 : vector<64x128xf32>
    %c0_174 = arith.constant 0 : index
    %c43 = arith.constant 43 : index
    %393 = memref.load %arg1[%c0_174, %c43] : memref<3x64xf32, #tpu.memory_space<smem>>
    %394 = vector.broadcast %393 : f32 to vector<64x128xf32>
    %395 = arith.mulf %4, %394 : vector<64x128xf32>
    %c1_175 = arith.constant 1 : index
    %c43_176 = arith.constant 43 : index
    %396 = memref.load %arg1[%c1_175, %c43_176] : memref<3x64xf32, #tpu.memory_space<smem>>
    %397 = vector.broadcast %396 : f32 to vector<64x128xf32>
    %398 = arith.addf %395, %397 : vector<64x128xf32>
    %cst_177 = arith.constant 0.000000e+00 : f32
    %399 = vector.broadcast %cst_177 : f32 to vector<64x128xf32>
    %400 = arith.maximumf %398, %399 : vector<64x128xf32>
    %401 = arith.subf %392, %400 : vector<64x128xf32>
    %c0_178 = arith.constant 0 : index
    %c44 = arith.constant 44 : index
    %402 = memref.load %arg1[%c0_178, %c44] : memref<3x64xf32, #tpu.memory_space<smem>>
    %403 = vector.broadcast %402 : f32 to vector<64x128xf32>
    %404 = arith.mulf %4, %403 : vector<64x128xf32>
    %c1_179 = arith.constant 1 : index
    %c44_180 = arith.constant 44 : index
    %405 = memref.load %arg1[%c1_179, %c44_180] : memref<3x64xf32, #tpu.memory_space<smem>>
    %406 = vector.broadcast %405 : f32 to vector<64x128xf32>
    %407 = arith.addf %404, %406 : vector<64x128xf32>
    %cst_181 = arith.constant 0.000000e+00 : f32
    %408 = vector.broadcast %cst_181 : f32 to vector<64x128xf32>
    %409 = arith.maximumf %407, %408 : vector<64x128xf32>
    %410 = arith.subf %401, %409 : vector<64x128xf32>
    %c0_182 = arith.constant 0 : index
    %c45 = arith.constant 45 : index
    %411 = memref.load %arg1[%c0_182, %c45] : memref<3x64xf32, #tpu.memory_space<smem>>
    %412 = vector.broadcast %411 : f32 to vector<64x128xf32>
    %413 = arith.mulf %4, %412 : vector<64x128xf32>
    %c1_183 = arith.constant 1 : index
    %c45_184 = arith.constant 45 : index
    %414 = memref.load %arg1[%c1_183, %c45_184] : memref<3x64xf32, #tpu.memory_space<smem>>
    %415 = vector.broadcast %414 : f32 to vector<64x128xf32>
    %416 = arith.addf %413, %415 : vector<64x128xf32>
    %cst_185 = arith.constant 0.000000e+00 : f32
    %417 = vector.broadcast %cst_185 : f32 to vector<64x128xf32>
    %418 = arith.maximumf %416, %417 : vector<64x128xf32>
    %419 = arith.subf %410, %418 : vector<64x128xf32>
    %c0_186 = arith.constant 0 : index
    %c46 = arith.constant 46 : index
    %420 = memref.load %arg1[%c0_186, %c46] : memref<3x64xf32, #tpu.memory_space<smem>>
    %421 = vector.broadcast %420 : f32 to vector<64x128xf32>
    %422 = arith.mulf %4, %421 : vector<64x128xf32>
    %c1_187 = arith.constant 1 : index
    %c46_188 = arith.constant 46 : index
    %423 = memref.load %arg1[%c1_187, %c46_188] : memref<3x64xf32, #tpu.memory_space<smem>>
    %424 = vector.broadcast %423 : f32 to vector<64x128xf32>
    %425 = arith.addf %422, %424 : vector<64x128xf32>
    %cst_189 = arith.constant 0.000000e+00 : f32
    %426 = vector.broadcast %cst_189 : f32 to vector<64x128xf32>
    %427 = arith.maximumf %425, %426 : vector<64x128xf32>
    %428 = arith.subf %419, %427 : vector<64x128xf32>
    %c0_190 = arith.constant 0 : index
    %c47 = arith.constant 47 : index
    %429 = memref.load %arg1[%c0_190, %c47] : memref<3x64xf32, #tpu.memory_space<smem>>
    %430 = vector.broadcast %429 : f32 to vector<64x128xf32>
    %431 = arith.mulf %4, %430 : vector<64x128xf32>
    %c1_191 = arith.constant 1 : index
    %c47_192 = arith.constant 47 : index
    %432 = memref.load %arg1[%c1_191, %c47_192] : memref<3x64xf32, #tpu.memory_space<smem>>
    %433 = vector.broadcast %432 : f32 to vector<64x128xf32>
    %434 = arith.addf %431, %433 : vector<64x128xf32>
    %cst_193 = arith.constant 0.000000e+00 : f32
    %435 = vector.broadcast %cst_193 : f32 to vector<64x128xf32>
    %436 = arith.maximumf %434, %435 : vector<64x128xf32>
    %437 = arith.subf %428, %436 : vector<64x128xf32>
    %c0_194 = arith.constant 0 : index
    %c48 = arith.constant 48 : index
    %438 = memref.load %arg1[%c0_194, %c48] : memref<3x64xf32, #tpu.memory_space<smem>>
    %439 = vector.broadcast %438 : f32 to vector<64x128xf32>
    %440 = arith.mulf %4, %439 : vector<64x128xf32>
    %c1_195 = arith.constant 1 : index
    %c48_196 = arith.constant 48 : index
    %441 = memref.load %arg1[%c1_195, %c48_196] : memref<3x64xf32, #tpu.memory_space<smem>>
    %442 = vector.broadcast %441 : f32 to vector<64x128xf32>
    %443 = arith.addf %440, %442 : vector<64x128xf32>
    %cst_197 = arith.constant 0.000000e+00 : f32
    %444 = vector.broadcast %cst_197 : f32 to vector<64x128xf32>
    %445 = arith.maximumf %443, %444 : vector<64x128xf32>
    %446 = arith.subf %437, %445 : vector<64x128xf32>
    %c0_198 = arith.constant 0 : index
    %c49 = arith.constant 49 : index
    %447 = memref.load %arg1[%c0_198, %c49] : memref<3x64xf32, #tpu.memory_space<smem>>
    %448 = vector.broadcast %447 : f32 to vector<64x128xf32>
    %449 = arith.mulf %4, %448 : vector<64x128xf32>
    %c1_199 = arith.constant 1 : index
    %c49_200 = arith.constant 49 : index
    %450 = memref.load %arg1[%c1_199, %c49_200] : memref<3x64xf32, #tpu.memory_space<smem>>
    %451 = vector.broadcast %450 : f32 to vector<64x128xf32>
    %452 = arith.addf %449, %451 : vector<64x128xf32>
    %cst_201 = arith.constant 0.000000e+00 : f32
    %453 = vector.broadcast %cst_201 : f32 to vector<64x128xf32>
    %454 = arith.maximumf %452, %453 : vector<64x128xf32>
    %455 = arith.subf %446, %454 : vector<64x128xf32>
    %c0_202 = arith.constant 0 : index
    %c50 = arith.constant 50 : index
    %456 = memref.load %arg1[%c0_202, %c50] : memref<3x64xf32, #tpu.memory_space<smem>>
    %457 = vector.broadcast %456 : f32 to vector<64x128xf32>
    %458 = arith.mulf %4, %457 : vector<64x128xf32>
    %c1_203 = arith.constant 1 : index
    %c50_204 = arith.constant 50 : index
    %459 = memref.load %arg1[%c1_203, %c50_204] : memref<3x64xf32, #tpu.memory_space<smem>>
    %460 = vector.broadcast %459 : f32 to vector<64x128xf32>
    %461 = arith.addf %458, %460 : vector<64x128xf32>
    %cst_205 = arith.constant 0.000000e+00 : f32
    %462 = vector.broadcast %cst_205 : f32 to vector<64x128xf32>
    %463 = arith.maximumf %461, %462 : vector<64x128xf32>
    %464 = arith.subf %455, %463 : vector<64x128xf32>
    %c0_206 = arith.constant 0 : index
    %c51 = arith.constant 51 : index
    %465 = memref.load %arg1[%c0_206, %c51] : memref<3x64xf32, #tpu.memory_space<smem>>
    %466 = vector.broadcast %465 : f32 to vector<64x128xf32>
    %467 = arith.mulf %4, %466 : vector<64x128xf32>
    %c1_207 = arith.constant 1 : index
    %c51_208 = arith.constant 51 : index
    %468 = memref.load %arg1[%c1_207, %c51_208] : memref<3x64xf32, #tpu.memory_space<smem>>
    %469 = vector.broadcast %468 : f32 to vector<64x128xf32>
    %470 = arith.addf %467, %469 : vector<64x128xf32>
    %cst_209 = arith.constant 0.000000e+00 : f32
    %471 = vector.broadcast %cst_209 : f32 to vector<64x128xf32>
    %472 = arith.maximumf %470, %471 : vector<64x128xf32>
    %473 = arith.subf %464, %472 : vector<64x128xf32>
    %c0_210 = arith.constant 0 : index
    %c52 = arith.constant 52 : index
    %474 = memref.load %arg1[%c0_210, %c52] : memref<3x64xf32, #tpu.memory_space<smem>>
    %475 = vector.broadcast %474 : f32 to vector<64x128xf32>
    %476 = arith.mulf %4, %475 : vector<64x128xf32>
    %c1_211 = arith.constant 1 : index
    %c52_212 = arith.constant 52 : index
    %477 = memref.load %arg1[%c1_211, %c52_212] : memref<3x64xf32, #tpu.memory_space<smem>>
    %478 = vector.broadcast %477 : f32 to vector<64x128xf32>
    %479 = arith.addf %476, %478 : vector<64x128xf32>
    %cst_213 = arith.constant 0.000000e+00 : f32
    %480 = vector.broadcast %cst_213 : f32 to vector<64x128xf32>
    %481 = arith.maximumf %479, %480 : vector<64x128xf32>
    %482 = arith.subf %473, %481 : vector<64x128xf32>
    %c0_214 = arith.constant 0 : index
    %c53 = arith.constant 53 : index
    %483 = memref.load %arg1[%c0_214, %c53] : memref<3x64xf32, #tpu.memory_space<smem>>
    %484 = vector.broadcast %483 : f32 to vector<64x128xf32>
    %485 = arith.mulf %4, %484 : vector<64x128xf32>
    %c1_215 = arith.constant 1 : index
    %c53_216 = arith.constant 53 : index
    %486 = memref.load %arg1[%c1_215, %c53_216] : memref<3x64xf32, #tpu.memory_space<smem>>
    %487 = vector.broadcast %486 : f32 to vector<64x128xf32>
    %488 = arith.addf %485, %487 : vector<64x128xf32>
    %cst_217 = arith.constant 0.000000e+00 : f32
    %489 = vector.broadcast %cst_217 : f32 to vector<64x128xf32>
    %490 = arith.maximumf %488, %489 : vector<64x128xf32>
    %491 = arith.subf %482, %490 : vector<64x128xf32>
    %c0_218 = arith.constant 0 : index
    %c54 = arith.constant 54 : index
    %492 = memref.load %arg1[%c0_218, %c54] : memref<3x64xf32, #tpu.memory_space<smem>>
    %493 = vector.broadcast %492 : f32 to vector<64x128xf32>
    %494 = arith.mulf %4, %493 : vector<64x128xf32>
    %c1_219 = arith.constant 1 : index
    %c54_220 = arith.constant 54 : index
    %495 = memref.load %arg1[%c1_219, %c54_220] : memref<3x64xf32, #tpu.memory_space<smem>>
    %496 = vector.broadcast %495 : f32 to vector<64x128xf32>
    %497 = arith.addf %494, %496 : vector<64x128xf32>
    %cst_221 = arith.constant 0.000000e+00 : f32
    %498 = vector.broadcast %cst_221 : f32 to vector<64x128xf32>
    %499 = arith.maximumf %497, %498 : vector<64x128xf32>
    %500 = arith.subf %491, %499 : vector<64x128xf32>
    %c0_222 = arith.constant 0 : index
    %c55 = arith.constant 55 : index
    %501 = memref.load %arg1[%c0_222, %c55] : memref<3x64xf32, #tpu.memory_space<smem>>
    %502 = vector.broadcast %501 : f32 to vector<64x128xf32>
    %503 = arith.mulf %4, %502 : vector<64x128xf32>
    %c1_223 = arith.constant 1 : index
    %c55_224 = arith.constant 55 : index
    %504 = memref.load %arg1[%c1_223, %c55_224] : memref<3x64xf32, #tpu.memory_space<smem>>
    %505 = vector.broadcast %504 : f32 to vector<64x128xf32>
    %506 = arith.addf %503, %505 : vector<64x128xf32>
    %cst_225 = arith.constant 0.000000e+00 : f32
    %507 = vector.broadcast %cst_225 : f32 to vector<64x128xf32>
    %508 = arith.maximumf %506, %507 : vector<64x128xf32>
    %509 = arith.subf %500, %508 : vector<64x128xf32>
    %c0_226 = arith.constant 0 : index
    %c56 = arith.constant 56 : index
    %510 = memref.load %arg1[%c0_226, %c56] : memref<3x64xf32, #tpu.memory_space<smem>>
    %511 = vector.broadcast %510 : f32 to vector<64x128xf32>
    %512 = arith.mulf %4, %511 : vector<64x128xf32>
    %c1_227 = arith.constant 1 : index
    %c56_228 = arith.constant 56 : index
    %513 = memref.load %arg1[%c1_227, %c56_228] : memref<3x64xf32, #tpu.memory_space<smem>>
    %514 = vector.broadcast %513 : f32 to vector<64x128xf32>
    %515 = arith.addf %512, %514 : vector<64x128xf32>
    %cst_229 = arith.constant 0.000000e+00 : f32
    %516 = vector.broadcast %cst_229 : f32 to vector<64x128xf32>
    %517 = arith.maximumf %515, %516 : vector<64x128xf32>
    %518 = arith.subf %509, %517 : vector<64x128xf32>
    %c0_230 = arith.constant 0 : index
    %c57 = arith.constant 57 : index
    %519 = memref.load %arg1[%c0_230, %c57] : memref<3x64xf32, #tpu.memory_space<smem>>
    %520 = vector.broadcast %519 : f32 to vector<64x128xf32>
    %521 = arith.mulf %4, %520 : vector<64x128xf32>
    %c1_231 = arith.constant 1 : index
    %c57_232 = arith.constant 57 : index
    %522 = memref.load %arg1[%c1_231, %c57_232] : memref<3x64xf32, #tpu.memory_space<smem>>
    %523 = vector.broadcast %522 : f32 to vector<64x128xf32>
    %524 = arith.addf %521, %523 : vector<64x128xf32>
    %cst_233 = arith.constant 0.000000e+00 : f32
    %525 = vector.broadcast %cst_233 : f32 to vector<64x128xf32>
    %526 = arith.maximumf %524, %525 : vector<64x128xf32>
    %527 = arith.subf %518, %526 : vector<64x128xf32>
    %c0_234 = arith.constant 0 : index
    %c58 = arith.constant 58 : index
    %528 = memref.load %arg1[%c0_234, %c58] : memref<3x64xf32, #tpu.memory_space<smem>>
    %529 = vector.broadcast %528 : f32 to vector<64x128xf32>
    %530 = arith.mulf %4, %529 : vector<64x128xf32>
    %c1_235 = arith.constant 1 : index
    %c58_236 = arith.constant 58 : index
    %531 = memref.load %arg1[%c1_235, %c58_236] : memref<3x64xf32, #tpu.memory_space<smem>>
    %532 = vector.broadcast %531 : f32 to vector<64x128xf32>
    %533 = arith.addf %530, %532 : vector<64x128xf32>
    %cst_237 = arith.constant 0.000000e+00 : f32
    %534 = vector.broadcast %cst_237 : f32 to vector<64x128xf32>
    %535 = arith.maximumf %533, %534 : vector<64x128xf32>
    %536 = arith.subf %527, %535 : vector<64x128xf32>
    %c0_238 = arith.constant 0 : index
    %c59 = arith.constant 59 : index
    %537 = memref.load %arg1[%c0_238, %c59] : memref<3x64xf32, #tpu.memory_space<smem>>
    %538 = vector.broadcast %537 : f32 to vector<64x128xf32>
    %539 = arith.mulf %4, %538 : vector<64x128xf32>
    %c1_239 = arith.constant 1 : index
    %c59_240 = arith.constant 59 : index
    %540 = memref.load %arg1[%c1_239, %c59_240] : memref<3x64xf32, #tpu.memory_space<smem>>
    %541 = vector.broadcast %540 : f32 to vector<64x128xf32>
    %542 = arith.addf %539, %541 : vector<64x128xf32>
    %cst_241 = arith.constant 0.000000e+00 : f32
    %543 = vector.broadcast %cst_241 : f32 to vector<64x128xf32>
    %544 = arith.maximumf %542, %543 : vector<64x128xf32>
    %545 = arith.subf %536, %544 : vector<64x128xf32>
    %c0_242 = arith.constant 0 : index
    %c60 = arith.constant 60 : index
    %546 = memref.load %arg1[%c0_242, %c60] : memref<3x64xf32, #tpu.memory_space<smem>>
    %547 = vector.broadcast %546 : f32 to vector<64x128xf32>
    %548 = arith.mulf %4, %547 : vector<64x128xf32>
    %c1_243 = arith.constant 1 : index
    %c60_244 = arith.constant 60 : index
    %549 = memref.load %arg1[%c1_243, %c60_244] : memref<3x64xf32, #tpu.memory_space<smem>>
    %550 = vector.broadcast %549 : f32 to vector<64x128xf32>
    %551 = arith.addf %548, %550 : vector<64x128xf32>
    %cst_245 = arith.constant 0.000000e+00 : f32
    %552 = vector.broadcast %cst_245 : f32 to vector<64x128xf32>
    %553 = arith.maximumf %551, %552 : vector<64x128xf32>
    %554 = arith.subf %545, %553 : vector<64x128xf32>
    %c0_246 = arith.constant 0 : index
    %c61 = arith.constant 61 : index
    %555 = memref.load %arg1[%c0_246, %c61] : memref<3x64xf32, #tpu.memory_space<smem>>
    %556 = vector.broadcast %555 : f32 to vector<64x128xf32>
    %557 = arith.mulf %4, %556 : vector<64x128xf32>
    %c1_247 = arith.constant 1 : index
    %c61_248 = arith.constant 61 : index
    %558 = memref.load %arg1[%c1_247, %c61_248] : memref<3x64xf32, #tpu.memory_space<smem>>
    %559 = vector.broadcast %558 : f32 to vector<64x128xf32>
    %560 = arith.addf %557, %559 : vector<64x128xf32>
    %cst_249 = arith.constant 0.000000e+00 : f32
    %561 = vector.broadcast %cst_249 : f32 to vector<64x128xf32>
    %562 = arith.maximumf %560, %561 : vector<64x128xf32>
    %563 = arith.subf %554, %562 : vector<64x128xf32>
    %c0_250 = arith.constant 0 : index
    %c62 = arith.constant 62 : index
    %564 = memref.load %arg1[%c0_250, %c62] : memref<3x64xf32, #tpu.memory_space<smem>>
    %565 = vector.broadcast %564 : f32 to vector<64x128xf32>
    %566 = arith.mulf %4, %565 : vector<64x128xf32>
    %c1_251 = arith.constant 1 : index
    %c62_252 = arith.constant 62 : index
    %567 = memref.load %arg1[%c1_251, %c62_252] : memref<3x64xf32, #tpu.memory_space<smem>>
    %568 = vector.broadcast %567 : f32 to vector<64x128xf32>
    %569 = arith.addf %566, %568 : vector<64x128xf32>
    %cst_253 = arith.constant 0.000000e+00 : f32
    %570 = vector.broadcast %cst_253 : f32 to vector<64x128xf32>
    %571 = arith.maximumf %569, %570 : vector<64x128xf32>
    %572 = arith.subf %563, %571 : vector<64x128xf32>
    %c0_254 = arith.constant 0 : index
    %c63 = arith.constant 63 : index
    %573 = memref.load %arg1[%c0_254, %c63] : memref<3x64xf32, #tpu.memory_space<smem>>
    %574 = vector.broadcast %573 : f32 to vector<64x128xf32>
    %575 = arith.mulf %4, %574 : vector<64x128xf32>
    %c1_255 = arith.constant 1 : index
    %c63_256 = arith.constant 63 : index
    %576 = memref.load %arg1[%c1_255, %c63_256] : memref<3x64xf32, #tpu.memory_space<smem>>
    %577 = vector.broadcast %576 : f32 to vector<64x128xf32>
    %578 = arith.addf %575, %577 : vector<64x128xf32>
    %cst_257 = arith.constant 0.000000e+00 : f32
    %579 = vector.broadcast %cst_257 : f32 to vector<64x128xf32>
    %580 = arith.maximumf %578, %579 : vector<64x128xf32>
    %581 = arith.subf %572, %580 : vector<64x128xf32>
    %582 = arith.index_cast %2 : i32 to index
    %c0_258 = arith.constant 0 : index
    %583 = vector.load %arg3[%582, %c0_258] : memref<64x128xf32, #tpu.memory_space<vmem>>, vector<64x128xf32>
    tpu.vector_store %arg3[%582, %c0_258], %581 {strides = array<i32>} : memref<64x128xf32, #tpu.memory_space<vmem>>, vector<64x128xf32>,
    %c1_i32 = arith.constant 1 : i32
    return
  }
  func.func @transform_0(%arg0: i32) -> (i32, i32) {
    %c0_i32 = arith.constant 0 : i32
    %c0_i32_0 = arith.constant 0 : i32
    %c0_i32_1 = arith.constant 0 : i32
    return %c0_i32, %c0_i32_0 : i32, i32
  }
  func.func @transform_1(%arg0: i32) -> (i32, i32) {
    %c0_i32 = arith.constant 0 : i32
    %c0_i32_0 = arith.constant 0 : i32
    return %arg0, %c0_i32 : i32, i32
  }
  func.func @transform_2(%arg0: i32) -> (i32, i32) {
    %c0_i32 = arith.constant 0 : i32
    %c0_i32_0 = arith.constant 0 : i32
    return %arg0, %c0_i32 : i32, i32
  }
}

</mosaic_0001>

<llo_original>
// kernel: tpu_custom_call.1
$region0: #{tpu_custom_call.1}
  #allocation0 [shape = 'u32[]', space=smem, size = 0x4, offset = 0x4, fixed_abs, tag = 'smem constant byte address 0x4 - core index']
  #allocation1 [shape = 'u32[72,128]{1,0:T(1,128)}', space=vmem, size = 0x9000, scoped, tag = 'internal scratch']
  %s0 = inlined_call_operand.hbm [shape: f32[3,64], index: 0, kind: input, shape index: {}]
  %s1 = inlined_call_operand.hbm [shape: f32[64,128], index: 1, kind: input, shape index: {}]
  %s2 = inlined_call_operand.hbm [shape: f32[64,128], index: 2, kind: output, shape index: {}]
  %s3 = sld [smem:[#allocation0]]
  $region26: #{tpu_custom_call.1} parent=0
    _
  %s5 = ssub.s32 1, %s3
  %s6 = scalar_select 0, %s5, %s3
  $region1: #{tpu_custom_call.1} parent=0
    #allocation2 [shape = 'u8[2048]{0}', space=smem, size = 0x800, scoped, tag = 'input window, operand 0, single buffered']
    #allocation3 [shape = 's32[1]{0}', space=sflag, size = 0x4, scoped, tag = 'scoped memory for tpu_custom_call.1']
    #allocation4 [shape = 's32[1]{0}', space=sflag, size = 0x4, scoped, tag = 'scoped memory for tpu_custom_call.1']
    #allocation5 [shape = 's32[1]{0}', space=sflag, size = 0x4, scoped, tag = 'scoped memory for tpu_custom_call.1']
    #allocation6 [shape = 'u8[32768]{0}', space=vmem, size = 0x8000, scoped, tag = 'input window, operand 1, single buffered']
    #allocation7 [shape = 'u8[32768]{0}', space=vmem, size = 0x8000, scoped, tag = 'output window, operand 0, single buffered']
    %7 = vsyncpa [#allocation5], 0
    %8 = vsyncpa [#allocation3], 0
    %9 = vsyncpa [#allocation4], 0
    // Predicated region
    $region2: #{tpu_custom_call.1} parent=1 // pred_check
      _
    $region3: #{tpu_custom_call.1} parent=1 // pred_check_branch
      %11 = sbr.rel (0) target = $region5
    $region4: #{tpu_custom_call.1} parent=1 // pred_region
      %13 = vsyncadd [#allocation5], 0
      %s15 = sshll.u32 %s0, 4
      %s16 = int_to_ptr.hbm [resolvable:$true] %s15
      %18 = dma.hbm_to_smem %s16, 64, [#allocation2], [#allocation5]
    $region5: #{tpu_custom_call.1} parent=1 // pred_fallthru
      _
    // Predicated region
    $region6: #{tpu_custom_call.1} parent=1 // pred_check
      _
    $region7: #{tpu_custom_call.1} parent=1 // pred_check_branch
      %20 = sbr.rel (0) target = $region9
    $region8: #{tpu_custom_call.1} parent=1 // pred_region
      %22 = vsyncadd [#allocation3], 0
      %s23 = sshll.u32 %s1, 4
      %s24 = int_to_ptr.hbm [resolvable:$true] %s23
      %s25 = sshll.u32 [#allocation6], 4
      %s26 = int_to_ptr.vmem [resolvable:$true] %s25
      %31 = dma.hbm_to_vmem [thread:$0]  %s24, 1024, %s26, [#allocation3], 128, 128, 8
    $region9: #{tpu_custom_call.1} parent=1 // pred_fallthru
      _
    // Predicated region
    $region10: #{tpu_custom_call.1} parent=1 // pred_check
      _
    $region11: #{tpu_custom_call.1} parent=1 // pred_check_branch
      %33 = sbr.rel (0) target = $region13
    $region12: #{tpu_custom_call.1} parent=1 // pred_region
      %35 = dma.done [#allocation5], 64
    $region13: #{tpu_custom_call.1} parent=1 // pred_fallthru
      _
    // Predicated region
    $region14: #{tpu_custom_call.1} parent=1 // pred_check
      _
    $region15: #{tpu_custom_call.1} parent=1 // pred_check_branch
      %37 = sbr.rel (0) target = $region17
    $region16: #{tpu_custom_call.1} parent=1 // pred_region
      %39 = dma.done [#allocation3], 1024
    $region17: #{tpu_custom_call.1} parent=1 // pred_fallthru
      _
    %40 = sfence
    %s41 = sld [smem:[#allocation2 + $0x100]]
    %v42 = vld [vmem:[#allocation6] sm:$0xff]
    %v43 = vld [vmem:[#allocation6 + $0x8] sm:$0xff]
    %v44 = vld [vmem:[#allocation6 + $0x10] sm:$0xff]
    %v45 = vld [vmem:[#allocation6 + $0x18] sm:$0xff]
    %v46 = vld [vmem:[#allocation6 + $0x20] sm:$0xff]
    %v47 = vld [vmem:[#allocation6 + $0x28] sm:$0xff]
    %v48 = vld [vmem:[#allocation6 + $0x30] sm:$0xff]
    %v49 = vld [vmem:[#allocation6 + $0x38] sm:$0xff]
    %v50 = vstv %s41
    %s51 = sld [smem:[#allocation2]]
    %v52 = vstv %s51
    %v53 = vmul.f32 %v42, %v52
    %v54 = vmul.f32 %v43, %v52
    %v55 = vmul.f32 %v44, %v52
    %v56 = vmul.f32 %v45, %v52
    %v57 = vmul.f32 %v46, %v52
    %v58 = vmul.f32 %v47, %v52
    %v59 = vmul.f32 %v48, %v52
    %v60 = vmul.f32 %v49, %v52
    %s61 = sld [smem:[#allocation2 + $0x80]]
    %v62 = vstv %s61
    %v63 = vadd.f32 %v53, %v62
    %v64 = vadd.f32 %v54, %v62
    %v65 = vadd.f32 %v55, %v62
    %v66 = vadd.f32 %v56, %v62
    %v67 = vadd.f32 %v57, %v62
    %v68 = vadd.f32 %v58, %v62
    %v69 = vadd.f32 %v59, %v62
    %v70 = vadd.f32 %v60, %v62
    %v71 = vmax.f32 %v63, 0.0
    %v72 = vmax.f32 %v64, 0.0
    %v73 = vmax.f32 %v65, 0.0
    %v74 = vmax.f32 %v66, 0.0
    %v75 = vmax.f32 %v67, 0.0
    %v76 = vmax.f32 %v68, 0.0
    %v77 = vmax.f32 %v69, 0.0
    %v78 = vmax.f32 %v70, 0.0
    %v79 = vadd.f32 %v50, %v71
    %v80 = vadd.f32 %v50, %v72
    %v81 = vadd.f32 %v50, %v73
    %v82 = vadd.f32 %v50, %v74
    %v83 = vadd.f32 %v50, %v75
    %v84 = vadd.f32 %v50, %v76
    %v85 = vadd.f32 %v50, %v77
    %v86 = vadd.f32 %v50, %v78
    %s87 = sld [smem:[#allocation2 + $0x1]]
    %v88 = vstv %s87
    %v89 = vmul.f32 %v42, %v88
    %v90 = vmul.f32 %v43, %v88
    %v91 = vmul.f32 %v44, %v88
    %v92 = vmul.f32 %v45, %v88
    %v93 = vmul.f32 %v46, %v88
    %v94 = vmul.f32 %v47, %v88
    %v95 = vmul.f32 %v48, %v88
    %v96 = vmul.f32 %v49, %v88
    %s97 = sld [smem:[#allocation2 + $0x81]]
    %v98 = vstv %s97
    %v99 = vadd.f32 %v89, %v98
    %v100 = vadd.f32 %v90, %v98
    %v101 = vadd.f32 %v91, %v98
    %v102 = vadd.f32 %v92, %v98
    %v103 = vadd.f32 %v93, %v98
    %v104 = vadd.f32 %v94, %v98
    %v105 = vadd.f32 %v95, %v98
    %v106 = vadd.f32 %v96, %v98
    %v107 = vmax.f32 %v99, 0.0
    %v108 = vmax.f32 %v100, 0.0
    %v109 = vmax.f32 %v101, 0.0
    %v110 = vmax.f32 %v102, 0.0
    %v111 = vmax.f32 %v103, 0.0
    %v112 = vmax.f32 %v104, 0.0
    %v113 = vmax.f32 %v105, 0.0
    %v114 = vmax.f32 %v106, 0.0
    %v115 = vadd.f32 %v79, %v107
    %v116 = vadd.f32 %v80, %v108
    %v117 = vadd.f32 %v81, %v109
    %v118 = vadd.f32 %v82, %v110
    %v119 = vadd.f32 %v83, %v111
    %v120 = vadd.f32 %v84, %v112
    %v121 = vadd.f32 %v85, %v113
    %v122 = vadd.f32 %v86, %v114
    %s123 = sld [smem:[#allocation2 + $0x2]]
    %v124 = vstv %s123
    %v125 = vmul.f32 %v42, %v124
    %v126 = vmul.f32 %v43, %v124
    %v127 = vmul.f32 %v44, %v124
    %v128 = vmul.f32 %v45, %v124
    %v129 = vmul.f32 %v46, %v124
    %v130 = vmul.f32 %v47, %v124
    %v131 = vmul.f32 %v48, %v124
    %v132 = vmul.f32 %v49, %v124
    %s133 = sld [smem:[#allocation2 + $0x82]]
    %v134 = vstv %s133
    %v135 = vadd.f32 %v125, %v134
    %v136 = vadd.f32 %v126, %v134
    %v137 = vadd.f32 %v127, %v134
    %v138 = vadd.f32 %v128, %v134
    %v139 = vadd.f32 %v129, %v134
    %v140 = vadd.f32 %v130, %v134
    %v141 = vadd.f32 %v131, %v134
    %v142 = vadd.f32 %v132, %v134
    %v143 = vmax.f32 %v135, 0.0
    %v144 = vmax.f32 %v136, 0.0
    %v145 = vmax.f32 %v137, 0.0
    %v146 = vmax.f32 %v138, 0.0
    %v147 = vmax.f32 %v139, 0.0
    %v148 = vmax.f32 %v140, 0.0
    %v149 = vmax.f32 %v141, 0.0
    %v150 = vmax.f32 %v142, 0.0
    %v151 = vadd.f32 %v115, %v143
    %v152 = vadd.f32 %v116, %v144
    %v153 = vadd.f32 %v117, %v145
    %v154 = vadd.f32 %v118, %v146
    %v155 = vadd.f32 %v119, %v147
    %v156 = vadd.f32 %v120, %v148
    %v157 = vadd.f32 %v121, %v149
    %v158 = vadd.f32 %v122, %v150
    %s159 = sld [smem:[#allocation2 + $0x3]]
    %v160 = vstv %s159
    %v161 = vmul.f32 %v42, %v160
    %v162 = vmul.f32 %v43, %v160
    %v163 = vmul.f32 %v44, %v160
    %v164 = vmul.f32 %v45, %v160
    %v165 = vmul.f32 %v46, %v160
    %v166 = vmul.f32 %v47, %v160
    %v167 = vmul.f32 %v48, %v160
    %v168 = vmul.f32 %v49, %v160
    %s169 = sld [smem:[#allocation2 + $0x83]]
    %v170 = vstv %s169
    %v171 = vadd.f32 %v161, %v170
    %v172 = vadd.f32 %v162, %v170
    %v173 = vadd.f32 %v163, %v170
    %v174 = vadd.f32 %v164, %v170
    %v175 = vadd.f32 %v165, %v170
    %v176 = vadd.f32 %v166, %v170
    %v177 = vadd.f32 %v167, %v170
    %v178 = vadd.f32 %v168, %v170
    %v179 = vmax.f32 %v171, 0.0
    %v180 = vmax.f32 %v172, 0.0
    %v181 = vmax.f32 %v173, 0.0
    %v182 = vmax.f32 %v174, 0.0
    %v183 = vmax.f32 %v175, 0.0
    %v184 = vmax.f32 %v176, 0.0
    %v185 = vmax.f32 %v177, 0.0
    %v186 = vmax.f32 %v178, 0.0
    %v187 = vadd.f32 %v151, %v179
    %v188 = vadd.f32 %v152, %v180
    %v189 = vadd.f32 %v153, %v181
    %v190 = vadd.f32 %v154, %v182
    %v191 = vadd.f32 %v155, %v183
    %v192 = vadd.f32 %v156, %v184
    %v193 = vadd.f32 %v157, %v185
    %v194 = vadd.f32 %v158, %v186
    %s195 = sld [smem:[#allocation2 + $0x4]]
    %v196 = vstv %s195
    %v197 = vmul.f32 %v42, %v196
    %v198 = vmul.f32 %v43, %v196
    %v199 = vmul.f32 %v44, %v196
    %v200 = vmul.f32 %v45, %v196
    %v201 = vmul.f32 %v46, %v196
    %v202 = vmul.f32 %v47, %v196
    %v203 = vmul.f32 %v48, %v196
    %v204 = vmul.f32 %v49, %v196
    %s205 = sld [smem:[#allocation2 + $0x84]]
    %v206 = vstv %s205
    %v207 = vadd.f32 %v197, %v206
    %v208 = vadd.f32 %v198, %v206
    %v209 = vadd.f32 %v199, %v206
    %v210 = vadd.f32 %v200, %v206
    %v211 = vadd.f32 %v201, %v206
    %v212 = vadd.f32 %v202, %v206
    %v213 = vadd.f32 %v203, %v206
    %v214 = vadd.f32 %v204, %v206
    %v215 = vmax.f32 %v207, 0.0
    %v216 = vmax.f32 %v208, 0.0
    %v217 = vmax.f32 %v209, 0.0
    %v218 = vmax.f32 %v210, 0.0
    %v219 = vmax.f32 %v211, 0.0
    %v220 = vmax.f32 %v212, 0.0
    %v221 = vmax.f32 %v213, 0.0
    %v222 = vmax.f32 %v214, 0.0
    %v223 = vadd.f32 %v187, %v215
    %v224 = vadd.f32 %v188, %v216
    %v225 = vadd.f32 %v189, %v217
    %v226 = vadd.f32 %v190, %v218
    %v227 = vadd.f32 %v191, %v219
    %v228 = vadd.f32 %v192, %v220
    %v229 = vadd.f32 %v193, %v221
    %v230 = vadd.f32 %v194, %v222
    %s231 = sld [smem:[#allocation2 + $0x5]]
    %v232 = vstv %s231
    %v233 = vmul.f32 %v42, %v232
    %v234 = vmul.f32 %v43, %v232
    %v235 = vmul.f32 %v44, %v232
    %v236 = vmul.f32 %v45, %v232
    %v237 = vmul.f32 %v46, %v232
    %v238 = vmul.f32 %v47, %v232
    %v239 = vmul.f32 %v48, %v232
    %v240 = vmul.f32 %v49, %v232
    %s241 = sld [smem:[#allocation2 + $0x85]]
    %v242 = vstv %s241
    %v243 = vadd.f32 %v233, %v242
    %v244 = vadd.f32 %v234, %v242
    %v245 = vadd.f32 %v235, %v242
    %v246 = vadd.f32 %v236, %v242
    %v247 = vadd.f32 %v237, %v242
    %v248 = vadd.f32 %v238, %v242
    %v249 = vadd.f32 %v239, %v242
    %v250 = vadd.f32 %v240, %v242
    %v251 = vmax.f32 %v243, 0.0
    %v252 = vmax.f32 %v244, 0.0
    %v253 = vmax.f32 %v245, 0.0
    %v254 = vmax.f32 %v246, 0.0
    %v255 = vmax.f32 %v247, 0.0
    %v256 = vmax.f32 %v248, 0.0
    %v257 = vmax.f32 %v249, 0.0
    %v258 = vmax.f32 %v250, 0.0
    %v259 = vadd.f32 %v223, %v251
    %v260 = vadd.f32 %v224, %v252
    %v261 = vadd.f32 %v225, %v253
    %v262 = vadd.f32 %v226, %v254
    %v263 = vadd.f32 %v227, %v255
    %v264 = vadd.f32 %v228, %v256
    %v265 = vadd.f32 %v229, %v257
    %v266 = vadd.f32 %v230, %v258
    %s267 = sld [smem:[#allocation2 + $0x6]]
    %v268 = vstv %s267
    %v269 = vmul.f32 %v42, %v268
    %v270 = vmul.f32 %v43, %v268
    %v271 = vmul.f32 %v44, %v268
    %v272 = vmul.f32 %v45, %v268
    %v273 = vmul.f32 %v46, %v268
    %v274 = vmul.f32 %v47, %v268
    %v275 = vmul.f32 %v48, %v268
    %v276 = vmul.f32 %v49, %v268
    %s277 = sld [smem:[#allocation2 + $0x86]]
    %v278 = vstv %s277
    %v279 = vadd.f32 %v269, %v278
    %v280 = vadd.f32 %v270, %v278
    %v281 = vadd.f32 %v271, %v278
    %v282 = vadd.f32 %v272, %v278
    %v283 = vadd.f32 %v273, %v278
    %v284 = vadd.f32 %v274, %v278
    %v285 = vadd.f32 %v275, %v278
    %v286 = vadd.f32 %v276, %v278
    %v287 = vmax.f32 %v279, 0.0
    %v288 = vmax.f32 %v280, 0.0
    %v289 = vmax.f32 %v281, 0.0
    %v290 = vmax.f32 %v282, 0.0
    %v291 = vmax.f32 %v283, 0.0
    %v292 = vmax.f32 %v284, 0.0
    %v293 = vmax.f32 %v285, 0.0
    %v294 = vmax.f32 %v286, 0.0
    %v295 = vadd.f32 %v259, %v287
    %v296 = vadd.f32 %v260, %v288
    %v297 = vadd.f32 %v261, %v289
    %v298 = vadd.f32 %v262, %v290
    %v299 = vadd.f32 %v263, %v291
    %v300 = vadd.f32 %v264, %v292
    %v301 = vadd.f32 %v265, %v293
    %v302 = vadd.f32 %v266, %v294
    %s303 = sld [smem:[#allocation2 + $0x7]]
    %v304 = vstv %s303
    %v305 = vmul.f32 %v42, %v304
    %v306 = vmul.f32 %v43, %v304
    %v307 = vmul.f32 %v44, %v304
    %v308 = vmul.f32 %v45, %v304
    %v309 = vmul.f32 %v46, %v304
    %v310 = vmul.f32 %v47, %v304
    %v311 = vmul.f32 %v48, %v304
    %v312 = vmul.f32 %v49, %v304
    %s313 = sld [smem:[#allocation2 + $0x87]]
    %v314 = vstv %s313
    %v315 = vadd.f32 %v305, %v314
    %v316 = vadd.f32 %v306, %v314
    %v317 = vadd.f32 %v307, %v314
    %v318 = vadd.f32 %v308, %v314
    %v319 = vadd.f32 %v309, %v314
    %v320 = vadd.f32 %v310, %v314
    %v321 = vadd.f32 %v311, %v314
    %v322 = vadd.f32 %v312, %v314
    %v323 = vmax.f32 %v315, 0.0
    %v324 = vmax.f32 %v316, 0.0
    %v325 = vmax.f32 %v317, 0.0
    %v326 = vmax.f32 %v318, 0.0
    %v327 = vmax.f32 %v319, 0.0
    %v328 = vmax.f32 %v320, 0.0
    %v329 = vmax.f32 %v321, 0.0
    %v330 = vmax.f32 %v322, 0.0
    %v331 = vadd.f32 %v295, %v323
    %v332 = vadd.f32 %v296, %v324
    %v333 = vadd.f32 %v297, %v325
    %v334 = vadd.f32 %v298, %v326
    %v335 = vadd.f32 %v299, %v327
    %v336 = vadd.f32 %v300, %v328
    %v337 = vadd.f32 %v301, %v329
    %v338 = vadd.f32 %v302, %v330
    %s339 = sld [smem:[#allocation2 + $0x8]]
    %v340 = vstv %s339
    %v341 = vmul.f32 %v42, %v340
    %v342 = vmul.f32 %v43, %v340
    %v343 = vmul.f32 %v44, %v340
    %v344 = vmul.f32 %v45, %v340
    %v345 = vmul.f32 %v46, %v340
    %v346 = vmul.f32 %v47, %v340
    %v347 = vmul.f32 %v48, %v340
    %v348 = vmul.f32 %v49, %v340
    %s349 = sld [smem:[#allocation2 + $0x88]]
    %v350 = vstv %s349
    %v351 = vadd.f32 %v341, %v350
    %v352 = vadd.f32 %v342, %v350
    %v353 = vadd.f32 %v343, %v350
    %v354 = vadd.f32 %v344, %v350
    %v355 = vadd.f32 %v345, %v350
    %v356 = vadd.f32 %v346, %v350
    %v357 = vadd.f32 %v347, %v350
    %v358 = vadd.f32 %v348, %v350
    %v359 = vmax.f32 %v351, 0.0
    %v360 = vmax.f32 %v352, 0.0
    %v361 = vmax.f32 %v353, 0.0
    %v362 = vmax.f32 %v354, 0.0
    %v363 = vmax.f32 %v355, 0.0
    %v364 = vmax.f32 %v356, 0.0
    %v365 = vmax.f32 %v357, 0.0
    %v366 = vmax.f32 %v358, 0.0
    %v367 = vadd.f32 %v331, %v359
    %v368 = vadd.f32 %v332, %v360
    %v369 = vadd.f32 %v333, %v361
    %v370 = vadd.f32 %v334, %v362
    %v371 = vadd.f32 %v335, %v363
    %v372 = vadd.f32 %v336, %v364
    %v373 = vadd.f32 %v337, %v365
    %v374 = vadd.f32 %v338, %v366
    %s375 = sld [smem:[#allocation2 + $0x9]]
    %v376 = vstv %s375
    %v377 = vmul.f32 %v42, %v376
    %v378 = vmul.f32 %v43, %v376
    %v379 = vmul.f32 %v44, %v376
    %v380 = vmul.f32 %v45, %v376
    %v381 = vmul.f32 %v46, %v376
    %v382 = vmul.f32 %v47, %v376
    %v383 = vmul.f32 %v48, %v376
    %v384 = vmul.f32 %v49, %v376
    %s385 = sld [smem:[#allocation2 + $0x89]]
    %v386 = vstv %s385
    %v387 = vadd.f32 %v377, %v386
    %v388 = vadd.f32 %v378, %v386
    %v389 = vadd.f32 %v379, %v386
    %v390 = vadd.f32 %v380, %v386
    %v391 = vadd.f32 %v381, %v386
    %v392 = vadd.f32 %v382, %v386
    %v393 = vadd.f32 %v383, %v386
    %v394 = vadd.f32 %v384, %v386
    %v395 = vmax.f32 %v387, 0.0
    %v396 = vmax.f32 %v388, 0.0
    %v397 = vmax.f32 %v389, 0.0
    %v398 = vmax.f32 %v390, 0.0
    %v399 = vmax.f32 %v391, 0.0
    %v400 = vmax.f32 %v392, 0.0
    %v401 = vmax.f32 %v393, 0.0
    %v402 = vmax.f32 %v394, 0.0
    %v403 = vadd.f32 %v367, %v395
    %v404 = vadd.f32 %v368, %v396
    %v405 = vadd.f32 %v369, %v397
    %v406 = vadd.f32 %v370, %v398
    %v407 = vadd.f32 %v371, %v399
    %v408 = vadd.f32 %v372, %v400
    %v409 = vadd.f32 %v373, %v401
    %v410 = vadd.f32 %v374, %v402
    %s411 = sld [smem:[#allocation2 + $0xa]]
    %v412 = vstv %s411
    %v413 = vmul.f32 %v42, %v412
    %v414 = vmul.f32 %v43, %v412
    %v415 = vmul.f32 %v44, %v412
    %v416 = vmul.f32 %v45, %v412
    %v417 = vmul.f32 %v46, %v412
    %v418 = vmul.f32 %v47, %v412
    %v419 = vmul.f32 %v48, %v412
    %v420 = vmul.f32 %v49, %v412
    %s421 = sld [smem:[#allocation2 + $0x8a]]
    %v422 = vstv %s421
    %v423 = vadd.f32 %v413, %v422
    %v424 = vadd.f32 %v414, %v422
    %v425 = vadd.f32 %v415, %v422
    %v426 = vadd.f32 %v416, %v422
    %v427 = vadd.f32 %v417, %v422
    %v428 = vadd.f32 %v418, %v422
    %v429 = vadd.f32 %v419, %v422
    %v430 = vadd.f32 %v420, %v422
    %v431 = vmax.f32 %v423, 0.0
    %v432 = vmax.f32 %v424, 0.0
    %v433 = vmax.f32 %v425, 0.0
    %v434 = vmax.f32 %v426, 0.0
    %v435 = vmax.f32 %v427, 0.0
    %v436 = vmax.f32 %v428, 0.0
    %v437 = vmax.f32 %v429, 0.0
    %v438 = vmax.f32 %v430, 0.0
    %v439 = vadd.f32 %v403, %v431
    %v440 = vadd.f32 %v404, %v432
    %v441 = vadd.f32 %v405, %v433
    %v442 = vadd.f32 %v406, %v434
    %v443 = vadd.f32 %v407, %v435
    %v444 = vadd.f32 %v408, %v436
    %v445 = vadd.f32 %v409, %v437
    %v446 = vadd.f32 %v410, %v438
    %s447 = sld [smem:[#allocation2 + $0xb]]
    %v448 = vstv %s447
    %v449 = vmul.f32 %v42, %v448
    %v450 = vmul.f32 %v43, %v448
    %v451 = vmul.f32 %v44, %v448
    %v452 = vmul.f32 %v45, %v448
    %v453 = vmul.f32 %v46, %v448
    %v454 = vmul.f32 %v47, %v448
    %v455 = vmul.f32 %v48, %v448
    %v456 = vmul.f32 %v49, %v448
    %s457 = sld [smem:[#allocation2 + $0x8b]]
    %v458 = vstv %s457
    %v459 = vadd.f32 %v449, %v458
    %v460 = vadd.f32 %v450, %v458
    %v461 = vadd.f32 %v451, %v458
    %v462 = vadd.f32 %v452, %v458
    %v463 = vadd.f32 %v453, %v458
    %v464 = vadd.f32 %v454, %v458
    %v465 = vadd.f32 %v455, %v458
    %v466 = vadd.f32 %v456, %v458
    %v467 = vmax.f32 %v459, 0.0
    %v468 = vmax.f32 %v460, 0.0
    %v469 = vmax.f32 %v461, 0.0
    %v470 = vmax.f32 %v462, 0.0
    %v471 = vmax.f32 %v463, 0.0
    %v472 = vmax.f32 %v464, 0.0
    %v473 = vmax.f32 %v465, 0.0
    %v474 = vmax.f32 %v466, 0.0
    %v475 = vadd.f32 %v439, %v467
    %v476 = vadd.f32 %v440, %v468
    %v477 = vadd.f32 %v441, %v469
    %v478 = vadd.f32 %v442, %v470
    %v479 = vadd.f32 %v443, %v471
    %v480 = vadd.f32 %v444, %v472
    %v481 = vadd.f32 %v445, %v473
    %v482 = vadd.f32 %v446, %v474
    %s483 = sld [smem:[#allocation2 + $0xc]]
    %v484 = vstv %s483
    %v485 = vmul.f32 %v42, %v484
    %v486 = vmul.f32 %v43, %v484
    %v487 = vmul.f32 %v44, %v484
    %v488 = vmul.f32 %v45, %v484
    %v489 = vmul.f32 %v46, %v484
    %v490 = vmul.f32 %v47, %v484
    %v491 = vmul.f32 %v48, %v484
    %v492 = vmul.f32 %v49, %v484
    %s493 = sld [smem:[#allocation2 + $0x8c]]
    %v494 = vstv %s493
    %v495 = vadd.f32 %v485, %v494
    %v496 = vadd.f32 %v486, %v494
    %v497 = vadd.f32 %v487, %v494
    %v498 = vadd.f32 %v488, %v494
    %v499 = vadd.f32 %v489, %v494
    %v500 = vadd.f32 %v490, %v494
    %v501 = vadd.f32 %v491, %v494
    %v502 = vadd.f32 %v492, %v494
    %v503 = vmax.f32 %v495, 0.0
    %v504 = vmax.f32 %v496, 0.0
    %v505 = vmax.f32 %v497, 0.0
    %v506 = vmax.f32 %v498, 0.0
    %v507 = vmax.f32 %v499, 0.0
    %v508 = vmax.f32 %v500, 0.0
    %v509 = vmax.f32 %v501, 0.0
    %v510 = vmax.f32 %v502, 0.0
    %v511 = vadd.f32 %v475, %v503
    %v512 = vadd.f32 %v476, %v504
    %v513 = vadd.f32 %v477, %v505
    %v514 = vadd.f32 %v478, %v506
    %v515 = vadd.f32 %v479, %v507
    %v516 = vadd.f32 %v480, %v508
    %v517 = vadd.f32 %v481, %v509
    %v518 = vadd.f32 %v482, %v510
    %s519 = sld [smem:[#allocation2 + $0xd]]
    %v520 = vstv %s519
    %v521 = vmul.f32 %v42, %v520
    %v522 = vmul.f32 %v43, %v520
    %v523 = vmul.f32 %v44, %v520
    %v524 = vmul.f32 %v45, %v520
    %v525 = vmul.f32 %v46, %v520
    %v526 = vmul.f32 %v47, %v520
    %v527 = vmul.f32 %v48, %v520
    %v528 = vmul.f32 %v49, %v520
    %s529 = sld [smem:[#allocation2 + $0x8d]]
    %v530 = vstv %s529
    %v531 = vadd.f32 %v521, %v530
    %v532 = vadd.f32 %v522, %v530
    %v533 = vadd.f32 %v523, %v530
    %v534 = vadd.f32 %v524, %v530
    %v535 = vadd.f32 %v525, %v530
    %v536 = vadd.f32 %v526, %v530
    %v537 = vadd.f32 %v527, %v530
    %v538 = vadd.f32 %v528, %v530
    %v539 = vmax.f32 %v531, 0.0
    %v540 = vmax.f32 %v532, 0.0
    %v541 = vmax.f32 %v533, 0.0
    %v542 = vmax.f32 %v534, 0.0
    %v543 = vmax.f32 %v535, 0.0
    %v544 = vmax.f32 %v536, 0.0
    %v545 = vmax.f32 %v537, 0.0
    %v546 = vmax.f32 %v538, 0.0
    %v547 = vadd.f32 %v511, %v539
    %v548 = vadd.f32 %v512, %v540
    %v549 = vadd.f32 %v513, %v541
    %v550 = vadd.f32 %v514, %v542
    %v551 = vadd.f32 %v515, %v543
    %v552 = vadd.f32 %v516, %v544
    %v553 = vadd.f32 %v517, %v545
    %v554 = vadd.f32 %v518, %v546
    %s555 = sld [smem:[#allocation2 + $0xe]]
    %v556 = vstv %s555
    %v557 = vmul.f32 %v42, %v556
    %v558 = vmul.f32 %v43, %v556
    %v559 = vmul.f32 %v44, %v556
    %v560 = vmul.f32 %v45, %v556
    %v561 = vmul.f32 %v46, %v556
    %v562 = vmul.f32 %v47, %v556
    %v563 = vmul.f32 %v48, %v556
    %v564 = vmul.f32 %v49, %v556
    %s565 = sld [smem:[#allocation2 + $0x8e]]
    %v566 = vstv %s565
    %v567 = vadd.f32 %v557, %v566
    %v568 = vadd.f32 %v558, %v566
    %v569 = vadd.f32 %v559, %v566
    %v570 = vadd.f32 %v560, %v566
    %v571 = vadd.f32 %v561, %v566
    %v572 = vadd.f32 %v562, %v566
    %v573 = vadd.f32 %v563, %v566
    %v574 = vadd.f32 %v564, %v566
    %v575 = vmax.f32 %v567, 0.0
    %v576 = vmax.f32 %v568, 0.0
    %v577 = vmax.f32 %v569, 0.0
    %v578 = vmax.f32 %v570, 0.0
    %v579 = vmax.f32 %v571, 0.0
    %v580 = vmax.f32 %v572, 0.0
    %v581 = vmax.f32 %v573, 0.0
    %v582 = vmax.f32 %v574, 0.0
    %v583 = vadd.f32 %v547, %v575
    %v584 = vadd.f32 %v548, %v576
    %v585 = vadd.f32 %v549, %v577
    %v586 = vadd.f32 %v550, %v578
    %v587 = vadd.f32 %v551, %v579
    %v588 = vadd.f32 %v552, %v580
    %v589 = vadd.f32 %v553, %v581
    %v590 = vadd.f32 %v554, %v582
    %s591 = sld [smem:[#allocation2 + $0xf]]
    %v592 = vstv %s591
    %v593 = vmul.f32 %v42, %v592
    %v594 = vmul.f32 %v43, %v592
    %v595 = vmul.f32 %v44, %v592
    %v596 = vmul.f32 %v45, %v592
    %v597 = vmul.f32 %v46, %v592
    %v598 = vmul.f32 %v47, %v592
    %v599 = vmul.f32 %v48, %v592
    %v600 = vmul.f32 %v49, %v592
    %s601 = sld [smem:[#allocation2 + $0x8f]]
    %v602 = vstv %s601
    %v603 = vadd.f32 %v593, %v602
    %v604 = vadd.f32 %v594, %v602
    %v605 = vadd.f32 %v595, %v602
    %v606 = vadd.f32 %v596, %v602
    %v607 = vadd.f32 %v597, %v602
    %v608 = vadd.f32 %v598, %v602
    %v609 = vadd.f32 %v599, %v602
    %v610 = vadd.f32 %v600, %v602
    %v611 = vmax.f32 %v603, 0.0
    %v612 = vmax.f32 %v604, 0.0
    %v613 = vmax.f32 %v605, 0.0
    %v614 = vmax.f32 %v606, 0.0
    %v615 = vmax.f32 %v607, 0.0
    %v616 = vmax.f32 %v608, 0.0
    %v617 = vmax.f32 %v609, 0.0
    %v618 = vmax.f32 %v610, 0.0
    %v619 = vadd.f32 %v583, %v611
    %v620 = vadd.f32 %v584, %v612
    %v621 = vadd.f32 %v585, %v613
    %v622 = vadd.f32 %v586, %v614
    %v623 = vadd.f32 %v587, %v615
    %v624 = vadd.f32 %v588, %v616
    %v625 = vadd.f32 %v589, %v617
    %v626 = vadd.f32 %v590, %v618
    %s627 = sld [smem:[#allocation2 + $0x10]]
    %v628 = vstv %s627
    %v629 = vmul.f32 %v42, %v628
    %v630 = vmul.f32 %v43, %v628
    %v631 = vmul.f32 %v44, %v628
    %v632 = vmul.f32 %v45, %v628
    %v633 = vmul.f32 %v46, %v628
    %v634 = vmul.f32 %v47, %v628
    %v635 = vmul.f32 %v48, %v628
    %v636 = vmul.f32 %v49, %v628
    %s637 = sld [smem:[#allocation2 + $0x90]]
    %v638 = vstv %s637
    %v639 = vadd.f32 %v629, %v638
    %v640 = vadd.f32 %v630, %v638
    %v641 = vadd.f32 %v631, %v638
    %v642 = vadd.f32 %v632, %v638
    %v643 = vadd.f32 %v633, %v638
    %v644 = vadd.f32 %v634, %v638
    %v645 = vadd.f32 %v635, %v638
    %v646 = vadd.f32 %v636, %v638
    %v647 = vmax.f32 %v639, 0.0
    %v648 = vmax.f32 %v640, 0.0
    %v649 = vmax.f32 %v641, 0.0
    %v650 = vmax.f32 %v642, 0.0
    %v651 = vmax.f32 %v643, 0.0
    %v652 = vmax.f32 %v644, 0.0
    %v653 = vmax.f32 %v645, 0.0
    %v654 = vmax.f32 %v646, 0.0
    %v655 = vadd.f32 %v619, %v647
    %v656 = vadd.f32 %v620, %v648
    %v657 = vadd.f32 %v621, %v649
    %v658 = vadd.f32 %v622, %v650
    %v659 = vadd.f32 %v623, %v651
    %v660 = vadd.f32 %v624, %v652
    %v661 = vadd.f32 %v625, %v653
    %v662 = vadd.f32 %v626, %v654
    %s663 = sld [smem:[#allocation2 + $0x11]]
    %v664 = vstv %s663
    %v665 = vmul.f32 %v42, %v664
    %v666 = vmul.f32 %v43, %v664
    %v667 = vmul.f32 %v44, %v664
    %v668 = vmul.f32 %v45, %v664
    %v669 = vmul.f32 %v46, %v664
    %v670 = vmul.f32 %v47, %v664
    %v671 = vmul.f32 %v48, %v664
    %v672 = vmul.f32 %v49, %v664
    %s673 = sld [smem:[#allocation2 + $0x91]]
    %v674 = vstv %s673
    %v675 = vadd.f32 %v665, %v674
    %v676 = vadd.f32 %v666, %v674
    %v677 = vadd.f32 %v667, %v674
    %v678 = vadd.f32 %v668, %v674
    %v679 = vadd.f32 %v669, %v674
    %v680 = vadd.f32 %v670, %v674
    %v681 = vadd.f32 %v671, %v674
    %v682 = vadd.f32 %v672, %v674
    %v683 = vmax.f32 %v675, 0.0
    %v684 = vmax.f32 %v676, 0.0
    %v685 = vmax.f32 %v677, 0.0
    %v686 = vmax.f32 %v678, 0.0
    %v687 = vmax.f32 %v679, 0.0
    %v688 = vmax.f32 %v680, 0.0
    %v689 = vmax.f32 %v681, 0.0
    %v690 = vmax.f32 %v682, 0.0
    %v691 = vadd.f32 %v655, %v683
    %v692 = vadd.f32 %v656, %v684
    %v693 = vadd.f32 %v657, %v685
    %v694 = vadd.f32 %v658, %v686
    %v695 = vadd.f32 %v659, %v687
    %v696 = vadd.f32 %v660, %v688
    %v697 = vadd.f32 %v661, %v689
    %v698 = vadd.f32 %v662, %v690
    %s699 = sld [smem:[#allocation2 + $0x12]]
    %v700 = vstv %s699
    %v701 = vmul.f32 %v42, %v700
    %v702 = vmul.f32 %v43, %v700
    %v703 = vmul.f32 %v44, %v700
    %v704 = vmul.f32 %v45, %v700
    %v705 = vmul.f32 %v46, %v700
    %v706 = vmul.f32 %v47, %v700
    %v707 = vmul.f32 %v48, %v700
    %v708 = vmul.f32 %v49, %v700
    %s709 = sld [smem:[#allocation2 + $0x92]]
    %v710 = vstv %s709
    %v711 = vadd.f32 %v701, %v710
    %v712 = vadd.f32 %v702, %v710
    %v713 = vadd.f32 %v703, %v710
    %v714 = vadd.f32 %v704, %v710
    %v715 = vadd.f32 %v705, %v710
    %v716 = vadd.f32 %v706, %v710
    %v717 = vadd.f32 %v707, %v710
    %v718 = vadd.f32 %v708, %v710
    %v719 = vmax.f32 %v711, 0.0
    %v720 = vmax.f32 %v712, 0.0
    %v721 = vmax.f32 %v713, 0.0
    %v722 = vmax.f32 %v714, 0.0
    %v723 = vmax.f32 %v715, 0.0
    %v724 = vmax.f32 %v716, 0.0
    %v725 = vmax.f32 %v717, 0.0
    %v726 = vmax.f32 %v718, 0.0
    %v727 = vadd.f32 %v691, %v719
    %v728 = vadd.f32 %v692, %v720
    %v729 = vadd.f32 %v693, %v721
    %v730 = vadd.f32 %v694, %v722
    %v731 = vadd.f32 %v695, %v723
    %v732 = vadd.f32 %v696, %v724
    %v733 = vadd.f32 %v697, %v725
    %v734 = vadd.f32 %v698, %v726
    %s735 = sld [smem:[#allocation2 + $0x13]]
    %v736 = vstv %s735
    %v737 = vmul.f32 %v42, %v736
    %v738 = vmul.f32 %v43, %v736
    %v739 = vmul.f32 %v44, %v736
    %v740 = vmul.f32 %v45, %v736
    %v741 = vmul.f32 %v46, %v736
    %v742 = vmul.f32 %v47, %v736
    %v743 = vmul.f32 %v48, %v736
    %v744 = vmul.f32 %v49, %v736
    %s745 = sld [smem:[#allocation2 + $0x93]]
    %v746 = vstv %s745
    %v747 = vadd.f32 %v737, %v746
    %v748 = vadd.f32 %v738, %v746
    %v749 = vadd.f32 %v739, %v746
    %v750 = vadd.f32 %v740, %v746
    %v751 = vadd.f32 %v741, %v746
    %v752 = vadd.f32 %v742, %v746
    %v753 = vadd.f32 %v743, %v746
    %v754 = vadd.f32 %v744, %v746
    %v755 = vmax.f32 %v747, 0.0
    %v756 = vmax.f32 %v748, 0.0
    %v757 = vmax.f32 %v749, 0.0
    %v758 = vmax.f32 %v750, 0.0
    %v759 = vmax.f32 %v751, 0.0
    %v760 = vmax.f32 %v752, 0.0
    %v761 = vmax.f32 %v753, 0.0
    %v762 = vmax.f32 %v754, 0.0
    %v763 = vadd.f32 %v727, %v755
    %v764 = vadd.f32 %v728, %v756
    %v765 = vadd.f32 %v729, %v757
    %v766 = vadd.f32 %v730, %v758
    %v767 = vadd.f32 %v731, %v759
    %v768 = vadd.f32 %v732, %v760
    %v769 = vadd.f32 %v733, %v761
    %v770 = vadd.f32 %v734, %v762
    %s771 = sld [smem:[#allocation2 + $0x14]]
    %v772 = vstv %s771
    %v773 = vmul.f32 %v42, %v772
    %v774 = vmul.f32 %v43, %v772
    %v775 = vmul.f32 %v44, %v772
    %v776 = vmul.f32 %v45, %v772
    %v777 = vmul.f32 %v46, %v772
    %v778 = vmul.f32 %v47, %v772
    %v779 = vmul.f32 %v48, %v772
    %v780 = vmul.f32 %v49, %v772
    %s781 = sld [smem:[#allocation2 + $0x94]]
    %v782 = vstv %s781
    %v783 = vadd.f32 %v773, %v782
    %v784 = vadd.f32 %v774, %v782
    %v785 = vadd.f32 %v775, %v782
    %v786 = vadd.f32 %v776, %v782
    %v787 = vadd.f32 %v777, %v782
    %v788 = vadd.f32 %v778, %v782
    %v789 = vadd.f32 %v779, %v782
    %v790 = vadd.f32 %v780, %v782
    %v791 = vmax.f32 %v783, 0.0
    %v792 = vmax.f32 %v784, 0.0
    %v793 = vmax.f32 %v785, 0.0
    %v794 = vmax.f32 %v786, 0.0
    %v795 = vmax.f32 %v787, 0.0
    %v796 = vmax.f32 %v788, 0.0
    %v797 = vmax.f32 %v789, 0.0
    %v798 = vmax.f32 %v790, 0.0
    %v799 = vadd.f32 %v763, %v791
    %v800 = vadd.f32 %v764, %v792
    %v801 = vadd.f32 %v765, %v793
    %v802 = vadd.f32 %v766, %v794
    %v803 = vadd.f32 %v767, %v795
    %v804 = vadd.f32 %v768, %v796
    %v805 = vadd.f32 %v769, %v797
    %v806 = vadd.f32 %v770, %v798
    %s807 = sld [smem:[#allocation2 + $0x15]]
    %v808 = vstv %s807
    %v809 = vmul.f32 %v42, %v808
    %v810 = vmul.f32 %v43, %v808
    %v811 = vmul.f32 %v44, %v808
    %v812 = vmul.f32 %v45, %v808
    %v813 = vmul.f32 %v46, %v808
    %v814 = vmul.f32 %v47, %v808
    %v815 = vmul.f32 %v48, %v808
    %v816 = vmul.f32 %v49, %v808
    %s817 = sld [smem:[#allocation2 + $0x95]]
    %v818 = vstv %s817
    %v819 = vadd.f32 %v809, %v818
    %v820 = vadd.f32 %v810, %v818
    %v821 = vadd.f32 %v811, %v818
    %v822 = vadd.f32 %v812, %v818
    %v823 = vadd.f32 %v813, %v818
    %v824 = vadd.f32 %v814, %v818
    %v825 = vadd.f32 %v815, %v818
    %v826 = vadd.f32 %v816, %v818
    %v827 = vmax.f32 %v819, 0.0
    %v828 = vmax.f32 %v820, 0.0
    %v829 = vmax.f32 %v821, 0.0
    %v830 = vmax.f32 %v822, 0.0
    %v831 = vmax.f32 %v823, 0.0
    %v832 = vmax.f32 %v824, 0.0
    %v833 = vmax.f32 %v825, 0.0
    %v834 = vmax.f32 %v826, 0.0
    %v835 = vadd.f32 %v799, %v827
    %v836 = vadd.f32 %v800, %v828
    %v837 = vadd.f32 %v801, %v829
    %v838 = vadd.f32 %v802, %v830
    %v839 = vadd.f32 %v803, %v831
    %v840 = vadd.f32 %v804, %v832
    %v841 = vadd.f32 %v805, %v833
    %v842 = vadd.f32 %v806, %v834
    %s843 = sld [smem:[#allocation2 + $0x16]]
    %v844 = vstv %s843
    %v845 = vmul.f32 %v42, %v844
    %v846 = vmul.f32 %v43, %v844
    %v847 = vmul.f32 %v44, %v844
    %v848 = vmul.f32 %v45, %v844
    %v849 = vmul.f32 %v46, %v844
    %v850 = vmul.f32 %v47, %v844
    %v851 = vmul.f32 %v48, %v844
    %v852 = vmul.f32 %v49, %v844
    %s853 = sld [smem:[#allocation2 + $0x96]]
    %v854 = vstv %s853
    %v855 = vadd.f32 %v845, %v854
    %v856 = vadd.f32 %v846, %v854
    %v857 = vadd.f32 %v847, %v854
    %v858 = vadd.f32 %v848, %v854
    %v859 = vadd.f32 %v849, %v854
    %v860 = vadd.f32 %v850, %v854
    %v861 = vadd.f32 %v851, %v854
    %v862 = vadd.f32 %v852, %v854
    %v863 = vmax.f32 %v855, 0.0
    %v864 = vmax.f32 %v856, 0.0
    %v865 = vmax.f32 %v857, 0.0
    %v866 = vmax.f32 %v858, 0.0
    %v867 = vmax.f32 %v859, 0.0
    %v868 = vmax.f32 %v860, 0.0
    %v869 = vmax.f32 %v861, 0.0
    %v870 = vmax.f32 %v862, 0.0
    %v871 = vadd.f32 %v835, %v863
    %v872 = vadd.f32 %v836, %v864
    %v873 = vadd.f32 %v837, %v865
    %v874 = vadd.f32 %v838, %v866
    %v875 = vadd.f32 %v839, %v867
    %v876 = vadd.f32 %v840, %v868
    %v877 = vadd.f32 %v841, %v869
    %v878 = vadd.f32 %v842, %v870
    %s879 = sld [smem:[#allocation2 + $0x17]]
    %v880 = vstv %s879
    %v881 = vmul.f32 %v42, %v880
    %v882 = vmul.f32 %v43, %v880
    %v883 = vmul.f32 %v44, %v880
    %v884 = vmul.f32 %v45, %v880
    %v885 = vmul.f32 %v46, %v880
    %v886 = vmul.f32 %v47, %v880
    %v887 = vmul.f32 %v48, %v880
    %v888 = vmul.f32 %v49, %v880
    %s889 = sld [smem:[#allocation2 + $0x97]]
    %v890 = vstv %s889
    %v891 = vadd.f32 %v881, %v890
    %v892 = vadd.f32 %v882, %v890
    %v893 = vadd.f32 %v883, %v890
    %v894 = vadd.f32 %v884, %v890
    %v895 = vadd.f32 %v885, %v890
    %v896 = vadd.f32 %v886, %v890
    %v897 = vadd.f32 %v887, %v890
    %v898 = vadd.f32 %v888, %v890
    %v899 = vmax.f32 %v891, 0.0
    %v900 = vmax.f32 %v892, 0.0
    %v901 = vmax.f32 %v893, 0.0
    %v902 = vmax.f32 %v894, 0.0
    %v903 = vmax.f32 %v895, 0.0
    %v904 = vmax.f32 %v896, 0.0
    %v905 = vmax.f32 %v897, 0.0
    %v906 = vmax.f32 %v898, 0.0
    %v907 = vadd.f32 %v871, %v899
    %v908 = vadd.f32 %v872, %v900
    %v909 = vadd.f32 %v873, %v901
    %v910 = vadd.f32 %v874, %v902
    %v911 = vadd.f32 %v875, %v903
    %v912 = vadd.f32 %v876, %v904
    %v913 = vadd.f32 %v877, %v905
    %v914 = vadd.f32 %v878, %v906
    %s915 = sld [smem:[#allocation2 + $0x18]]
    %v916 = vstv %s915
    %v917 = vmul.f32 %v42, %v916
    %v918 = vmul.f32 %v43, %v916
    %v919 = vmul.f32 %v44, %v916
    %v920 = vmul.f32 %v45, %v916
    %v921 = vmul.f32 %v46, %v916
    %v922 = vmul.f32 %v47, %v916
    %v923 = vmul.f32 %v48, %v916
    %v924 = vmul.f32 %v49, %v916
    %s925 = sld [smem:[#allocation2 + $0x98]]
    %v926 = vstv %s925
    %v927 = vadd.f32 %v917, %v926
    %v928 = vadd.f32 %v918, %v926
    %v929 = vadd.f32 %v919, %v926
    %v930 = vadd.f32 %v920, %v926
    %v931 = vadd.f32 %v921, %v926
    %v932 = vadd.f32 %v922, %v926
    %v933 = vadd.f32 %v923, %v926
    %v934 = vadd.f32 %v924, %v926
    %v935 = vmax.f32 %v927, 0.0
    %v936 = vmax.f32 %v928, 0.0
    %v937 = vmax.f32 %v929, 0.0
    %v938 = vmax.f32 %v930, 0.0
    %v939 = vmax.f32 %v931, 0.0
    %v940 = vmax.f32 %v932, 0.0
    %v941 = vmax.f32 %v933, 0.0
    %v942 = vmax.f32 %v934, 0.0
    %v943 = vadd.f32 %v907, %v935
    %v944 = vadd.f32 %v908, %v936
    %v945 = vadd.f32 %v909, %v937
    %v946 = vadd.f32 %v910, %v938
    %v947 = vadd.f32 %v911, %v939
    %v948 = vadd.f32 %v912, %v940
    %v949 = vadd.f32 %v913, %v941
    %v950 = vadd.f32 %v914, %v942
    %s951 = sld [smem:[#allocation2 + $0x19]]
    %v952 = vstv %s951
    %v953 = vmul.f32 %v42, %v952
    %v954 = vmul.f32 %v43, %v952
    %v955 = vmul.f32 %v44, %v952
    %v956 = vmul.f32 %v45, %v952
    %v957 = vmul.f32 %v46, %v952
    %v958 = vmul.f32 %v47, %v952
    %v959 = vmul.f32 %v48, %v952
    %v960 = vmul.f32 %v49, %v952
    %s961 = sld [smem:[#allocation2 + $0x99]]
    %v962 = vstv %s961
    %v963 = vadd.f32 %v953, %v962
    %v964 = vadd.f32 %v954, %v962
    %v965 = vadd.f32 %v955, %v962
    %v966 = vadd.f32 %v956, %v962
    %v967 = vadd.f32 %v957, %v962
    %v968 = vadd.f32 %v958, %v962
    %v969 = vadd.f32 %v959, %v962
    %v970 = vadd.f32 %v960, %v962
    %v971 = vmax.f32 %v963, 0.0
    %v972 = vmax.f32 %v964, 0.0
    %v973 = vmax.f32 %v965, 0.0
    %v974 = vmax.f32 %v966, 0.0
    %v975 = vmax.f32 %v967, 0.0
    %v976 = vmax.f32 %v968, 0.0
    %v977 = vmax.f32 %v969, 0.0
    %v978 = vmax.f32 %v970, 0.0
    %v979 = vadd.f32 %v943, %v971
    %v980 = vadd.f32 %v944, %v972
    %v981 = vadd.f32 %v945, %v973
    %v982 = vadd.f32 %v946, %v974
    %v983 = vadd.f32 %v947, %v975
    %v984 = vadd.f32 %v948, %v976
    %v985 = vadd.f32 %v949, %v977
    %v986 = vadd.f32 %v950, %v978
    %s987 = sld [smem:[#allocation2 + $0x1a]]
    %v988 = vstv %s987
    %v989 = vmul.f32 %v42, %v988
    %v990 = vmul.f32 %v43, %v988
    %v991 = vmul.f32 %v44, %v988
    %v992 = vmul.f32 %v45, %v988
    %v993 = vmul.f32 %v46, %v988
    %v994 = vmul.f32 %v47, %v988
    %v995 = vmul.f32 %v48, %v988
    %v996 = vmul.f32 %v49, %v988
    %s997 = sld [smem:[#allocation2 + $0x9a]]
    %v998 = vstv %s997
    %v999 = vadd.f32 %v989, %v998
    %v1000 = vadd.f32 %v990, %v998
    %v1001 = vadd.f32 %v991, %v998
    %v1002 = vadd.f32 %v992, %v998
    %v1003 = vadd.f32 %v993, %v998
    %v1004 = vadd.f32 %v994, %v998
    %v1005 = vadd.f32 %v995, %v998
    %v1006 = vadd.f32 %v996, %v998
    %v1007 = vmax.f32 %v999, 0.0
    %v1008 = vmax.f32 %v1000, 0.0
    %v1009 = vmax.f32 %v1001, 0.0
    %v1010 = vmax.f32 %v1002, 0.0
    %v1011 = vmax.f32 %v1003, 0.0
    %v1012 = vmax.f32 %v1004, 0.0
    %v1013 = vmax.f32 %v1005, 0.0
    %v1014 = vmax.f32 %v1006, 0.0
    %v1015 = vadd.f32 %v979, %v1007
    %v1016 = vadd.f32 %v980, %v1008
    %v1017 = vadd.f32 %v981, %v1009
    %v1018 = vadd.f32 %v982, %v1010
    %v1019 = vadd.f32 %v983, %v1011
    %v1020 = vadd.f32 %v984, %v1012
    %v1021 = vadd.f32 %v985, %v1013
    %v1022 = vadd.f32 %v986, %v1014
    %s1023 = sld [smem:[#allocation2 + $0x1b]]
    %v1024 = vstv %s1023
    %v1025 = vmul.f32 %v42, %v1024
    %v1026 = vmul.f32 %v43, %v1024
    %v1027 = vmul.f32 %v44, %v1024
    %v1028 = vmul.f32 %v45, %v1024
    %v1029 = vmul.f32 %v46, %v1024
    %v1030 = vmul.f32 %v47, %v1024
    %v1031 = vmul.f32 %v48, %v1024
    %v1032 = vmul.f32 %v49, %v1024
    %s1033 = sld [smem:[#allocation2 + $0x9b]]
    %v1034 = vstv %s1033
    %v1035 = vadd.f32 %v1025, %v1034
    %v1036 = vadd.f32 %v1026, %v1034
    %v1037 = vadd.f32 %v1027, %v1034
    %v1038 = vadd.f32 %v1028, %v1034
    %v1039 = vadd.f32 %v1029, %v1034
    %v1040 = vadd.f32 %v1030, %v1034
    %v1041 = vadd.f32 %v1031, %v1034
    %v1042 = vadd.f32 %v1032, %v1034
    %v1043 = vmax.f32 %v1035, 0.0
    %v1044 = vmax.f32 %v1036, 0.0
    %v1045 = vmax.f32 %v1037, 0.0
    %v1046 = vmax.f32 %v1038, 0.0
    %v1047 = vmax.f32 %v1039, 0.0
    %v1048 = vmax.f32 %v1040, 0.0
    %v1049 = vmax.f32 %v1041, 0.0
    %v1050 = vmax.f32 %v1042, 0.0
    %v1051 = vadd.f32 %v1015, %v1043
    %v1052 = vadd.f32 %v1016, %v1044
    %v1053 = vadd.f32 %v1017, %v1045
    %v1054 = vadd.f32 %v1018, %v1046
    %v1055 = vadd.f32 %v1019, %v1047
    %v1056 = vadd.f32 %v1020, %v1048
    %v1057 = vadd.f32 %v1021, %v1049
    %v1058 = vadd.f32 %v1022, %v1050
    %s1059 = sld [smem:[#allocation2 + $0x1c]]
    %v1060 = vstv %s1059
    %v1061 = vmul.f32 %v42, %v1060
    %v1062 = vmul.f32 %v43, %v1060
    %v1063 = vmul.f32 %v44, %v1060
    %v1064 = vmul.f32 %v45, %v1060
    %v1065 = vmul.f32 %v46, %v1060
    %v1066 = vmul.f32 %v47, %v1060
    %v1067 = vmul.f32 %v48, %v1060
    %v1068 = vmul.f32 %v49, %v1060
    %s1069 = sld [smem:[#allocation2 + $0x9c]]
    %v1070 = vstv %s1069
    %v1071 = vadd.f32 %v1061, %v1070
    %v1072 = vadd.f32 %v1062, %v1070
    %v1073 = vadd.f32 %v1063, %v1070
    %v1074 = vadd.f32 %v1064, %v1070
    %v1075 = vadd.f32 %v1065, %v1070
    %v1076 = vadd.f32 %v1066, %v1070
    %v1077 = vadd.f32 %v1067, %v1070
    %v1078 = vadd.f32 %v1068, %v1070
    %v1079 = vmax.f32 %v1071, 0.0
    %v1080 = vmax.f32 %v1072, 0.0
    %v1081 = vmax.f32 %v1073, 0.0
    %v1082 = vmax.f32 %v1074, 0.0
    %v1083 = vmax.f32 %v1075, 0.0
    %v1084 = vmax.f32 %v1076, 0.0
    %v1085 = vmax.f32 %v1077, 0.0
    %v1086 = vmax.f32 %v1078, 0.0
    %v1087 = vadd.f32 %v1051, %v1079
    %v1088 = vadd.f32 %v1052, %v1080
    %v1089 = vadd.f32 %v1053, %v1081
    %v1090 = vadd.f32 %v1054, %v1082
    %v1091 = vadd.f32 %v1055, %v1083
    %v1092 = vadd.f32 %v1056, %v1084
    %v1093 = vadd.f32 %v1057, %v1085
    %v1094 = vadd.f32 %v1058, %v1086
    %s1095 = sld [smem:[#allocation2 + $0x1d]]
    %v1096 = vstv %s1095
    %v1097 = vmul.f32 %v42, %v1096
    %v1098 = vmul.f32 %v43, %v1096
    %v1099 = vmul.f32 %v44, %v1096
    %v1100 = vmul.f32 %v45, %v1096
    %v1101 = vmul.f32 %v46, %v1096
    %v1102 = vmul.f32 %v47, %v1096
    %v1103 = vmul.f32 %v48, %v1096
    %v1104 = vmul.f32 %v49, %v1096
    %s1105 = sld [smem:[#allocation2 + $0x9d]]
    %v1106 = vstv %s1105
    %v1107 = vadd.f32 %v1097, %v1106
    %v1108 = vadd.f32 %v1098, %v1106
    %v1109 = vadd.f32 %v1099, %v1106
    %v1110 = vadd.f32 %v1100, %v1106
    %v1111 = vadd.f32 %v1101, %v1106
    %v1112 = vadd.f32 %v1102, %v1106
    %v1113 = vadd.f32 %v1103, %v1106
    %v1114 = vadd.f32 %v1104, %v1106
    %v1115 = vmax.f32 %v1107, 0.0
    %v1116 = vmax.f32 %v1108, 0.0
    %v1117 = vmax.f32 %v1109, 0.0
    %v1118 = vmax.f32 %v1110, 0.0
    %v1119 = vmax.f32 %v1111, 0.0
    %v1120 = vmax.f32 %v1112, 0.0
    %v1121 = vmax.f32 %v1113, 0.0
    %v1122 = vmax.f32 %v1114, 0.0
    %v1123 = vsub.f32 %v1087, %v1115
    %v1124 = vsub.f32 %v1088, %v1116
    %v1125 = vsub.f32 %v1089, %v1117
    %v1126 = vsub.f32 %v1090, %v1118
    %v1127 = vsub.f32 %v1091, %v1119
    %v1128 = vsub.f32 %v1092, %v1120
    %v1129 = vsub.f32 %v1093, %v1121
    %v1130 = vsub.f32 %v1094, %v1122
    %s1131 = sld [smem:[#allocation2 + $0x1e]]
    %v1132 = vstv %s1131
    %v1133 = vmul.f32 %v42, %v1132
    %v1134 = vmul.f32 %v43, %v1132
    %v1135 = vmul.f32 %v44, %v1132
    %v1136 = vmul.f32 %v45, %v1132
    %v1137 = vmul.f32 %v46, %v1132
    %v1138 = vmul.f32 %v47, %v1132
    %v1139 = vmul.f32 %v48, %v1132
    %v1140 = vmul.f32 %v49, %v1132
    %s1141 = sld [smem:[#allocation2 + $0x9e]]
    %v1142 = vstv %s1141
    %v1143 = vadd.f32 %v1133, %v1142
    %v1144 = vadd.f32 %v1134, %v1142
    %v1145 = vadd.f32 %v1135, %v1142
    %v1146 = vadd.f32 %v1136, %v1142
    %v1147 = vadd.f32 %v1137, %v1142
    %v1148 = vadd.f32 %v1138, %v1142
    %v1149 = vadd.f32 %v1139, %v1142
    %v1150 = vadd.f32 %v1140, %v1142
    %v1151 = vmax.f32 %v1143, 0.0
    %v1152 = vmax.f32 %v1144, 0.0
    %v1153 = vmax.f32 %v1145, 0.0
    %v1154 = vmax.f32 %v1146, 0.0
    %v1155 = vmax.f32 %v1147, 0.0
    %v1156 = vmax.f32 %v1148, 0.0
    %v1157 = vmax.f32 %v1149, 0.0
    %v1158 = vmax.f32 %v1150, 0.0
    %v1159 = vsub.f32 %v1123, %v1151
    %v1160 = vsub.f32 %v1124, %v1152
    %v1161 = vsub.f32 %v1125, %v1153
    %v1162 = vsub.f32 %v1126, %v1154
    %v1163 = vsub.f32 %v1127, %v1155
    %v1164 = vsub.f32 %v1128, %v1156
    %v1165 = vsub.f32 %v1129, %v1157
    %v1166 = vsub.f32 %v1130, %v1158
    %s1167 = sld [smem:[#allocation2 + $0x1f]]
    %v1168 = vstv %s1167
    %v1169 = vmul.f32 %v42, %v1168
    %v1170 = vmul.f32 %v43, %v1168
    %v1171 = vmul.f32 %v44, %v1168
    %v1172 = vmul.f32 %v45, %v1168
    %v1173 = vmul.f32 %v46, %v1168
    %v1174 = vmul.f32 %v47, %v1168
    %v1175 = vmul.f32 %v48, %v1168
    %v1176 = vmul.f32 %v49, %v1168
    %s1177 = sld [smem:[#allocation2 + $0x9f]]
    %v1178 = vstv %s1177
    %v1179 = vadd.f32 %v1169, %v1178
    %v1180 = vadd.f32 %v1170, %v1178
    %v1181 = vadd.f32 %v1171, %v1178
    %v1182 = vadd.f32 %v1172, %v1178
    %v1183 = vadd.f32 %v1173, %v1178
    %v1184 = vadd.f32 %v1174, %v1178
    %v1185 = vadd.f32 %v1175, %v1178
    %v1186 = vadd.f32 %v1176, %v1178
    %v1187 = vmax.f32 %v1179, 0.0
    %v1188 = vmax.f32 %v1180, 0.0
    %v1189 = vmax.f32 %v1181, 0.0
    %v1190 = vmax.f32 %v1182, 0.0
    %v1191 = vmax.f32 %v1183, 0.0
    %v1192 = vmax.f32 %v1184, 0.0
    %v1193 = vmax.f32 %v1185, 0.0
    %v1194 = vmax.f32 %v1186, 0.0
    %v1195 = vsub.f32 %v1159, %v1187
    %v1196 = vsub.f32 %v1160, %v1188
    %v1197 = vsub.f32 %v1161, %v1189
    %v1198 = vsub.f32 %v1162, %v1190
    %v1199 = vsub.f32 %v1163, %v1191
    %v1200 = vsub.f32 %v1164, %v1192
    %v1201 = vsub.f32 %v1165, %v1193
    %v1202 = vsub.f32 %v1166, %v1194
    %s1203 = sld [smem:[#allocation2 + $0x20]]
    %v1204 = vstv %s1203
    %v1205 = vmul.f32 %v42, %v1204
    %v1206 = vmul.f32 %v43, %v1204
    %v1207 = vmul.f32 %v44, %v1204
    %v1208 = vmul.f32 %v45, %v1204
    %v1209 = vmul.f32 %v46, %v1204
    %v1210 = vmul.f32 %v47, %v1204
    %v1211 = vmul.f32 %v48, %v1204
    %v1212 = vmul.f32 %v49, %v1204
    %s1213 = sld [smem:[#allocation2 + $0xa0]]
    %v1214 = vstv %s1213
    %v1215 = vadd.f32 %v1205, %v1214
    %v1216 = vadd.f32 %v1206, %v1214
    %v1217 = vadd.f32 %v1207, %v1214
    %v1218 = vadd.f32 %v1208, %v1214
    %v1219 = vadd.f32 %v1209, %v1214
    %v1220 = vadd.f32 %v1210, %v1214
    %v1221 = vadd.f32 %v1211, %v1214
    %v1222 = vadd.f32 %v1212, %v1214
    %v1223 = vmax.f32 %v1215, 0.0
    %v1224 = vmax.f32 %v1216, 0.0
    %v1225 = vmax.f32 %v1217, 0.0
    %v1226 = vmax.f32 %v1218, 0.0
    %v1227 = vmax.f32 %v1219, 0.0
    %v1228 = vmax.f32 %v1220, 0.0
    %v1229 = vmax.f32 %v1221, 0.0
    %v1230 = vmax.f32 %v1222, 0.0
    %v1231 = vsub.f32 %v1195, %v1223
    %v1232 = vsub.f32 %v1196, %v1224
    %v1233 = vsub.f32 %v1197, %v1225
    %v1234 = vsub.f32 %v1198, %v1226
    %v1235 = vsub.f32 %v1199, %v1227
    %v1236 = vsub.f32 %v1200, %v1228
    %v1237 = vsub.f32 %v1201, %v1229
    %v1238 = vsub.f32 %v1202, %v1230
    %s1239 = sld [smem:[#allocation2 + $0x21]]
    %v1240 = vstv %s1239
    %v1241 = vmul.f32 %v42, %v1240
    %v1242 = vmul.f32 %v43, %v1240
    %v1243 = vmul.f32 %v44, %v1240
    %v1244 = vmul.f32 %v45, %v1240
    %v1245 = vmul.f32 %v46, %v1240
    %v1246 = vmul.f32 %v47, %v1240
    %v1247 = vmul.f32 %v48, %v1240
    %v1248 = vmul.f32 %v49, %v1240
    %s1249 = sld [smem:[#allocation2 + $0xa1]]
    %v1250 = vstv %s1249
    %v1251 = vadd.f32 %v1241, %v1250
    %v1252 = vadd.f32 %v1242, %v1250
    %v1253 = vadd.f32 %v1243, %v1250
    %v1254 = vadd.f32 %v1244, %v1250
    %v1255 = vadd.f32 %v1245, %v1250
    %v1256 = vadd.f32 %v1246, %v1250
    %v1257 = vadd.f32 %v1247, %v1250
    %v1258 = vadd.f32 %v1248, %v1250
    %v1259 = vmax.f32 %v1251, 0.0
    %v1260 = vmax.f32 %v1252, 0.0
    %v1261 = vmax.f32 %v1253, 0.0
    %v1262 = vmax.f32 %v1254, 0.0
    %v1263 = vmax.f32 %v1255, 0.0
    %v1264 = vmax.f32 %v1256, 0.0
    %v1265 = vmax.f32 %v1257, 0.0
    %v1266 = vmax.f32 %v1258, 0.0
    %v1267 = vsub.f32 %v1231, %v1259
    %v1268 = vsub.f32 %v1232, %v1260
    %v1269 = vsub.f32 %v1233, %v1261
    %v1270 = vsub.f32 %v1234, %v1262
    %v1271 = vsub.f32 %v1235, %v1263
    %v1272 = vsub.f32 %v1236, %v1264
    %v1273 = vsub.f32 %v1237, %v1265
    %v1274 = vsub.f32 %v1238, %v1266
    %s1275 = sld [smem:[#allocation2 + $0x22]]
    %v1276 = vstv %s1275
    %v1277 = vmul.f32 %v42, %v1276
    %v1278 = vmul.f32 %v43, %v1276
    %v1279 = vmul.f32 %v44, %v1276
    %v1280 = vmul.f32 %v45, %v1276
    %v1281 = vmul.f32 %v46, %v1276
    %v1282 = vmul.f32 %v47, %v1276
    %v1283 = vmul.f32 %v48, %v1276
    %v1284 = vmul.f32 %v49, %v1276
    %s1285 = sld [smem:[#allocation2 + $0xa2]]
    %v1286 = vstv %s1285
    %v1287 = vadd.f32 %v1277, %v1286
    %v1288 = vadd.f32 %v1278, %v1286
    %v1289 = vadd.f32 %v1279, %v1286
    %v1290 = vadd.f32 %v1280, %v1286
    %v1291 = vadd.f32 %v1281, %v1286
    %v1292 = vadd.f32 %v1282, %v1286
    %v1293 = vadd.f32 %v1283, %v1286
    %v1294 = vadd.f32 %v1284, %v1286
    %v1295 = vmax.f32 %v1287, 0.0
    %v1296 = vmax.f32 %v1288, 0.0
    %v1297 = vmax.f32 %v1289, 0.0
    %v1298 = vmax.f32 %v1290, 0.0
    %v1299 = vmax.f32 %v1291, 0.0
    %v1300 = vmax.f32 %v1292, 0.0
    %v1301 = vmax.f32 %v1293, 0.0
    %v1302 = vmax.f32 %v1294, 0.0
    %v1303 = vsub.f32 %v1267, %v1295
    %v1304 = vsub.f32 %v1268, %v1296
    %v1305 = vsub.f32 %v1269, %v1297
    %v1306 = vsub.f32 %v1270, %v1298
    %v1307 = vsub.f32 %v1271, %v1299
    %v1308 = vsub.f32 %v1272, %v1300
    %v1309 = vsub.f32 %v1273, %v1301
    %v1310 = vsub.f32 %v1274, %v1302
    %s1311 = sld [smem:[#allocation2 + $0x23]]
    %v1312 = vstv %s1311
    %v1313 = vmul.f32 %v42, %v1312
    %v1314 = vmul.f32 %v43, %v1312
    %v1315 = vmul.f32 %v44, %v1312
    %v1316 = vmul.f32 %v45, %v1312
    %v1317 = vmul.f32 %v46, %v1312
    %v1318 = vmul.f32 %v47, %v1312
    %v1319 = vmul.f32 %v48, %v1312
    %v1320 = vmul.f32 %v49, %v1312
    %s1321 = sld [smem:[#allocation2 + $0xa3]]
    %v1322 = vstv %s1321
    %v1323 = vadd.f32 %v1313, %v1322
    %v1324 = vadd.f32 %v1314, %v1322
    %v1325 = vadd.f32 %v1315, %v1322
    %v1326 = vadd.f32 %v1316, %v1322
    %v1327 = vadd.f32 %v1317, %v1322
    %v1328 = vadd.f32 %v1318, %v1322
    %v1329 = vadd.f32 %v1319, %v1322
    %v1330 = vadd.f32 %v1320, %v1322
    %v1331 = vmax.f32 %v1323, 0.0
    %v1332 = vmax.f32 %v1324, 0.0
    %v1333 = vmax.f32 %v1325, 0.0
    %v1334 = vmax.f32 %v1326, 0.0
    %v1335 = vmax.f32 %v1327, 0.0
    %v1336 = vmax.f32 %v1328, 0.0
    %v1337 = vmax.f32 %v1329, 0.0
    %v1338 = vmax.f32 %v1330, 0.0
    %v1339 = vsub.f32 %v1303, %v1331
    %v1340 = vsub.f32 %v1304, %v1332
    %v1341 = vsub.f32 %v1305, %v1333
    %v1342 = vsub.f32 %v1306, %v1334
    %v1343 = vsub.f32 %v1307, %v1335
    %v1344 = vsub.f32 %v1308, %v1336
    %v1345 = vsub.f32 %v1309, %v1337
    %v1346 = vsub.f32 %v1310, %v1338
    %s1347 = sld [smem:[#allocation2 + $0x24]]
    %v1348 = vstv %s1347
    %v1349 = vmul.f32 %v42, %v1348
    %v1350 = vmul.f32 %v43, %v1348
    %v1351 = vmul.f32 %v44, %v1348
    %v1352 = vmul.f32 %v45, %v1348
    %v1353 = vmul.f32 %v46, %v1348
    %v1354 = vmul.f32 %v47, %v1348
    %v1355 = vmul.f32 %v48, %v1348
    %v1356 = vmul.f32 %v49, %v1348
    %s1357 = sld [smem:[#allocation2 + $0xa4]]
    %v1358 = vstv %s1357
    %v1359 = vadd.f32 %v1349, %v1358
    %v1360 = vadd.f32 %v1350, %v1358
    %v1361 = vadd.f32 %v1351, %v1358
    %v1362 = vadd.f32 %v1352, %v1358
    %v1363 = vadd.f32 %v1353, %v1358
    %v1364 = vadd.f32 %v1354, %v1358
    %v1365 = vadd.f32 %v1355, %v1358
    %v1366 = vadd.f32 %v1356, %v1358
    %v1367 = vmax.f32 %v1359, 0.0
    %v1368 = vmax.f32 %v1360, 0.0
    %v1369 = vmax.f32 %v1361, 0.0
    %v1370 = vmax.f32 %v1362, 0.0
    %v1371 = vmax.f32 %v1363, 0.0
    %v1372 = vmax.f32 %v1364, 0.0
    %v1373 = vmax.f32 %v1365, 0.0
    %v1374 = vmax.f32 %v1366, 0.0
    %v1375 = vsub.f32 %v1339, %v1367
    %v1376 = vsub.f32 %v1340, %v1368
    %v1377 = vsub.f32 %v1341, %v1369
    %v1378 = vsub.f32 %v1342, %v1370
    %v1379 = vsub.f32 %v1343, %v1371
    %v1380 = vsub.f32 %v1344, %v1372
    %v1381 = vsub.f32 %v1345, %v1373
    %v1382 = vsub.f32 %v1346, %v1374
    %s1383 = sld [smem:[#allocation2 + $0x25]]
    %v1384 = vstv %s1383
    %v1385 = vmul.f32 %v42, %v1384
    %v1386 = vmul.f32 %v43, %v1384
    %v1387 = vmul.f32 %v44, %v1384
    %v1388 = vmul.f32 %v45, %v1384
    %v1389 = vmul.f32 %v46, %v1384
    %v1390 = vmul.f32 %v47, %v1384
    %v1391 = vmul.f32 %v48, %v1384
    %v1392 = vmul.f32 %v49, %v1384
    %s1393 = sld [smem:[#allocation2 + $0xa5]]
    %v1394 = vstv %s1393
    %v1395 = vadd.f32 %v1385, %v1394
    %v1396 = vadd.f32 %v1386, %v1394
    %v1397 = vadd.f32 %v1387, %v1394
    %v1398 = vadd.f32 %v1388, %v1394
    %v1399 = vadd.f32 %v1389, %v1394
    %v1400 = vadd.f32 %v1390, %v1394
    %v1401 = vadd.f32 %v1391, %v1394
    %v1402 = vadd.f32 %v1392, %v1394
    %v1403 = vmax.f32 %v1395, 0.0
    %v1404 = vmax.f32 %v1396, 0.0
    %v1405 = vmax.f32 %v1397, 0.0
    %v1406 = vmax.f32 %v1398, 0.0
    %v1407 = vmax.f32 %v1399, 0.0
    %v1408 = vmax.f32 %v1400, 0.0
    %v1409 = vmax.f32 %v1401, 0.0
    %v1410 = vmax.f32 %v1402, 0.0
    %v1411 = vsub.f32 %v1375, %v1403
    %v1412 = vsub.f32 %v1376, %v1404
    %v1413 = vsub.f32 %v1377, %v1405
    %v1414 = vsub.f32 %v1378, %v1406
    %v1415 = vsub.f32 %v1379, %v1407
    %v1416 = vsub.f32 %v1380, %v1408
    %v1417 = vsub.f32 %v1381, %v1409
    %v1418 = vsub.f32 %v1382, %v1410
    %s1419 = sld [smem:[#allocation2 + $0x26]]
    %v1420 = vstv %s1419
    %v1421 = vmul.f32 %v42, %v1420
    %v1422 = vmul.f32 %v43, %v1420
    %v1423 = vmul.f32 %v44, %v1420
    %v1424 = vmul.f32 %v45, %v1420
    %v1425 = vmul.f32 %v46, %v1420
    %v1426 = vmul.f32 %v47, %v1420
    %v1427 = vmul.f32 %v48, %v1420
    %v1428 = vmul.f32 %v49, %v1420
    %s1429 = sld [smem:[#allocation2 + $0xa6]]
    %v1430 = vstv %s1429
    %v1431 = vadd.f32 %v1421, %v1430
    %v1432 = vadd.f32 %v1422, %v1430
    %v1433 = vadd.f32 %v1423, %v1430
    %v1434 = vadd.f32 %v1424, %v1430
    %v1435 = vadd.f32 %v1425, %v1430
    %v1436 = vadd.f32 %v1426, %v1430
    %v1437 = vadd.f32 %v1427, %v1430
    %v1438 = vadd.f32 %v1428, %v1430
    %v1439 = vmax.f32 %v1431, 0.0
    %v1440 = vmax.f32 %v1432, 0.0
    %v1441 = vmax.f32 %v1433, 0.0
    %v1442 = vmax.f32 %v1434, 0.0
    %v1443 = vmax.f32 %v1435, 0.0
    %v1444 = vmax.f32 %v1436, 0.0
    %v1445 = vmax.f32 %v1437, 0.0
    %v1446 = vmax.f32 %v1438, 0.0
    %v1447 = vsub.f32 %v1411, %v1439
    %v1448 = vsub.f32 %v1412, %v1440
    %v1449 = vsub.f32 %v1413, %v1441
    %v1450 = vsub.f32 %v1414, %v1442
    %v1451 = vsub.f32 %v1415, %v1443
    %v1452 = vsub.f32 %v1416, %v1444
    %v1453 = vsub.f32 %v1417, %v1445
    %v1454 = vsub.f32 %v1418, %v1446
    %s1455 = sld [smem:[#allocation2 + $0x27]]
    %v1456 = vstv %s1455
    %v1457 = vmul.f32 %v42, %v1456
    %v1458 = vmul.f32 %v43, %v1456
    %v1459 = vmul.f32 %v44, %v1456
    %v1460 = vmul.f32 %v45, %v1456
    %v1461 = vmul.f32 %v46, %v1456
    %v1462 = vmul.f32 %v47, %v1456
    %v1463 = vmul.f32 %v48, %v1456
    %v1464 = vmul.f32 %v49, %v1456
    %s1465 = sld [smem:[#allocation2 + $0xa7]]
    %v1466 = vstv %s1465
    %v1467 = vadd.f32 %v1457, %v1466
    %v1468 = vadd.f32 %v1458, %v1466
    %v1469 = vadd.f32 %v1459, %v1466
    %v1470 = vadd.f32 %v1460, %v1466
    %v1471 = vadd.f32 %v1461, %v1466
    %v1472 = vadd.f32 %v1462, %v1466
    %v1473 = vadd.f32 %v1463, %v1466
    %v1474 = vadd.f32 %v1464, %v1466
    %v1475 = vmax.f32 %v1467, 0.0
    %v1476 = vmax.f32 %v1468, 0.0
    %v1477 = vmax.f32 %v1469, 0.0
    %v1478 = vmax.f32 %v1470, 0.0
    %v1479 = vmax.f32 %v1471, 0.0
    %v1480 = vmax.f32 %v1472, 0.0
    %v1481 = vmax.f32 %v1473, 0.0
    %v1482 = vmax.f32 %v1474, 0.0
    %v1483 = vsub.f32 %v1447, %v1475
    %v1484 = vsub.f32 %v1448, %v1476
    %v1485 = vsub.f32 %v1449, %v1477
    %v1486 = vsub.f32 %v1450, %v1478
    %v1487 = vsub.f32 %v1451, %v1479
    %v1488 = vsub.f32 %v1452, %v1480
    %v1489 = vsub.f32 %v1453, %v1481
    %v1490 = vsub.f32 %v1454, %v1482
    %s1491 = sld [smem:[#allocation2 + $0x28]]
    %v1492 = vstv %s1491
    %v1493 = vmul.f32 %v42, %v1492
    %v1494 = vmul.f32 %v43, %v1492
    %v1495 = vmul.f32 %v44, %v1492
    %v1496 = vmul.f32 %v45, %v1492
    %v1497 = vmul.f32 %v46, %v1492
    %v1498 = vmul.f32 %v47, %v1492
    %v1499 = vmul.f32 %v48, %v1492
    %v1500 = vmul.f32 %v49, %v1492
    %s1501 = sld [smem:[#allocation2 + $0xa8]]
    %v1502 = vstv %s1501
    %v1503 = vadd.f32 %v1493, %v1502
    %v1504 = vadd.f32 %v1494, %v1502
    %v1505 = vadd.f32 %v1495, %v1502
    %v1506 = vadd.f32 %v1496, %v1502
    %v1507 = vadd.f32 %v1497, %v1502
    %v1508 = vadd.f32 %v1498, %v1502
    %v1509 = vadd.f32 %v1499, %v1502
    %v1510 = vadd.f32 %v1500, %v1502
    %v1511 = vmax.f32 %v1503, 0.0
    %v1512 = vmax.f32 %v1504, 0.0
    %v1513 = vmax.f32 %v1505, 0.0
    %v1514 = vmax.f32 %v1506, 0.0
    %v1515 = vmax.f32 %v1507, 0.0
    %v1516 = vmax.f32 %v1508, 0.0
    %v1517 = vmax.f32 %v1509, 0.0
    %v1518 = vmax.f32 %v1510, 0.0
    %v1519 = vsub.f32 %v1483, %v1511
    %v1520 = vsub.f32 %v1484, %v1512
    %v1521 = vsub.f32 %v1485, %v1513
    %v1522 = vsub.f32 %v1486, %v1514
    %v1523 = vsub.f32 %v1487, %v1515
    %v1524 = vsub.f32 %v1488, %v1516
    %v1525 = vsub.f32 %v1489, %v1517
    %v1526 = vsub.f32 %v1490, %v1518
    %s1527 = sld [smem:[#allocation2 + $0x29]]
    %v1528 = vstv %s1527
    %v1529 = vmul.f32 %v42, %v1528
    %v1530 = vmul.f32 %v43, %v1528
    %v1531 = vmul.f32 %v44, %v1528
    %v1532 = vmul.f32 %v45, %v1528
    %v1533 = vmul.f32 %v46, %v1528
    %v1534 = vmul.f32 %v47, %v1528
    %v1535 = vmul.f32 %v48, %v1528
    %v1536 = vmul.f32 %v49, %v1528
    %s1537 = sld [smem:[#allocation2 + $0xa9]]
    %v1538 = vstv %s1537
    %v1539 = vadd.f32 %v1529, %v1538
    %v1540 = vadd.f32 %v1530, %v1538
    %v1541 = vadd.f32 %v1531, %v1538
    %v1542 = vadd.f32 %v1532, %v1538
    %v1543 = vadd.f32 %v1533, %v1538
    %v1544 = vadd.f32 %v1534, %v1538
    %v1545 = vadd.f32 %v1535, %v1538
    %v1546 = vadd.f32 %v1536, %v1538
    %v1547 = vmax.f32 %v1539, 0.0
    %v1548 = vmax.f32 %v1540, 0.0
    %v1549 = vmax.f32 %v1541, 0.0
    %v1550 = vmax.f32 %v1542, 0.0
    %v1551 = vmax.f32 %v1543, 0.0
    %v1552 = vmax.f32 %v1544, 0.0
    %v1553 = vmax.f32 %v1545, 0.0
    %v1554 = vmax.f32 %v1546, 0.0
    %v1555 = vsub.f32 %v1519, %v1547
    %v1556 = vsub.f32 %v1520, %v1548
    %v1557 = vsub.f32 %v1521, %v1549
    %v1558 = vsub.f32 %v1522, %v1550
    %v1559 = vsub.f32 %v1523, %v1551
    %v1560 = vsub.f32 %v1524, %v1552
    %v1561 = vsub.f32 %v1525, %v1553
    %v1562 = vsub.f32 %v1526, %v1554
    %s1563 = sld [smem:[#allocation2 + $0x2a]]
    %v1564 = vstv %s1563
    %v1565 = vmul.f32 %v42, %v1564
    %v1566 = vmul.f32 %v43, %v1564
    %v1567 = vmul.f32 %v44, %v1564
    %v1568 = vmul.f32 %v45, %v1564
    %v1569 = vmul.f32 %v46, %v1564
    %v1570 = vmul.f32 %v47, %v1564
    %v1571 = vmul.f32 %v48, %v1564
    %v1572 = vmul.f32 %v49, %v1564
    %s1573 = sld [smem:[#allocation2 + $0xaa]]
    %v1574 = vstv %s1573
    %v1575 = vadd.f32 %v1565, %v1574
    %v1576 = vadd.f32 %v1566, %v1574
    %v1577 = vadd.f32 %v1567, %v1574
    %v1578 = vadd.f32 %v1568, %v1574
    %v1579 = vadd.f32 %v1569, %v1574
    %v1580 = vadd.f32 %v1570, %v1574
    %v1581 = vadd.f32 %v1571, %v1574
    %v1582 = vadd.f32 %v1572, %v1574
    %v1583 = vmax.f32 %v1575, 0.0
    %v1584 = vmax.f32 %v1576, 0.0
    %v1585 = vmax.f32 %v1577, 0.0
    %v1586 = vmax.f32 %v1578, 0.0
    %v1587 = vmax.f32 %v1579, 0.0
    %v1588 = vmax.f32 %v1580, 0.0
    %v1589 = vmax.f32 %v1581, 0.0
    %v1590 = vmax.f32 %v1582, 0.0
    %v1591 = vsub.f32 %v1555, %v1583
    %v1592 = vsub.f32 %v1556, %v1584
    %v1593 = vsub.f32 %v1557, %v1585
    %v1594 = vsub.f32 %v1558, %v1586
    %v1595 = vsub.f32 %v1559, %v1587
    %v1596 = vsub.f32 %v1560, %v1588
    %v1597 = vsub.f32 %v1561, %v1589
    %v1598 = vsub.f32 %v1562, %v1590
    %s1599 = sld [smem:[#allocation2 + $0x2b]]
    %v1600 = vstv %s1599
    %v1601 = vmul.f32 %v42, %v1600
    %v1602 = vmul.f32 %v43, %v1600
    %v1603 = vmul.f32 %v44, %v1600
    %v1604 = vmul.f32 %v45, %v1600
    %v1605 = vmul.f32 %v46, %v1600
    %v1606 = vmul.f32 %v47, %v1600
    %v1607 = vmul.f32 %v48, %v1600
    %v1608 = vmul.f32 %v49, %v1600
    %s1609 = sld [smem:[#allocation2 + $0xab]]
    %v1610 = vstv %s1609
    %v1611 = vadd.f32 %v1601, %v1610
    %v1612 = vadd.f32 %v1602, %v1610
    %v1613 = vadd.f32 %v1603, %v1610
    %v1614 = vadd.f32 %v1604, %v1610
    %v1615 = vadd.f32 %v1605, %v1610
    %v1616 = vadd.f32 %v1606, %v1610
    %v1617 = vadd.f32 %v1607, %v1610
    %v1618 = vadd.f32 %v1608, %v1610
    %v1619 = vmax.f32 %v1611, 0.0
    %v1620 = vmax.f32 %v1612, 0.0
    %v1621 = vmax.f32 %v1613, 0.0
    %v1622 = vmax.f32 %v1614, 0.0
    %v1623 = vmax.f32 %v1615, 0.0
    %v1624 = vmax.f32 %v1616, 0.0
    %v1625 = vmax.f32 %v1617, 0.0
    %v1626 = vmax.f32 %v1618, 0.0
    %v1627 = vsub.f32 %v1591, %v1619
    %v1628 = vsub.f32 %v1592, %v1620
    %v1629 = vsub.f32 %v1593, %v1621
    %v1630 = vsub.f32 %v1594, %v1622
    %v1631 = vsub.f32 %v1595, %v1623
    %v1632 = vsub.f32 %v1596, %v1624
    %v1633 = vsub.f32 %v1597, %v1625
    %v1634 = vsub.f32 %v1598, %v1626
    %s1635 = sld [smem:[#allocation2 + $0x2c]]
    %v1636 = vstv %s1635
    %v1637 = vmul.f32 %v42, %v1636
    %v1638 = vmul.f32 %v43, %v1636
    %v1639 = vmul.f32 %v44, %v1636
    %v1640 = vmul.f32 %v45, %v1636
    %v1641 = vmul.f32 %v46, %v1636
    %v1642 = vmul.f32 %v47, %v1636
    %v1643 = vmul.f32 %v48, %v1636
    %v1644 = vmul.f32 %v49, %v1636
    %s1645 = sld [smem:[#allocation2 + $0xac]]
    %v1646 = vstv %s1645
    %v1647 = vadd.f32 %v1637, %v1646
    %v1648 = vadd.f32 %v1638, %v1646
    %v1649 = vadd.f32 %v1639, %v1646
    %v1650 = vadd.f32 %v1640, %v1646
    %v1651 = vadd.f32 %v1641, %v1646
    %v1652 = vadd.f32 %v1642, %v1646
    %v1653 = vadd.f32 %v1643, %v1646
    %v1654 = vadd.f32 %v1644, %v1646
    %v1655 = vmax.f32 %v1647, 0.0
    %v1656 = vmax.f32 %v1648, 0.0
    %v1657 = vmax.f32 %v1649, 0.0
    %v1658 = vmax.f32 %v1650, 0.0
    %v1659 = vmax.f32 %v1651, 0.0
    %v1660 = vmax.f32 %v1652, 0.0
    %v1661 = vmax.f32 %v1653, 0.0
    %v1662 = vmax.f32 %v1654, 0.0
    %v1663 = vsub.f32 %v1627, %v1655
    %v1664 = vsub.f32 %v1628, %v1656
    %v1665 = vsub.f32 %v1629, %v1657
    %v1666 = vsub.f32 %v1630, %v1658
    %v1667 = vsub.f32 %v1631, %v1659
    %v1668 = vsub.f32 %v1632, %v1660
    %v1669 = vsub.f32 %v1633, %v1661
    %v1670 = vsub.f32 %v1634, %v1662
    %s1671 = sld [smem:[#allocation2 + $0x2d]]
    %v1672 = vstv %s1671
    %v1673 = vmul.f32 %v42, %v1672
    %v1674 = vmul.f32 %v43, %v1672
    %v1675 = vmul.f32 %v44, %v1672
    %v1676 = vmul.f32 %v45, %v1672
    %v1677 = vmul.f32 %v46, %v1672
    %v1678 = vmul.f32 %v47, %v1672
    %v1679 = vmul.f32 %v48, %v1672
    %v1680 = vmul.f32 %v49, %v1672
    %s1681 = sld [smem:[#allocation2 + $0xad]]
    %v1682 = vstv %s1681
    %v1683 = vadd.f32 %v1673, %v1682
    %v1684 = vadd.f32 %v1674, %v1682
    %v1685 = vadd.f32 %v1675, %v1682
    %v1686 = vadd.f32 %v1676, %v1682
    %v1687 = vadd.f32 %v1677, %v1682
    %v1688 = vadd.f32 %v1678, %v1682
    %v1689 = vadd.f32 %v1679, %v1682
    %v1690 = vadd.f32 %v1680, %v1682
    %v1691 = vmax.f32 %v1683, 0.0
    %v1692 = vmax.f32 %v1684, 0.0
    %v1693 = vmax.f32 %v1685, 0.0
    %v1694 = vmax.f32 %v1686, 0.0
    %v1695 = vmax.f32 %v1687, 0.0
    %v1696 = vmax.f32 %v1688, 0.0
    %v1697 = vmax.f32 %v1689, 0.0
    %v1698 = vmax.f32 %v1690, 0.0
    %v1699 = vsub.f32 %v1663, %v1691
    %v1700 = vsub.f32 %v1664, %v1692
    %v1701 = vsub.f32 %v1665, %v1693
    %v1702 = vsub.f32 %v1666, %v1694
    %v1703 = vsub.f32 %v1667, %v1695
    %v1704 = vsub.f32 %v1668, %v1696
    %v1705 = vsub.f32 %v1669, %v1697
    %v1706 = vsub.f32 %v1670, %v1698
    %s1707 = sld [smem:[#allocation2 + $0x2e]]
    %v1708 = vstv %s1707
    %v1709 = vmul.f32 %v42, %v1708
    %v1710 = vmul.f32 %v43, %v1708
    %v1711 = vmul.f32 %v44, %v1708
    %v1712 = vmul.f32 %v45, %v1708
    %v1713 = vmul.f32 %v46, %v1708
    %v1714 = vmul.f32 %v47, %v1708
    %v1715 = vmul.f32 %v48, %v1708
    %v1716 = vmul.f32 %v49, %v1708
    %s1717 = sld [smem:[#allocation2 + $0xae]]
    %v1718 = vstv %s1717
    %v1719 = vadd.f32 %v1709, %v1718
    %v1720 = vadd.f32 %v1710, %v1718
    %v1721 = vadd.f32 %v1711, %v1718
    %v1722 = vadd.f32 %v1712, %v1718
    %v1723 = vadd.f32 %v1713, %v1718
    %v1724 = vadd.f32 %v1714, %v1718
    %v1725 = vadd.f32 %v1715, %v1718
    %v1726 = vadd.f32 %v1716, %v1718
    %v1727 = vmax.f32 %v1719, 0.0
    %v1728 = vmax.f32 %v1720, 0.0
    %v1729 = vmax.f32 %v1721, 0.0
    %v1730 = vmax.f32 %v1722, 0.0
    %v1731 = vmax.f32 %v1723, 0.0
    %v1732 = vmax.f32 %v1724, 0.0
    %v1733 = vmax.f32 %v1725, 0.0
    %v1734 = vmax.f32 %v1726, 0.0
    %v1735 = vsub.f32 %v1699, %v1727
    %v1736 = vsub.f32 %v1700, %v1728
    %v1737 = vsub.f32 %v1701, %v1729
    %v1738 = vsub.f32 %v1702, %v1730
    %v1739 = vsub.f32 %v1703, %v1731
    %v1740 = vsub.f32 %v1704, %v1732
    %v1741 = vsub.f32 %v1705, %v1733
    %v1742 = vsub.f32 %v1706, %v1734
    %s1743 = sld [smem:[#allocation2 + $0x2f]]
    %v1744 = vstv %s1743
    %v1745 = vmul.f32 %v42, %v1744
    %v1746 = vmul.f32 %v43, %v1744
    %v1747 = vmul.f32 %v44, %v1744
    %v1748 = vmul.f32 %v45, %v1744
    %v1749 = vmul.f32 %v46, %v1744
    %v1750 = vmul.f32 %v47, %v1744
    %v1751 = vmul.f32 %v48, %v1744
    %v1752 = vmul.f32 %v49, %v1744
    %s1753 = sld [smem:[#allocation2 + $0xaf]]
    %v1754 = vstv %s1753
    %v1755 = vadd.f32 %v1745, %v1754
    %v1756 = vadd.f32 %v1746, %v1754
    %v1757 = vadd.f32 %v1747, %v1754
    %v1758 = vadd.f32 %v1748, %v1754
    %v1759 = vadd.f32 %v1749, %v1754
    %v1760 = vadd.f32 %v1750, %v1754
    %v1761 = vadd.f32 %v1751, %v1754
    %v1762 = vadd.f32 %v1752, %v1754
    %v1763 = vmax.f32 %v1755, 0.0
    %v1764 = vmax.f32 %v1756, 0.0
    %v1765 = vmax.f32 %v1757, 0.0
    %v1766 = vmax.f32 %v1758, 0.0
    %v1767 = vmax.f32 %v1759, 0.0
    %v1768 = vmax.f32 %v1760, 0.0
    %v1769 = vmax.f32 %v1761, 0.0
    %v1770 = vmax.f32 %v1762, 0.0
    %v1771 = vsub.f32 %v1735, %v1763
    %v1772 = vsub.f32 %v1736, %v1764
    %v1773 = vsub.f32 %v1737, %v1765
    %v1774 = vsub.f32 %v1738, %v1766
    %v1775 = vsub.f32 %v1739, %v1767
    %v1776 = vsub.f32 %v1740, %v1768
    %v1777 = vsub.f32 %v1741, %v1769
    %v1778 = vsub.f32 %v1742, %v1770
    %s1779 = sld [smem:[#allocation2 + $0x30]]
    %v1780 = vstv %s1779
    %v1781 = vmul.f32 %v42, %v1780
    %v1782 = vmul.f32 %v43, %v1780
    %v1783 = vmul.f32 %v44, %v1780
    %v1784 = vmul.f32 %v45, %v1780
    %v1785 = vmul.f32 %v46, %v1780
    %v1786 = vmul.f32 %v47, %v1780
    %v1787 = vmul.f32 %v48, %v1780
    %v1788 = vmul.f32 %v49, %v1780
    %s1789 = sld [smem:[#allocation2 + $0xb0]]
    %v1790 = vstv %s1789
    %v1791 = vadd.f32 %v1781, %v1790
    %v1792 = vadd.f32 %v1782, %v1790
    %v1793 = vadd.f32 %v1783, %v1790
    %v1794 = vadd.f32 %v1784, %v1790
    %v1795 = vadd.f32 %v1785, %v1790
    %v1796 = vadd.f32 %v1786, %v1790
    %v1797 = vadd.f32 %v1787, %v1790
    %v1798 = vadd.f32 %v1788, %v1790
    %v1799 = vmax.f32 %v1791, 0.0
    %v1800 = vmax.f32 %v1792, 0.0
    %v1801 = vmax.f32 %v1793, 0.0
    %v1802 = vmax.f32 %v1794, 0.0
    %v1803 = vmax.f32 %v1795, 0.0
    %v1804 = vmax.f32 %v1796, 0.0
    %v1805 = vmax.f32 %v1797, 0.0
    %v1806 = vmax.f32 %v1798, 0.0
    %v1807 = vsub.f32 %v1771, %v1799
    %v1808 = vsub.f32 %v1772, %v1800
    %v1809 = vsub.f32 %v1773, %v1801
    %v1810 = vsub.f32 %v1774, %v1802
    %v1811 = vsub.f32 %v1775, %v1803
    %v1812 = vsub.f32 %v1776, %v1804
    %v1813 = vsub.f32 %v1777, %v1805
    %v1814 = vsub.f32 %v1778, %v1806
    %s1815 = sld [smem:[#allocation2 + $0x31]]
    %v1816 = vstv %s1815
    %v1817 = vmul.f32 %v42, %v1816
    %v1818 = vmul.f32 %v43, %v1816
    %v1819 = vmul.f32 %v44, %v1816
    %v1820 = vmul.f32 %v45, %v1816
    %v1821 = vmul.f32 %v46, %v1816
    %v1822 = vmul.f32 %v47, %v1816
    %v1823 = vmul.f32 %v48, %v1816
    %v1824 = vmul.f32 %v49, %v1816
    %s1825 = sld [smem:[#allocation2 + $0xb1]]
    %v1826 = vstv %s1825
    %v1827 = vadd.f32 %v1817, %v1826
    %v1828 = vadd.f32 %v1818, %v1826
    %v1829 = vadd.f32 %v1819, %v1826
    %v1830 = vadd.f32 %v1820, %v1826
    %v1831 = vadd.f32 %v1821, %v1826
    %v1832 = vadd.f32 %v1822, %v1826
    %v1833 = vadd.f32 %v1823, %v1826
    %v1834 = vadd.f32 %v1824, %v1826
    %v1835 = vmax.f32 %v1827, 0.0
    %v1836 = vmax.f32 %v1828, 0.0
    %v1837 = vmax.f32 %v1829, 0.0
    %v1838 = vmax.f32 %v1830, 0.0
    %v1839 = vmax.f32 %v1831, 0.0
    %v1840 = vmax.f32 %v1832, 0.0
    %v1841 = vmax.f32 %v1833, 0.0
    %v1842 = vmax.f32 %v1834, 0.0
    %v1843 = vsub.f32 %v1807, %v1835
    %v1844 = vsub.f32 %v1808, %v1836
    %v1845 = vsub.f32 %v1809, %v1837
    %v1846 = vsub.f32 %v1810, %v1838
    %v1847 = vsub.f32 %v1811, %v1839
    %v1848 = vsub.f32 %v1812, %v1840
    %v1849 = vsub.f32 %v1813, %v1841
    %v1850 = vsub.f32 %v1814, %v1842
    %s1851 = sld [smem:[#allocation2 + $0x32]]
    %v1852 = vstv %s1851
    %v1853 = vmul.f32 %v42, %v1852
    %v1854 = vmul.f32 %v43, %v1852
    %v1855 = vmul.f32 %v44, %v1852
    %v1856 = vmul.f32 %v45, %v1852
    %v1857 = vmul.f32 %v46, %v1852
    %v1858 = vmul.f32 %v47, %v1852
    %v1859 = vmul.f32 %v48, %v1852
    %v1860 = vmul.f32 %v49, %v1852
    %s1861 = sld [smem:[#allocation2 + $0xb2]]
    %v1862 = vstv %s1861
    %v1863 = vadd.f32 %v1853, %v1862
    %v1864 = vadd.f32 %v1854, %v1862
    %v1865 = vadd.f32 %v1855, %v1862
    %v1866 = vadd.f32 %v1856, %v1862
    %v1867 = vadd.f32 %v1857, %v1862
    %v1868 = vadd.f32 %v1858, %v1862
    %v1869 = vadd.f32 %v1859, %v1862
    %v1870 = vadd.f32 %v1860, %v1862
    %v1871 = vmax.f32 %v1863, 0.0
    %v1872 = vmax.f32 %v1864, 0.0
    %v1873 = vmax.f32 %v1865, 0.0
    %v1874 = vmax.f32 %v1866, 0.0
    %v1875 = vmax.f32 %v1867, 0.0
    %v1876 = vmax.f32 %v1868, 0.0
    %v1877 = vmax.f32 %v1869, 0.0
    %v1878 = vmax.f32 %v1870, 0.0
    %v1879 = vsub.f32 %v1843, %v1871
    %v1880 = vsub.f32 %v1844, %v1872
    %v1881 = vsub.f32 %v1845, %v1873
    %v1882 = vsub.f32 %v1846, %v1874
    %v1883 = vsub.f32 %v1847, %v1875
    %v1884 = vsub.f32 %v1848, %v1876
    %v1885 = vsub.f32 %v1849, %v1877
    %v1886 = vsub.f32 %v1850, %v1878
    %s1887 = sld [smem:[#allocation2 + $0x33]]
    %v1888 = vstv %s1887
    %v1889 = vmul.f32 %v42, %v1888
    %v1890 = vmul.f32 %v43, %v1888
    %v1891 = vmul.f32 %v44, %v1888
    %v1892 = vmul.f32 %v45, %v1888
    %v1893 = vmul.f32 %v46, %v1888
    %v1894 = vmul.f32 %v47, %v1888
    %v1895 = vmul.f32 %v48, %v1888
    %v1896 = vmul.f32 %v49, %v1888
    %s1897 = sld [smem:[#allocation2 + $0xb3]]
    %v1898 = vstv %s1897
    %v1899 = vadd.f32 %v1889, %v1898
    %v1900 = vadd.f32 %v1890, %v1898
    %v1901 = vadd.f32 %v1891, %v1898
    %v1902 = vadd.f32 %v1892, %v1898
    %v1903 = vadd.f32 %v1893, %v1898
    %v1904 = vadd.f32 %v1894, %v1898
    %v1905 = vadd.f32 %v1895, %v1898
    %v1906 = vadd.f32 %v1896, %v1898
    %v1907 = vmax.f32 %v1899, 0.0
    %v1908 = vmax.f32 %v1900, 0.0
    %v1909 = vmax.f32 %v1901, 0.0
    %v1910 = vmax.f32 %v1902, 0.0
    %v1911 = vmax.f32 %v1903, 0.0
    %v1912 = vmax.f32 %v1904, 0.0
    %v1913 = vmax.f32 %v1905, 0.0
    %v1914 = vmax.f32 %v1906, 0.0
    %v1915 = vsub.f32 %v1879, %v1907
    %v1916 = vsub.f32 %v1880, %v1908
    %v1917 = vsub.f32 %v1881, %v1909
    %v1918 = vsub.f32 %v1882, %v1910
    %v1919 = vsub.f32 %v1883, %v1911
    %v1920 = vsub.f32 %v1884, %v1912
    %v1921 = vsub.f32 %v1885, %v1913
    %v1922 = vsub.f32 %v1886, %v1914
    %s1923 = sld [smem:[#allocation2 + $0x34]]
    %v1924 = vstv %s1923
    %v1925 = vmul.f32 %v42, %v1924
    %v1926 = vmul.f32 %v43, %v1924
    %v1927 = vmul.f32 %v44, %v1924
    %v1928 = vmul.f32 %v45, %v1924
    %v1929 = vmul.f32 %v46, %v1924
    %v1930 = vmul.f32 %v47, %v1924
    %v1931 = vmul.f32 %v48, %v1924
    %v1932 = vmul.f32 %v49, %v1924
    %s1933 = sld [smem:[#allocation2 + $0xb4]]
    %v1934 = vstv %s1933
    %v1935 = vadd.f32 %v1925, %v1934
    %v1936 = vadd.f32 %v1926, %v1934
    %v1937 = vadd.f32 %v1927, %v1934
    %v1938 = vadd.f32 %v1928, %v1934
    %v1939 = vadd.f32 %v1929, %v1934
    %v1940 = vadd.f32 %v1930, %v1934
    %v1941 = vadd.f32 %v1931, %v1934
    %v1942 = vadd.f32 %v1932, %v1934
    %v1943 = vmax.f32 %v1935, 0.0
    %v1944 = vmax.f32 %v1936, 0.0
    %v1945 = vmax.f32 %v1937, 0.0
    %v1946 = vmax.f32 %v1938, 0.0
    %v1947 = vmax.f32 %v1939, 0.0
    %v1948 = vmax.f32 %v1940, 0.0
    %v1949 = vmax.f32 %v1941, 0.0
    %v1950 = vmax.f32 %v1942, 0.0
    %v1951 = vsub.f32 %v1915, %v1943
    %v1952 = vsub.f32 %v1916, %v1944
    %v1953 = vsub.f32 %v1917, %v1945
    %v1954 = vsub.f32 %v1918, %v1946
    %v1955 = vsub.f32 %v1919, %v1947
    %v1956 = vsub.f32 %v1920, %v1948
    %v1957 = vsub.f32 %v1921, %v1949
    %v1958 = vsub.f32 %v1922, %v1950
    %s1959 = sld [smem:[#allocation2 + $0x35]]
    %v1960 = vstv %s1959
    %v1961 = vmul.f32 %v42, %v1960
    %v1962 = vmul.f32 %v43, %v1960
    %v1963 = vmul.f32 %v44, %v1960
    %v1964 = vmul.f32 %v45, %v1960
    %v1965 = vmul.f32 %v46, %v1960
    %v1966 = vmul.f32 %v47, %v1960
    %v1967 = vmul.f32 %v48, %v1960
    %v1968 = vmul.f32 %v49, %v1960
    %s1969 = sld [smem:[#allocation2 + $0xb5]]
    %v1970 = vstv %s1969
    %v1971 = vadd.f32 %v1961, %v1970
    %v1972 = vadd.f32 %v1962, %v1970
    %v1973 = vadd.f32 %v1963, %v1970
    %v1974 = vadd.f32 %v1964, %v1970
    %v1975 = vadd.f32 %v1965, %v1970
    %v1976 = vadd.f32 %v1966, %v1970
    %v1977 = vadd.f32 %v1967, %v1970
    %v1978 = vadd.f32 %v1968, %v1970
    %v1979 = vmax.f32 %v1971, 0.0
    %v1980 = vmax.f32 %v1972, 0.0
    %v1981 = vmax.f32 %v1973, 0.0
    %v1982 = vmax.f32 %v1974, 0.0
    %v1983 = vmax.f32 %v1975, 0.0
    %v1984 = vmax.f32 %v1976, 0.0
    %v1985 = vmax.f32 %v1977, 0.0
    %v1986 = vmax.f32 %v1978, 0.0
    %v1987 = vsub.f32 %v1951, %v1979
    %v1988 = vsub.f32 %v1952, %v1980
    %v1989 = vsub.f32 %v1953, %v1981
    %v1990 = vsub.f32 %v1954, %v1982
    %v1991 = vsub.f32 %v1955, %v1983
    %v1992 = vsub.f32 %v1956, %v1984
    %v1993 = vsub.f32 %v1957, %v1985
    %v1994 = vsub.f32 %v1958, %v1986
    %s1995 = sld [smem:[#allocation2 + $0x36]]
    %v1996 = vstv %s1995
    %v1997 = vmul.f32 %v42, %v1996
    %v1998 = vmul.f32 %v43, %v1996
    %v1999 = vmul.f32 %v44, %v1996
    %v2000 = vmul.f32 %v45, %v1996
    %v2001 = vmul.f32 %v46, %v1996
    %v2002 = vmul.f32 %v47, %v1996
    %v2003 = vmul.f32 %v48, %v1996
    %v2004 = vmul.f32 %v49, %v1996
    %s2005 = sld [smem:[#allocation2 + $0xb6]]
    %v2006 = vstv %s2005
    %v2007 = vadd.f32 %v1997, %v2006
    %v2008 = vadd.f32 %v1998, %v2006
    %v2009 = vadd.f32 %v1999, %v2006
    %v2010 = vadd.f32 %v2000, %v2006
    %v2011 = vadd.f32 %v2001, %v2006
    %v2012 = vadd.f32 %v2002, %v2006
    %v2013 = vadd.f32 %v2003, %v2006
    %v2014 = vadd.f32 %v2004, %v2006
    %v2015 = vmax.f32 %v2007, 0.0
    %v2016 = vmax.f32 %v2008, 0.0
    %v2017 = vmax.f32 %v2009, 0.0
    %v2018 = vmax.f32 %v2010, 0.0
    %v2019 = vmax.f32 %v2011, 0.0
    %v2020 = vmax.f32 %v2012, 0.0
    %v2021 = vmax.f32 %v2013, 0.0
    %v2022 = vmax.f32 %v2014, 0.0
    %v2023 = vsub.f32 %v1987, %v2015
    %v2024 = vsub.f32 %v1988, %v2016
    %v2025 = vsub.f32 %v1989, %v2017
    %v2026 = vsub.f32 %v1990, %v2018
    %v2027 = vsub.f32 %v1991, %v2019
    %v2028 = vsub.f32 %v1992, %v2020
    %v2029 = vsub.f32 %v1993, %v2021
    %v2030 = vsub.f32 %v1994, %v2022
    %s2031 = sld [smem:[#allocation2 + $0x37]]
    %v2032 = vstv %s2031
    %v2033 = vmul.f32 %v42, %v2032
    %v2034 = vmul.f32 %v43, %v2032
    %v2035 = vmul.f32 %v44, %v2032
    %v2036 = vmul.f32 %v45, %v2032
    %v2037 = vmul.f32 %v46, %v2032
    %v2038 = vmul.f32 %v47, %v2032
    %v2039 = vmul.f32 %v48, %v2032
    %v2040 = vmul.f32 %v49, %v2032
    %s2041 = sld [smem:[#allocation2 + $0xb7]]
    %v2042 = vstv %s2041
    %v2043 = vadd.f32 %v2033, %v2042
    %v2044 = vadd.f32 %v2034, %v2042
    %v2045 = vadd.f32 %v2035, %v2042
    %v2046 = vadd.f32 %v2036, %v2042
    %v2047 = vadd.f32 %v2037, %v2042
    %v2048 = vadd.f32 %v2038, %v2042
    %v2049 = vadd.f32 %v2039, %v2042
    %v2050 = vadd.f32 %v2040, %v2042
    %v2051 = vmax.f32 %v2043, 0.0
    %v2052 = vmax.f32 %v2044, 0.0
    %v2053 = vmax.f32 %v2045, 0.0
    %v2054 = vmax.f32 %v2046, 0.0
    %v2055 = vmax.f32 %v2047, 0.0
    %v2056 = vmax.f32 %v2048, 0.0
    %v2057 = vmax.f32 %v2049, 0.0
    %v2058 = vmax.f32 %v2050, 0.0
    %v2059 = vsub.f32 %v2023, %v2051
    %v2060 = vsub.f32 %v2024, %v2052
    %v2061 = vsub.f32 %v2025, %v2053
    %v2062 = vsub.f32 %v2026, %v2054
    %v2063 = vsub.f32 %v2027, %v2055
    %v2064 = vsub.f32 %v2028, %v2056
    %v2065 = vsub.f32 %v2029, %v2057
    %v2066 = vsub.f32 %v2030, %v2058
    %s2067 = sld [smem:[#allocation2 + $0x38]]
    %v2068 = vstv %s2067
    %v2069 = vmul.f32 %v42, %v2068
    %v2070 = vmul.f32 %v43, %v2068
    %v2071 = vmul.f32 %v44, %v2068
    %v2072 = vmul.f32 %v45, %v2068
    %v2073 = vmul.f32 %v46, %v2068
    %v2074 = vmul.f32 %v47, %v2068
    %v2075 = vmul.f32 %v48, %v2068
    %v2076 = vmul.f32 %v49, %v2068
    %s2077 = sld [smem:[#allocation2 + $0xb8]]
    %v2078 = vstv %s2077
    %v2079 = vadd.f32 %v2069, %v2078
    %v2080 = vadd.f32 %v2070, %v2078
    %v2081 = vadd.f32 %v2071, %v2078
    %v2082 = vadd.f32 %v2072, %v2078
    %v2083 = vadd.f32 %v2073, %v2078
    %v2084 = vadd.f32 %v2074, %v2078
    %v2085 = vadd.f32 %v2075, %v2078
    %v2086 = vadd.f32 %v2076, %v2078
    %v2087 = vmax.f32 %v2079, 0.0
    %v2088 = vmax.f32 %v2080, 0.0
    %v2089 = vmax.f32 %v2081, 0.0
    %v2090 = vmax.f32 %v2082, 0.0
    %v2091 = vmax.f32 %v2083, 0.0
    %v2092 = vmax.f32 %v2084, 0.0
    %v2093 = vmax.f32 %v2085, 0.0
    %v2094 = vmax.f32 %v2086, 0.0
    %v2095 = vsub.f32 %v2059, %v2087
    %v2096 = vsub.f32 %v2060, %v2088
    %v2097 = vsub.f32 %v2061, %v2089
    %v2098 = vsub.f32 %v2062, %v2090
    %v2099 = vsub.f32 %v2063, %v2091
    %v2100 = vsub.f32 %v2064, %v2092
    %v2101 = vsub.f32 %v2065, %v2093
    %v2102 = vsub.f32 %v2066, %v2094
    %s2103 = sld [smem:[#allocation2 + $0x39]]
    %v2104 = vstv %s2103
    %v2105 = vmul.f32 %v42, %v2104
    %v2106 = vmul.f32 %v43, %v2104
    %v2107 = vmul.f32 %v44, %v2104
    %v2108 = vmul.f32 %v45, %v2104
    %v2109 = vmul.f32 %v46, %v2104
    %v2110 = vmul.f32 %v47, %v2104
    %v2111 = vmul.f32 %v48, %v2104
    %v2112 = vmul.f32 %v49, %v2104
    %s2113 = sld [smem:[#allocation2 + $0xb9]]
    %v2114 = vstv %s2113
    %v2115 = vadd.f32 %v2105, %v2114
    %v2116 = vadd.f32 %v2106, %v2114
    %v2117 = vadd.f32 %v2107, %v2114
    %v2118 = vadd.f32 %v2108, %v2114
    %v2119 = vadd.f32 %v2109, %v2114
    %v2120 = vadd.f32 %v2110, %v2114
    %v2121 = vadd.f32 %v2111, %v2114
    %v2122 = vadd.f32 %v2112, %v2114
    %v2123 = vmax.f32 %v2115, 0.0
    %v2124 = vmax.f32 %v2116, 0.0
    %v2125 = vmax.f32 %v2117, 0.0
    %v2126 = vmax.f32 %v2118, 0.0
    %v2127 = vmax.f32 %v2119, 0.0
    %v2128 = vmax.f32 %v2120, 0.0
    %v2129 = vmax.f32 %v2121, 0.0
    %v2130 = vmax.f32 %v2122, 0.0
    %v2131 = vsub.f32 %v2095, %v2123
    %v2132 = vsub.f32 %v2096, %v2124
    %v2133 = vsub.f32 %v2097, %v2125
    %v2134 = vsub.f32 %v2098, %v2126
    %v2135 = vsub.f32 %v2099, %v2127
    %v2136 = vsub.f32 %v2100, %v2128
    %v2137 = vsub.f32 %v2101, %v2129
    %v2138 = vsub.f32 %v2102, %v2130
    %s2139 = sld [smem:[#allocation2 + $0x3a]]
    %v2140 = vstv %s2139
    %v2141 = vmul.f32 %v42, %v2140
    %v2142 = vmul.f32 %v43, %v2140
    %v2143 = vmul.f32 %v44, %v2140
    %v2144 = vmul.f32 %v45, %v2140
    %v2145 = vmul.f32 %v46, %v2140
    %v2146 = vmul.f32 %v47, %v2140
    %v2147 = vmul.f32 %v48, %v2140
    %v2148 = vmul.f32 %v49, %v2140
    %s2149 = sld [smem:[#allocation2 + $0xba]]
    %v2150 = vstv %s2149
    %v2151 = vadd.f32 %v2141, %v2150
    %v2152 = vadd.f32 %v2142, %v2150
    %v2153 = vadd.f32 %v2143, %v2150
    %v2154 = vadd.f32 %v2144, %v2150
    %v2155 = vadd.f32 %v2145, %v2150
    %v2156 = vadd.f32 %v2146, %v2150
    %v2157 = vadd.f32 %v2147, %v2150
    %v2158 = vadd.f32 %v2148, %v2150
    %v2159 = vmax.f32 %v2151, 0.0
    %v2160 = vmax.f32 %v2152, 0.0
    %v2161 = vmax.f32 %v2153, 0.0
    %v2162 = vmax.f32 %v2154, 0.0
    %v2163 = vmax.f32 %v2155, 0.0
    %v2164 = vmax.f32 %v2156, 0.0
    %v2165 = vmax.f32 %v2157, 0.0
    %v2166 = vmax.f32 %v2158, 0.0
    %v2167 = vsub.f32 %v2131, %v2159
    %v2168 = vsub.f32 %v2132, %v2160
    %v2169 = vsub.f32 %v2133, %v2161
    %v2170 = vsub.f32 %v2134, %v2162
    %v2171 = vsub.f32 %v2135, %v2163
    %v2172 = vsub.f32 %v2136, %v2164
    %v2173 = vsub.f32 %v2137, %v2165
    %v2174 = vsub.f32 %v2138, %v2166
    %s2175 = sld [smem:[#allocation2 + $0x3b]]
    %v2176 = vstv %s2175
    %v2177 = vmul.f32 %v42, %v2176
    %v2178 = vmul.f32 %v43, %v2176
    %v2179 = vmul.f32 %v44, %v2176
    %v2180 = vmul.f32 %v45, %v2176
    %v2181 = vmul.f32 %v46, %v2176
    %v2182 = vmul.f32 %v47, %v2176
    %v2183 = vmul.f32 %v48, %v2176
    %v2184 = vmul.f32 %v49, %v2176
    %s2185 = sld [smem:[#allocation2 + $0xbb]]
    %v2186 = vstv %s2185
    %v2187 = vadd.f32 %v2177, %v2186
    %v2188 = vadd.f32 %v2178, %v2186
    %v2189 = vadd.f32 %v2179, %v2186
    %v2190 = vadd.f32 %v2180, %v2186
    %v2191 = vadd.f32 %v2181, %v2186
    %v2192 = vadd.f32 %v2182, %v2186
    %v2193 = vadd.f32 %v2183, %v2186
    %v2194 = vadd.f32 %v2184, %v2186
    %v2195 = vmax.f32 %v2187, 0.0
    %v2196 = vmax.f32 %v2188, 0.0
    %v2197 = vmax.f32 %v2189, 0.0
    %v2198 = vmax.f32 %v2190, 0.0
    %v2199 = vmax.f32 %v2191, 0.0
    %v2200 = vmax.f32 %v2192, 0.0
    %v2201 = vmax.f32 %v2193, 0.0
    %v2202 = vmax.f32 %v2194, 0.0
    %v2203 = vsub.f32 %v2167, %v2195
    %v2204 = vsub.f32 %v2168, %v2196
    %v2205 = vsub.f32 %v2169, %v2197
    %v2206 = vsub.f32 %v2170, %v2198
    %v2207 = vsub.f32 %v2171, %v2199
    %v2208 = vsub.f32 %v2172, %v2200
    %v2209 = vsub.f32 %v2173, %v2201
    %v2210 = vsub.f32 %v2174, %v2202
    %s2211 = sld [smem:[#allocation2 + $0x3c]]
    %v2212 = vstv %s2211
    %v2213 = vmul.f32 %v42, %v2212
    %v2214 = vmul.f32 %v43, %v2212
    %v2215 = vmul.f32 %v44, %v2212
    %v2216 = vmul.f32 %v45, %v2212
    %v2217 = vmul.f32 %v46, %v2212
    %v2218 = vmul.f32 %v47, %v2212
    %v2219 = vmul.f32 %v48, %v2212
    %v2220 = vmul.f32 %v49, %v2212
    %s2221 = sld [smem:[#allocation2 + $0xbc]]
    %v2222 = vstv %s2221
    %v2223 = vadd.f32 %v2213, %v2222
    %v2224 = vadd.f32 %v2214, %v2222
    %v2225 = vadd.f32 %v2215, %v2222
    %v2226 = vadd.f32 %v2216, %v2222
    %v2227 = vadd.f32 %v2217, %v2222
    %v2228 = vadd.f32 %v2218, %v2222
    %v2229 = vadd.f32 %v2219, %v2222
    %v2230 = vadd.f32 %v2220, %v2222
    %v2231 = vmax.f32 %v2223, 0.0
    %v2232 = vmax.f32 %v2224, 0.0
    %v2233 = vmax.f32 %v2225, 0.0
    %v2234 = vmax.f32 %v2226, 0.0
    %v2235 = vmax.f32 %v2227, 0.0
    %v2236 = vmax.f32 %v2228, 0.0
    %v2237 = vmax.f32 %v2229, 0.0
    %v2238 = vmax.f32 %v2230, 0.0
    %v2239 = vsub.f32 %v2203, %v2231
    %v2240 = vsub.f32 %v2204, %v2232
    %v2241 = vsub.f32 %v2205, %v2233
    %v2242 = vsub.f32 %v2206, %v2234
    %v2243 = vsub.f32 %v2207, %v2235
    %v2244 = vsub.f32 %v2208, %v2236
    %v2245 = vsub.f32 %v2209, %v2237
    %v2246 = vsub.f32 %v2210, %v2238
    %s2247 = sld [smem:[#allocation2 + $0x3d]]
    %v2248 = vstv %s2247
    %v2249 = vmul.f32 %v42, %v2248
    %v2250 = vmul.f32 %v43, %v2248
    %v2251 = vmul.f32 %v44, %v2248
    %v2252 = vmul.f32 %v45, %v2248
    %v2253 = vmul.f32 %v46, %v2248
    %v2254 = vmul.f32 %v47, %v2248
    %v2255 = vmul.f32 %v48, %v2248
    %v2256 = vmul.f32 %v49, %v2248
    %s2257 = sld [smem:[#allocation2 + $0xbd]]
    %v2258 = vstv %s2257
    %v2259 = vadd.f32 %v2249, %v2258
    %v2260 = vadd.f32 %v2250, %v2258
    %v2261 = vadd.f32 %v2251, %v2258
    %v2262 = vadd.f32 %v2252, %v2258
    %v2263 = vadd.f32 %v2253, %v2258
    %v2264 = vadd.f32 %v2254, %v2258
    %v2265 = vadd.f32 %v2255, %v2258
    %v2266 = vadd.f32 %v2256, %v2258
    %v2267 = vmax.f32 %v2259, 0.0
    %v2268 = vmax.f32 %v2260, 0.0
    %v2269 = vmax.f32 %v2261, 0.0
    %v2270 = vmax.f32 %v2262, 0.0
    %v2271 = vmax.f32 %v2263, 0.0
    %v2272 = vmax.f32 %v2264, 0.0
    %v2273 = vmax.f32 %v2265, 0.0
    %v2274 = vmax.f32 %v2266, 0.0
    %v2275 = vsub.f32 %v2239, %v2267
    %v2276 = vsub.f32 %v2240, %v2268
    %v2277 = vsub.f32 %v2241, %v2269
    %v2278 = vsub.f32 %v2242, %v2270
    %v2279 = vsub.f32 %v2243, %v2271
    %v2280 = vsub.f32 %v2244, %v2272
    %v2281 = vsub.f32 %v2245, %v2273
    %v2282 = vsub.f32 %v2246, %v2274
    %s2283 = sld [smem:[#allocation2 + $0x3e]]
    %v2284 = vstv %s2283
    %v2285 = vmul.f32 %v42, %v2284
    %v2286 = vmul.f32 %v43, %v2284
    %v2287 = vmul.f32 %v44, %v2284
    %v2288 = vmul.f32 %v45, %v2284
    %v2289 = vmul.f32 %v46, %v2284
    %v2290 = vmul.f32 %v47, %v2284
    %v2291 = vmul.f32 %v48, %v2284
    %v2292 = vmul.f32 %v49, %v2284
    %s2293 = sld [smem:[#allocation2 + $0xbe]]
    %v2294 = vstv %s2293
    %v2295 = vadd.f32 %v2285, %v2294
    %v2296 = vadd.f32 %v2286, %v2294
    %v2297 = vadd.f32 %v2287, %v2294
    %v2298 = vadd.f32 %v2288, %v2294
    %v2299 = vadd.f32 %v2289, %v2294
    %v2300 = vadd.f32 %v2290, %v2294
    %v2301 = vadd.f32 %v2291, %v2294
    %v2302 = vadd.f32 %v2292, %v2294
    %v2303 = vmax.f32 %v2295, 0.0
    %v2304 = vmax.f32 %v2296, 0.0
    %v2305 = vmax.f32 %v2297, 0.0
    %v2306 = vmax.f32 %v2298, 0.0
    %v2307 = vmax.f32 %v2299, 0.0
    %v2308 = vmax.f32 %v2300, 0.0
    %v2309 = vmax.f32 %v2301, 0.0
    %v2310 = vmax.f32 %v2302, 0.0
    %v2311 = vsub.f32 %v2275, %v2303
    %v2312 = vsub.f32 %v2276, %v2304
    %v2313 = vsub.f32 %v2277, %v2305
    %v2314 = vsub.f32 %v2278, %v2306
    %v2315 = vsub.f32 %v2279, %v2307
    %v2316 = vsub.f32 %v2280, %v2308
    %v2317 = vsub.f32 %v2281, %v2309
    %v2318 = vsub.f32 %v2282, %v2310
    %s2319 = sld [smem:[#allocation2 + $0x3f]]
    %v2320 = vstv %s2319
    %v2321 = vmul.f32 %v42, %v2320
    %v2322 = vmul.f32 %v43, %v2320
    %v2323 = vmul.f32 %v44, %v2320
    %v2324 = vmul.f32 %v45, %v2320
    %v2325 = vmul.f32 %v46, %v2320
    %v2326 = vmul.f32 %v47, %v2320
    %v2327 = vmul.f32 %v48, %v2320
    %v2328 = vmul.f32 %v49, %v2320
    %s2329 = sld [smem:[#allocation2 + $0xbf]]
    %v2330 = vstv %s2329
    %v2331 = vadd.f32 %v2321, %v2330
    %v2332 = vadd.f32 %v2322, %v2330
    %v2333 = vadd.f32 %v2323, %v2330
    %v2334 = vadd.f32 %v2324, %v2330
    %v2335 = vadd.f32 %v2325, %v2330
    %v2336 = vadd.f32 %v2326, %v2330
    %v2337 = vadd.f32 %v2327, %v2330
    %v2338 = vadd.f32 %v2328, %v2330
    %v2339 = vmax.f32 %v2331, 0.0
    %v2340 = vmax.f32 %v2332, 0.0
    %v2341 = vmax.f32 %v2333, 0.0
    %v2342 = vmax.f32 %v2334, 0.0
    %v2343 = vmax.f32 %v2335, 0.0
    %v2344 = vmax.f32 %v2336, 0.0
    %v2345 = vmax.f32 %v2337, 0.0
    %v2346 = vmax.f32 %v2338, 0.0
    %v2347 = vsub.f32 %v2311, %v2339
    %v2348 = vsub.f32 %v2312, %v2340
    %v2349 = vsub.f32 %v2313, %v2341
    %v2350 = vsub.f32 %v2314, %v2342
    %v2351 = vsub.f32 %v2315, %v2343
    %v2352 = vsub.f32 %v2316, %v2344
    %v2353 = vsub.f32 %v2317, %v2345
    %v2354 = vsub.f32 %v2318, %v2346
    %2355 = vst [vmem:[#allocation7] sm:$0xff] %v2347
    %2356 = vst [vmem:[#allocation7 + $0x8] sm:$0xff] %v2348
    %2357 = vst [vmem:[#allocation7 + $0x10] sm:$0xff] %v2349
    %2358 = vst [vmem:[#allocation7 + $0x18] sm:$0xff] %v2350
    %2359 = vst [vmem:[#allocation7 + $0x20] sm:$0xff] %v2351
    %2360 = vst [vmem:[#allocation7 + $0x28] sm:$0xff] %v2352
    %2361 = vst [vmem:[#allocation7 + $0x30] sm:$0xff] %v2353
    %2362 = vst [vmem:[#allocation7 + $0x38] sm:$0xff] %v2354
    // Predicated region
    $region18: #{tpu_custom_call.1} parent=1 // pred_check
      _
    $region19: #{tpu_custom_call.1} parent=1 // pred_check_branch
      %2364 = sbr.rel (0) target = $region21
    $region20: #{tpu_custom_call.1} parent=1 // pred_region
      %2366 = vsyncadd [#allocation4], 0
      %s2367 = sshll.u32 [#allocation7], 4
      %s2368 = int_to_ptr.vmem [resolvable:$true] %s2367
      %s2369 = sshll.u32 %s2, 4
      %s2370 = int_to_ptr.hbm [resolvable:$true] %s2369
      %2375 = dma.vmem_to_hbm [thread:$0]  %s2368, 1024, %s2370, [#allocation4], 128, 128, 8
    $region21: #{tpu_custom_call.1} parent=1 // pred_fallthru
      _
    // Predicated region
    $region22: #{tpu_custom_call.1} parent=1 // pred_check
      _
    $region23: #{tpu_custom_call.1} parent=1 // pred_check_branch
      %2377 = sbr.rel (0) target = $region25
    $region24: #{tpu_custom_call.1} parent=1 // pred_region
      %2379 = dma.done [#allocation4], 1024
    $region25: #{tpu_custom_call.1} parent=1 // pred_fallthru
      _
    %2380 = vsyncpa [#allocation3], 1
    %2381 = vsyncpa [#allocation4], 1
    %2382 = vsyncpa [#allocation5], 1

</llo_original>
